<compile_context>
chip_gen: v7x
topology: tpu7x:2x2x1
jax: 0.10.0
libtpu: 0.0.40
codegen_flags: <defaults>
</compile_context>

<pallas_src>
import jax
import jax.numpy as jnp
from jax import lax
from jax.experimental import pallas as pl
from jax.experimental.pallas import tpu as pltpu


LANE = 128                 # channel axis padded to a multiple of the lane width
TARGET_M = 128             # target rows*W per matmul chunk (keeps acc in vregs)
MXU_DTYPE = jnp.bfloat16   # MXU operand dtype (accumulation stays f32)
MID_DTYPE = jnp.bfloat16   # conv1->conv2 staging scratch dtype


def _basic_block_kernel(xpad_ref, w1_ref, b1_ref, w2_ref, b2_ref, out_ref, mid_ref):
    # xpad_ref : (H+2, W+2, Cp) f32   zero-padded (spatial halo + channel) input
    # w1_ref   : (9, Cp, Cp)   bf16   conv1 taps (kh*3+kw, Cin, Cout), BN1 scale folded
    # b1_ref   : (1, Cp)       f32    folded BN1 bias
    # w2_ref   : (9, Cp, Cp)   bf16   conv2 taps, BN2 scale folded
    # b2_ref   : (1, Cp)       f32    folded BN2 bias
    # out_ref  : (H, W, Cp)    f32
    # mid_ref  : (H+2, W+2, Cp) bf16  zero-bordered conv1 activation scratch
    H, W, Cp = out_ref.shape
    th = max(1, min(H, TARGET_M // W))      # rows per chunk, M = th*W ~= TARGET_M
    n_chunks = -(-H // th)

    # Zero only the 1-pixel border of the staging scratch (interior is fully
    # overwritten below).  Re-done every grid step: megacore-safe, tiny cost.
    mid_ref[0:1, :, :] = jnp.zeros((1, W + 2, Cp), MID_DTYPE)
    mid_ref[H + 1:H + 2, :, :] = jnp.zeros((1, W + 2, Cp), MID_DTYPE)
    mid_ref[:, 0:1, :] = jnp.zeros((H + 2, 1, Cp), MID_DTYPE)
    mid_ref[:, W + 1:W + 2, :] = jnp.zeros((H + 2, 1, Cp), MID_DTYPE)

    def conv_chunk(src_ref, w_ref, r0):
        """9-tap 3x3 conv over `th` output rows starting at r0; f32 accumulator."""
        acc = None
        for kh in range(3):                       # taps stay unrolled (LLO-visible)
            for kw in range(3):
                tap = src_ref[pl.ds(r0 + kh, th), kw:kw + W, :]
                tap = tap.reshape(th * W, Cp).astype(MXU_DTYPE)
                d = jnp.dot(tap, w_ref[kh * 3 + kw],
                            preferred_element_type=jnp.float32)
                acc = d if acc is None else acc + d   # first tap initializes acc
        return acc                                    # (th*W, Cp) f32

    # ---- conv1 (BN1 scale pre-folded) + bias + ReLU -> bf16 staging scratch ----
    def conv1_body(c, carry):
        # Clamp so a ragged last chunk re-computes (identical) rows instead of OOB.
        r0 = jnp.minimum(c * th, H - th)
        y1 = jnp.maximum(conv_chunk(xpad_ref, w1_ref, r0) + b1_ref[...], 0.0)
        mid_ref[pl.ds(1 + r0, th), 1:1 + W, :] = (
            y1.reshape(th, W, Cp).astype(MID_DTYPE))
        return carry

    lax.fori_loop(0, n_chunks, conv1_body, 0)

    # ---- conv2 (BN2 scale pre-folded) + bias + residual + ReLU ----
    def conv2_body(c, carry):
        r0 = jnp.minimum(c * th, H - th)
        y2 = conv_chunk(mid_ref, w2_ref, r0) + b2_ref[...]
        # identity == interior of the padded f32 input block (downsample is None)
        ident = xpad_ref[pl.ds(1 + r0, th), 1:1 + W, :]
        y2 = y2.reshape(th, W, Cp) + ident
        out_ref[pl.ds(r0, th), :, :] = jnp.maximum(y2, 0.0).astype(out_ref.dtype)
        return carry

    lax.fori_loop(0, n_chunks, conv2_body, 0)


@jax.jit
def basic_block_forward(x_nchw, w1, g1, be1, rm1, rv1, w2, g2, be2, rm2, rv2):
    """Forward of BasicBlock (stride=1, downsample=None), PyTorch-compatible.

    x_nchw : (N, C, H, W) float32
    w1, w2 : (Cout, Cin, 3, 3) PyTorch conv weights (bias=False)
    g*, be*, rm*, rv* : BatchNorm2d gamma/beta/running_mean/running_var, (Cout,)
    returns (N, Cout, H, W)
    """
    eps = 1e-5
    N, Cin, H, W = x_nchw.shape
    Cout = w1.shape[0]
    assert Cin == Cout, "stride=1 / downsample=None requires Cin == Cout"
    C = Cout
    Cp = ((C + LANE - 1) // LANE) * LANE   # lane-dense channel count

    # NCHW -> NHWC; spatial halo pad + channel pad in one jnp.pad (one HBM pass).
    x = jnp.transpose(x_nchw, (0, 2, 3, 1))
    x_pad = jnp.pad(x, ((0, 0), (1, 1), (1, 1), (0, Cp - C)))

    # Fold eval-mode BN into per-output-channel scale (into weights) + bias.
    inv1 = g1 / jnp.sqrt(rv1 + eps)
    inv2 = g2 / jnp.sqrt(rv2 + eps)
    b1 = be1 - rm1 * inv1
    b2 = be2 - rm2 * inv2

    # conv weights: (Cout, Cin, 3, 3) * scale -> (kh*3+kw, Cin, Cout), padded, bf16.
    w1_t = jnp.transpose(w1 * inv1[:, None, None, None], (2, 3, 1, 0)).reshape(9, C, C)
    w2_t = jnp.transpose(w2 * inv2[:, None, None, None], (2, 3, 1, 0)).reshape(9, C, C)
    w1_p = jnp.pad(w1_t, ((0, 0), (0, Cp - C), (0, Cp - C))).astype(MXU_DTYPE)
    w2_p = jnp.pad(w2_t, ((0, 0), (0, Cp - C), (0, Cp - C))).astype(MXU_DTYPE)
    b1_p = jnp.pad(b1, (0, Cp - C)).reshape(1, Cp).astype(jnp.float32)
    b2_p = jnp.pad(b2, (0, Cp - C)).reshape(1, Cp).astype(jnp.float32)

    # Explicit scoped-VMEM budget from the real per-step footprint (bf16 weights,
    # double-buffered input/output/weight blocks, bf16 mid scratch), 2x headroom,
    # capped at v7x's 64 MiB physical VMEM.
    xblk = (H + 2) * (W + 2) * Cp * 4
    oblk = H * W * Cp * 4
    wblk = 9 * Cp * Cp * 2
    midb = (H + 2) * (W + 2) * Cp * 2
    est = 2 * xblk + 2 * oblk + 2 * (2 * wblk) + midb + 4 * Cp * 4
    vmem_limit = int(min(max(2 * est, 32 * 1024 * 1024), 64 * 1024 * 1024))

    out_nhwc = pl.pallas_call(
        _basic_block_kernel,
        out_shape=jax.ShapeDtypeStruct((N, H, W, Cp), x.dtype),
        grid=(N,),
        in_specs=[
            pl.BlockSpec((None, H + 2, W + 2, Cp), lambda n: (n, 0, 0, 0)),  # x_pad
            pl.BlockSpec((9, Cp, Cp), lambda n: (0, 0, 0)),                  # w1 (scaled)
            pl.BlockSpec((1, Cp), lambda n: (0, 0)),                         # bias1
            pl.BlockSpec((9, Cp, Cp), lambda n: (0, 0, 0)),                  # w2 (scaled)
            pl.BlockSpec((1, Cp), lambda n: (0, 0)),                         # bias2
        ],
        out_specs=pl.BlockSpec((None, H, W, Cp), lambda n: (n, 0, 0, 0)),
        scratch_shapes=[pltpu.VMEM((H + 2, W + 2, Cp), MID_DTYPE)],
        compiler_params=pltpu.CompilerParams(
            dimension_semantics=("parallel",),
            vmem_limit_bytes=vmem_limit),
    )(x_pad, w1_p, b1_p, w2_p, b2_p)

    # drop the padded channels, NHWC -> NCHW
    return jnp.transpose(out_nhwc[..., :C], (0, 3, 1, 2))


def _reference(x_nchw, w1, g1, be1, rm1, rv1, w2, g2, be2, rm2, rv2):
    """Pure-JAX f32 reference (lax conv), same semantics, for a sanity check."""
    eps = 1e-5

    def conv3x3(x_nhwc, w_oihw):
        w_hwio = jnp.transpose(w_oihw, (2, 3, 1, 0))
        return jax.lax.conv_general_dilated(
            x_nhwc, w_hwio, window_strides=(1, 1),
            padding=((1, 1), (1, 1)),
            dimension_numbers=("NHWC", "HWIO", "NHWC"))

    def bn(x_nhwc, g, be, rm, rv):
        return (x_nhwc - rm) / jnp.sqrt(rv + eps) * g + be

    x = jnp.transpose(x_nchw, (0, 2, 3, 1))
    out = jax.nn.relu(bn(conv3x3(x, w1), g1, be1, rm1, rv1))
    out = bn(conv3x3(out, w2), g2, be2, rm2, rv2)
    out = jax.nn.relu(out + x)
    return jnp.transpose(out, (0, 3, 1, 2))


if __name__ == "__main__":
    # small, deterministic shapes: batch=2, channels=4, spatial=16
    N, C, H, W = 2, 4, 16, 16
    key = jax.random.PRNGKey(0)
    keys = jax.random.split(key, 12)

    x = jax.random.normal(keys[0], (N, C, H, W), jnp.float32)

    w1 = 0.1 * jax.random.normal(keys[1], (C, C, 3, 3), jnp.float32)
    w2 = 0.1 * jax.random.normal(keys[2], (C, C, 3, 3), jnp.float32)

    g1 = 1.0 + 0.1 * jax.random.normal(keys[3], (C,), jnp.float32)
    be1 = 0.1 * jax.random.normal(keys[4], (C,), jnp.float32)
    rm1 = 0.1 * jax.random.normal(keys[5], (C,), jnp.float32)
    rv1 = 1.0 + 0.1 * jax.random.uniform(keys[6], (C,), jnp.float32)

    g2 = 1.0 + 0.1 * jax.random.normal(keys[7], (C,), jnp.float32)
    be2 = 0.1 * jax.random.normal(keys[8], (C,), jnp.float32)
    rm2 = 0.1 * jax.random.normal(keys[9], (C,), jnp.float32)
    rv2 = 1.0 + 0.1 * jax.random.uniform(keys[10], (C,), jnp.float32)

    out = basic_block_forward(x, w1, g1, be1, rm1, rv1, w2, g2, be2, rm2, rv2)
    out = jax.block_until_ready(out)

    ref = _reference(x, w1, g1, be1, rm1, rv1, w2, g2, be2, rm2, rv2)
    assert out.shape == (N, C, H, W)
    # bf16 MXU operands + bf16 staging scratch -> loosened tolerance vs f32 reference
    assert bool(jnp.allclose(out, ref, atol=5e-2, rtol=5e-2)), float(
        jnp.max(jnp.abs(out - ref)))

    print("KERNEL_OK")
</pallas_src>

<mosaic_0001>
module attributes {stable_mosaic.version = 11 : i64} {
  func.func @_basic_block_kernel(%arg0: i32, %arg1: memref<1x18x18x128xf32, #tpu.memory_space<vmem>>, %arg2: memref<9x128x128xbf16, #tpu.memory_space<vmem>>, %arg3: memref<1x128xf32, #tpu.memory_space<vmem>>, %arg4: memref<9x128x128xbf16, #tpu.memory_space<vmem>>, %arg5: memref<1x128xf32, #tpu.memory_space<vmem>>, %arg6: memref<1x16x16x128xf32, #tpu.memory_space<vmem>>, %arg7: memref<18x18x128xbf16, #tpu.memory_space<vmem>>) attributes {dimension_semantics = [#tpu.dimension_semantics<parallel>], iteration_bounds = array<i64: 2>, scalar_prefetch = 0 : i64, scratch_operands = 1 : i64, tpu.core_type = #tpu.core_type<tc>, window_params = [{transform_indices = @transform_0, window_bounds = array<i64: 1, 18, 18, 128>}, {pipeline_mode = #tpu.pipeline_mode<synchronous>, transform_indices = @transform_1, window_bounds = array<i64: 9, 128, 128>}, {pipeline_mode = #tpu.pipeline_mode<synchronous>, transform_indices = @transform_2, window_bounds = array<i64: 1, 128>}, {pipeline_mode = #tpu.pipeline_mode<synchronous>, transform_indices = @transform_3, window_bounds = array<i64: 9, 128, 128>}, {pipeline_mode = #tpu.pipeline_mode<synchronous>, transform_indices = @transform_4, window_bounds = array<i64: 1, 128>}, {transform_indices = @transform_5, window_bounds = array<i64: 1, 16, 16, 128>}]} {
    %cst = arith.constant 0.000000e+00 : bf16
    %0 = vector.broadcast %cst : bf16 to vector<1x18x128xbf16>
    %c0 = arith.constant 0 : index
    %c0_0 = arith.constant 0 : index
    %c0_1 = arith.constant 0 : index
    %1 = vector.load %arg7[%c0, %c0_0, %c0_1] : memref<18x18x128xbf16, #tpu.memory_space<vmem>>, vector<1x18x128xbf16>
    tpu.vector_store %arg7[%c0, %c0_0, %c0_1], %0 {strides = array<i32>} : memref<18x18x128xbf16, #tpu.memory_space<vmem>>, vector<1x18x128xbf16>,
    %cst_2 = arith.constant 0.000000e+00 : bf16
    %2 = vector.broadcast %cst_2 : bf16 to vector<1x18x128xbf16>
    %c17 = arith.constant 17 : index
    %c0_3 = arith.constant 0 : index
    %c0_4 = arith.constant 0 : index
    %3 = vector.load %arg7[%c17, %c0_3, %c0_4] : memref<18x18x128xbf16, #tpu.memory_space<vmem>>, vector<1x18x128xbf16>
    tpu.vector_store %arg7[%c17, %c0_3, %c0_4], %2 {strides = array<i32>} : memref<18x18x128xbf16, #tpu.memory_space<vmem>>, vector<1x18x128xbf16>,
    %cst_5 = arith.constant 0.000000e+00 : bf16
    %4 = vector.broadcast %cst_5 : bf16 to vector<18x1x128xbf16>
    %c0_6 = arith.constant 0 : index
    %c0_7 = arith.constant 0 : index
    %c0_8 = arith.constant 0 : index
    %5 = vector.load %arg7[%c0_6, %c0_7, %c0_8] : memref<18x18x128xbf16, #tpu.memory_space<vmem>>, vector<18x1x128xbf16>
    tpu.vector_store %arg7[%c0_6, %c0_7, %c0_8], %4 {strides = array<i32>} : memref<18x18x128xbf16, #tpu.memory_space<vmem>>, vector<18x1x128xbf16>,
    %cst_9 = arith.constant 0.000000e+00 : bf16
    %6 = vector.broadcast %cst_9 : bf16 to vector<18x1x128xbf16>
    %c0_10 = arith.constant 0 : index
    %c17_11 = arith.constant 17 : index
    %c0_12 = arith.constant 0 : index
    %7 = vector.load %arg7[%c0_10, %c17_11, %c0_12] : memref<18x18x128xbf16, #tpu.memory_space<vmem>>, vector<18x1x128xbf16>
    tpu.vector_store %arg7[%c0_10, %c17_11, %c0_12], %6 {strides = array<i32>} : memref<18x18x128xbf16, #tpu.memory_space<vmem>>, vector<18x1x128xbf16>,
    %c0_i32 = arith.constant 0 : i32
    %c2_i32 = arith.constant 2 : i32
    %8 = arith.addi %c0_i32, %c2_i32 : i32
    %c1_i32 = arith.constant 1 : i32
    scf.for %arg8 = %c0_i32 to %8 step %c1_i32  : i32 {
      %c8_i32 = arith.constant 8 : i32
      %10 = arith.muli %arg8, %c8_i32 : i32
      %c8_i32_18 = arith.constant 8 : i32
      %11 = arith.minsi %10, %c8_i32_18 : i32
      %c0_i32_19 = arith.constant 0 : i32
      %12 = arith.addi %11, %c0_i32_19 : i32
      %c0_20 = arith.constant 0 : index
      %13 = arith.index_cast %12 : i32 to index
      %c0_21 = arith.constant 0 : index
      %c0_22 = arith.constant 0 : index
      %14 = vector.load %arg1[%c0_20, %13, %c0_21, %c0_22] : memref<1x18x18x128xf32, #tpu.memory_space<vmem>>, vector<1x8x16x128xf32>
      %15 = vector.shape_cast %14 : vector<1x8x16x128xf32> to vector<8x16x128xf32>
      %16 = vector.shape_cast %15 : vector<8x16x128xf32> to vector<128x128xf32>
      %17 = arith.truncf %16 : vector<128x128xf32> to vector<128x128xbf16>
      %c0_23 = arith.constant 0 : index
      %c0_24 = arith.constant 0 : index
      %c0_25 = arith.constant 0 : index
      %18 = vector.load %arg2[%c0_23, %c0_24, %c0_25] : memref<9x128x128xbf16, #tpu.memory_space<vmem>>, vector<1x128x128xbf16>
      %19 = vector.shape_cast %18 : vector<1x128x128xbf16> to vector<128x128xbf16>
      %cst_26 = arith.constant dense<0.000000e+00> : vector<128x128xf32>
      %20 = tpu.matmul %17, %19, %cst_26 {dimension_numbers = #tpu.dot_dimension_numbers<[1], [0], [0], [1], [0, 0, 1, 1], [], []>} : vector<128x128xbf16>, vector<128x128xbf16>, vector<128x128xf32> -> vector<128x128xf32>
      %c0_i32_27 = arith.constant 0 : i32
      %21 = arith.addi %11, %c0_i32_27 : i32
      %c0_28 = arith.constant 0 : index
      %22 = arith.index_cast %21 : i32 to index
      %c1 = arith.constant 1 : index
      %c0_29 = arith.constant 0 : index
      %23 = vector.load %arg1[%c0_28, %22, %c1, %c0_29] : memref<1x18x18x128xf32, #tpu.memory_space<vmem>>, vector<1x8x16x128xf32>
      %24 = vector.shape_cast %23 : vector<1x8x16x128xf32> to vector<8x16x128xf32>
      %25 = vector.shape_cast %24 : vector<8x16x128xf32> to vector<128x128xf32>
      %26 = arith.truncf %25 : vector<128x128xf32> to vector<128x128xbf16>
      %c1_30 = arith.constant 1 : index
      %c0_31 = arith.constant 0 : index
      %c0_32 = arith.constant 0 : index
      %27 = vector.load %arg2[%c1_30, %c0_31, %c0_32] : memref<9x128x128xbf16, #tpu.memory_space<vmem>>, vector<1x128x128xbf16>
      %28 = vector.shape_cast %27 : vector<1x128x128xbf16> to vector<128x128xbf16>
      %cst_33 = arith.constant dense<0.000000e+00> : vector<128x128xf32>
      %29 = tpu.matmul %26, %28, %cst_33 {dimension_numbers = #tpu.dot_dimension_numbers<[1], [0], [0], [1], [0, 0, 1, 1], [], []>} : vector<128x128xbf16>, vector<128x128xbf16>, vector<128x128xf32> -> vector<128x128xf32>
      %30 = arith.addf %20, %29 : vector<128x128xf32>
      %c0_i32_34 = arith.constant 0 : i32
      %31 = arith.addi %11, %c0_i32_34 : i32
      %c0_35 = arith.constant 0 : index
      %32 = arith.index_cast %31 : i32 to index
      %c2 = arith.constant 2 : index
      %c0_36 = arith.constant 0 : index
      %33 = vector.load %arg1[%c0_35, %32, %c2, %c0_36] : memref<1x18x18x128xf32, #tpu.memory_space<vmem>>, vector<1x8x16x128xf32>
      %34 = vector.shape_cast %33 : vector<1x8x16x128xf32> to vector<8x16x128xf32>
      %35 = vector.shape_cast %34 : vector<8x16x128xf32> to vector<128x128xf32>
      %36 = arith.truncf %35 : vector<128x128xf32> to vector<128x128xbf16>
      %c2_37 = arith.constant 2 : index
      %c0_38 = arith.constant 0 : index
      %c0_39 = arith.constant 0 : index
      %37 = vector.load %arg2[%c2_37, %c0_38, %c0_39] : memref<9x128x128xbf16, #tpu.memory_space<vmem>>, vector<1x128x128xbf16>
      %38 = vector.shape_cast %37 : vector<1x128x128xbf16> to vector<128x128xbf16>
      %cst_40 = arith.constant dense<0.000000e+00> : vector<128x128xf32>
      %39 = tpu.matmul %36, %38, %cst_40 {dimension_numbers = #tpu.dot_dimension_numbers<[1], [0], [0], [1], [0, 0, 1, 1], [], []>} : vector<128x128xbf16>, vector<128x128xbf16>, vector<128x128xf32> -> vector<128x128xf32>
      %40 = arith.addf %30, %39 : vector<128x128xf32>
      %c1_i32_41 = arith.constant 1 : i32
      %41 = arith.addi %11, %c1_i32_41 : i32
      %c0_42 = arith.constant 0 : index
      %42 = arith.index_cast %41 : i32 to index
      %c0_43 = arith.constant 0 : index
      %c0_44 = arith.constant 0 : index
      %43 = vector.load %arg1[%c0_42, %42, %c0_43, %c0_44] : memref<1x18x18x128xf32, #tpu.memory_space<vmem>>, vector<1x8x16x128xf32>
      %44 = vector.shape_cast %43 : vector<1x8x16x128xf32> to vector<8x16x128xf32>
      %45 = vector.shape_cast %44 : vector<8x16x128xf32> to vector<128x128xf32>
      %46 = arith.truncf %45 : vector<128x128xf32> to vector<128x128xbf16>
      %c3 = arith.constant 3 : index
      %c0_45 = arith.constant 0 : index
      %c0_46 = arith.constant 0 : index
      %47 = vector.load %arg2[%c3, %c0_45, %c0_46] : memref<9x128x128xbf16, #tpu.memory_space<vmem>>, vector<1x128x128xbf16>
      %48 = vector.shape_cast %47 : vector<1x128x128xbf16> to vector<128x128xbf16>
      %cst_47 = arith.constant dense<0.000000e+00> : vector<128x128xf32>
      %49 = tpu.matmul %46, %48, %cst_47 {dimension_numbers = #tpu.dot_dimension_numbers<[1], [0], [0], [1], [0, 0, 1, 1], [], []>} : vector<128x128xbf16>, vector<128x128xbf16>, vector<128x128xf32> -> vector<128x128xf32>
      %50 = arith.addf %40, %49 : vector<128x128xf32>
      %c1_i32_48 = arith.constant 1 : i32
      %51 = arith.addi %11, %c1_i32_48 : i32
      %c0_49 = arith.constant 0 : index
      %52 = arith.index_cast %51 : i32 to index
      %c1_50 = arith.constant 1 : index
      %c0_51 = arith.constant 0 : index
      %53 = vector.load %arg1[%c0_49, %52, %c1_50, %c0_51] : memref<1x18x18x128xf32, #tpu.memory_space<vmem>>, vector<1x8x16x128xf32>
      %54 = vector.shape_cast %53 : vector<1x8x16x128xf32> to vector<8x16x128xf32>
      %55 = vector.shape_cast %54 : vector<8x16x128xf32> to vector<128x128xf32>
      %56 = arith.truncf %55 : vector<128x128xf32> to vector<128x128xbf16>
      %c4 = arith.constant 4 : index
      %c0_52 = arith.constant 0 : index
      %c0_53 = arith.constant 0 : index
      %57 = vector.load %arg2[%c4, %c0_52, %c0_53] : memref<9x128x128xbf16, #tpu.memory_space<vmem>>, vector<1x128x128xbf16>
      %58 = vector.shape_cast %57 : vector<1x128x128xbf16> to vector<128x128xbf16>
      %cst_54 = arith.constant dense<0.000000e+00> : vector<128x128xf32>
      %59 = tpu.matmul %56, %58, %cst_54 {dimension_numbers = #tpu.dot_dimension_numbers<[1], [0], [0], [1], [0, 0, 1, 1], [], []>} : vector<128x128xbf16>, vector<128x128xbf16>, vector<128x128xf32> -> vector<128x128xf32>
      %60 = arith.addf %50, %59 : vector<128x128xf32>
      %c1_i32_55 = arith.constant 1 : i32
      %61 = arith.addi %11, %c1_i32_55 : i32
      %c0_56 = arith.constant 0 : index
      %62 = arith.index_cast %61 : i32 to index
      %c2_57 = arith.constant 2 : index
      %c0_58 = arith.constant 0 : index
      %63 = vector.load %arg1[%c0_56, %62, %c2_57, %c0_58] : memref<1x18x18x128xf32, #tpu.memory_space<vmem>>, vector<1x8x16x128xf32>
      %64 = vector.shape_cast %63 : vector<1x8x16x128xf32> to vector<8x16x128xf32>
      %65 = vector.shape_cast %64 : vector<8x16x128xf32> to vector<128x128xf32>
      %66 = arith.truncf %65 : vector<128x128xf32> to vector<128x128xbf16>
      %c5 = arith.constant 5 : index
      %c0_59 = arith.constant 0 : index
      %c0_60 = arith.constant 0 : index
      %67 = vector.load %arg2[%c5, %c0_59, %c0_60] : memref<9x128x128xbf16, #tpu.memory_space<vmem>>, vector<1x128x128xbf16>
      %68 = vector.shape_cast %67 : vector<1x128x128xbf16> to vector<128x128xbf16>
      %cst_61 = arith.constant dense<0.000000e+00> : vector<128x128xf32>
      %69 = tpu.matmul %66, %68, %cst_61 {dimension_numbers = #tpu.dot_dimension_numbers<[1], [0], [0], [1], [0, 0, 1, 1], [], []>} : vector<128x128xbf16>, vector<128x128xbf16>, vector<128x128xf32> -> vector<128x128xf32>
      %70 = arith.addf %60, %69 : vector<128x128xf32>
      %c2_i32_62 = arith.constant 2 : i32
      %71 = arith.addi %11, %c2_i32_62 : i32
      %c0_63 = arith.constant 0 : index
      %72 = arith.index_cast %71 : i32 to index
      %c0_64 = arith.constant 0 : index
      %c0_65 = arith.constant 0 : index
      %73 = vector.load %arg1[%c0_63, %72, %c0_64, %c0_65] : memref<1x18x18x128xf32, #tpu.memory_space<vmem>>, vector<1x8x16x128xf32>
      %74 = vector.shape_cast %73 : vector<1x8x16x128xf32> to vector<8x16x128xf32>
      %75 = vector.shape_cast %74 : vector<8x16x128xf32> to vector<128x128xf32>
      %76 = arith.truncf %75 : vector<128x128xf32> to vector<128x128xbf16>
      %c6 = arith.constant 6 : index
      %c0_66 = arith.constant 0 : index
      %c0_67 = arith.constant 0 : index
      %77 = vector.load %arg2[%c6, %c0_66, %c0_67] : memref<9x128x128xbf16, #tpu.memory_space<vmem>>, vector<1x128x128xbf16>
      %78 = vector.shape_cast %77 : vector<1x128x128xbf16> to vector<128x128xbf16>
      %cst_68 = arith.constant dense<0.000000e+00> : vector<128x128xf32>
      %79 = tpu.matmul %76, %78, %cst_68 {dimension_numbers = #tpu.dot_dimension_numbers<[1], [0], [0], [1], [0, 0, 1, 1], [], []>} : vector<128x128xbf16>, vector<128x128xbf16>, vector<128x128xf32> -> vector<128x128xf32>
      %80 = arith.addf %70, %79 : vector<128x128xf32>
      %c2_i32_69 = arith.constant 2 : i32
      %81 = arith.addi %11, %c2_i32_69 : i32
      %c0_70 = arith.constant 0 : index
      %82 = arith.index_cast %81 : i32 to index
      %c1_71 = arith.constant 1 : index
      %c0_72 = arith.constant 0 : index
      %83 = vector.load %arg1[%c0_70, %82, %c1_71, %c0_72] : memref<1x18x18x128xf32, #tpu.memory_space<vmem>>, vector<1x8x16x128xf32>
      %84 = vector.shape_cast %83 : vector<1x8x16x128xf32> to vector<8x16x128xf32>
      %85 = vector.shape_cast %84 : vector<8x16x128xf32> to vector<128x128xf32>
      %86 = arith.truncf %85 : vector<128x128xf32> to vector<128x128xbf16>
      %c7 = arith.constant 7 : index
      %c0_73 = arith.constant 0 : index
      %c0_74 = arith.constant 0 : index
      %87 = vector.load %arg2[%c7, %c0_73, %c0_74] : memref<9x128x128xbf16, #tpu.memory_space<vmem>>, vector<1x128x128xbf16>
      %88 = vector.shape_cast %87 : vector<1x128x128xbf16> to vector<128x128xbf16>
      %cst_75 = arith.constant dense<0.000000e+00> : vector<128x128xf32>
      %89 = tpu.matmul %86, %88, %cst_75 {dimension_numbers = #tpu.dot_dimension_numbers<[1], [0], [0], [1], [0, 0, 1, 1], [], []>} : vector<128x128xbf16>, vector<128x128xbf16>, vector<128x128xf32> -> vector<128x128xf32>
      %90 = arith.addf %80, %89 : vector<128x128xf32>
      %c2_i32_76 = arith.constant 2 : i32
      %91 = arith.addi %11, %c2_i32_76 : i32
      %c0_77 = arith.constant 0 : index
      %92 = arith.index_cast %91 : i32 to index
      %c2_78 = arith.constant 2 : index
      %c0_79 = arith.constant 0 : index
      %93 = vector.load %arg1[%c0_77, %92, %c2_78, %c0_79] : memref<1x18x18x128xf32, #tpu.memory_space<vmem>>, vector<1x8x16x128xf32>
      %94 = vector.shape_cast %93 : vector<1x8x16x128xf32> to vector<8x16x128xf32>
      %95 = vector.shape_cast %94 : vector<8x16x128xf32> to vector<128x128xf32>
      %96 = arith.truncf %95 : vector<128x128xf32> to vector<128x128xbf16>
      %c8 = arith.constant 8 : index
      %c0_80 = arith.constant 0 : index
      %c0_81 = arith.constant 0 : index
      %97 = vector.load %arg2[%c8, %c0_80, %c0_81] : memref<9x128x128xbf16, #tpu.memory_space<vmem>>, vector<1x128x128xbf16>
      %98 = vector.shape_cast %97 : vector<1x128x128xbf16> to vector<128x128xbf16>
      %cst_82 = arith.constant dense<0.000000e+00> : vector<128x128xf32>
      %99 = tpu.matmul %96, %98, %cst_82 {dimension_numbers = #tpu.dot_dimension_numbers<[1], [0], [0], [1], [0, 0, 1, 1], [], []>} : vector<128x128xbf16>, vector<128x128xbf16>, vector<128x128xf32> -> vector<128x128xf32>
      %100 = arith.addf %90, %99 : vector<128x128xf32>
      %c0_83 = arith.constant 0 : index
      %c0_84 = arith.constant 0 : index
      %101 = vector.load %arg3[%c0_83, %c0_84] : memref<1x128xf32, #tpu.memory_space<vmem>>, vector<1x128xf32>
      %102 = vector.broadcast %101 : vector<1x128xf32> to vector<128x128xf32>
      %103 = arith.addf %100, %102 : vector<128x128xf32>
      %cst_85 = arith.constant 0.000000e+00 : f32
      %104 = vector.broadcast %cst_85 : f32 to vector<128x128xf32>
      %105 = arith.maximumf %103, %104 : vector<128x128xf32>
      %106 = vector.shape_cast %105 : vector<128x128xf32> to vector<8x16x128xf32>
      %107 = arith.truncf %106 : vector<8x16x128xf32> to vector<8x16x128xbf16>
      %c1_i32_86 = arith.constant 1 : i32
      %108 = arith.addi %c1_i32_86, %11 : i32
      %109 = arith.index_cast %108 : i32 to index
      %c1_87 = arith.constant 1 : index
      %c0_88 = arith.constant 0 : index
      %110 = vector.load %arg7[%109, %c1_87, %c0_88] : memref<18x18x128xbf16, #tpu.memory_space<vmem>>, vector<8x16x128xbf16>
      tpu.vector_store %arg7[%109, %c1_87, %c0_88], %107 {strides = array<i32>} : memref<18x18x128xbf16, #tpu.memory_space<vmem>>, vector<8x16x128xbf16>,
    }
    %c2_i32_13 = arith.constant 2 : i32
    %c0_i32_14 = arith.constant 0 : i32
    %c2_i32_15 = arith.constant 2 : i32
    %9 = arith.addi %c0_i32_14, %c2_i32_15 : i32
    %c1_i32_16 = arith.constant 1 : i32
    scf.for %arg8 = %c0_i32_14 to %9 step %c1_i32_16  : i32 {
      %c8_i32 = arith.constant 8 : i32
      %10 = arith.muli %arg8, %c8_i32 : i32
      %c8_i32_18 = arith.constant 8 : i32
      %11 = arith.minsi %10, %c8_i32_18 : i32
      %c0_i32_19 = arith.constant 0 : i32
      %12 = arith.addi %11, %c0_i32_19 : i32
      %13 = arith.index_cast %12 : i32 to index
      %c0_20 = arith.constant 0 : index
      %c0_21 = arith.constant 0 : index
      %14 = vector.load %arg7[%13, %c0_20, %c0_21] : memref<18x18x128xbf16, #tpu.memory_space<vmem>>, vector<8x16x128xbf16>
      %15 = vector.shape_cast %14 : vector<8x16x128xbf16> to vector<128x128xbf16>
      %c0_22 = arith.constant 0 : index
      %c0_23 = arith.constant 0 : index
      %c0_24 = arith.constant 0 : index
      %16 = vector.load %arg4[%c0_22, %c0_23, %c0_24] : memref<9x128x128xbf16, #tpu.memory_space<vmem>>, vector<1x128x128xbf16>
      %17 = vector.shape_cast %16 : vector<1x128x128xbf16> to vector<128x128xbf16>
      %cst_25 = arith.constant dense<0.000000e+00> : vector<128x128xf32>
      %18 = tpu.matmul %15, %17, %cst_25 {dimension_numbers = #tpu.dot_dimension_numbers<[1], [0], [0], [1], [0, 0, 1, 1], [], []>} : vector<128x128xbf16>, vector<128x128xbf16>, vector<128x128xf32> -> vector<128x128xf32>
      %c0_i32_26 = arith.constant 0 : i32
      %19 = arith.addi %11, %c0_i32_26 : i32
      %20 = arith.index_cast %19 : i32 to index
      %c1 = arith.constant 1 : index
      %c0_27 = arith.constant 0 : index
      %21 = vector.load %arg7[%20, %c1, %c0_27] : memref<18x18x128xbf16, #tpu.memory_space<vmem>>, vector<8x16x128xbf16>
      %22 = vector.shape_cast %21 : vector<8x16x128xbf16> to vector<128x128xbf16>
      %c1_28 = arith.constant 1 : index
      %c0_29 = arith.constant 0 : index
      %c0_30 = arith.constant 0 : index
      %23 = vector.load %arg4[%c1_28, %c0_29, %c0_30] : memref<9x128x128xbf16, #tpu.memory_space<vmem>>, vector<1x128x128xbf16>
      %24 = vector.shape_cast %23 : vector<1x128x128xbf16> to vector<128x128xbf16>
      %cst_31 = arith.constant dense<0.000000e+00> : vector<128x128xf32>
      %25 = tpu.matmul %22, %24, %cst_31 {dimension_numbers = #tpu.dot_dimension_numbers<[1], [0], [0], [1], [0, 0, 1, 1], [], []>} : vector<128x128xbf16>, vector<128x128xbf16>, vector<128x128xf32> -> vector<128x128xf32>
      %26 = arith.addf %18, %25 : vector<128x128xf32>
      %c0_i32_32 = arith.constant 0 : i32
      %27 = arith.addi %11, %c0_i32_32 : i32
      %28 = arith.index_cast %27 : i32 to index
      %c2 = arith.constant 2 : index
      %c0_33 = arith.constant 0 : index
      %29 = vector.load %arg7[%28, %c2, %c0_33] : memref<18x18x128xbf16, #tpu.memory_space<vmem>>, vector<8x16x128xbf16>
      %30 = vector.shape_cast %29 : vector<8x16x128xbf16> to vector<128x128xbf16>
      %c2_34 = arith.constant 2 : index
      %c0_35 = arith.constant 0 : index
      %c0_36 = arith.constant 0 : index
      %31 = vector.load %arg4[%c2_34, %c0_35, %c0_36] : memref<9x128x128xbf16, #tpu.memory_space<vmem>>, vector<1x128x128xbf16>
      %32 = vector.shape_cast %31 : vector<1x128x128xbf16> to vector<128x128xbf16>
      %cst_37 = arith.constant dense<0.000000e+00> : vector<128x128xf32>
      %33 = tpu.matmul %30, %32, %cst_37 {dimension_numbers = #tpu.dot_dimension_numbers<[1], [0], [0], [1], [0, 0, 1, 1], [], []>} : vector<128x128xbf16>, vector<128x128xbf16>, vector<128x128xf32> -> vector<128x128xf32>
      %34 = arith.addf %26, %33 : vector<128x128xf32>
      %c1_i32_38 = arith.constant 1 : i32
      %35 = arith.addi %11, %c1_i32_38 : i32
      %36 = arith.index_cast %35 : i32 to index
      %c0_39 = arith.constant 0 : index
      %c0_40 = arith.constant 0 : index
      %37 = vector.load %arg7[%36, %c0_39, %c0_40] : memref<18x18x128xbf16, #tpu.memory_space<vmem>>, vector<8x16x128xbf16>
      %38 = vector.shape_cast %37 : vector<8x16x128xbf16> to vector<128x128xbf16>
      %c3 = arith.constant 3 : index
      %c0_41 = arith.constant 0 : index
      %c0_42 = arith.constant 0 : index
      %39 = vector.load %arg4[%c3, %c0_41, %c0_42] : memref<9x128x128xbf16, #tpu.memory_space<vmem>>, vector<1x128x128xbf16>
      %40 = vector.shape_cast %39 : vector<1x128x128xbf16> to vector<128x128xbf16>
      %cst_43 = arith.constant dense<0.000000e+00> : vector<128x128xf32>
      %41 = tpu.matmul %38, %40, %cst_43 {dimension_numbers = #tpu.dot_dimension_numbers<[1], [0], [0], [1], [0, 0, 1, 1], [], []>} : vector<128x128xbf16>, vector<128x128xbf16>, vector<128x128xf32> -> vector<128x128xf32>
      %42 = arith.addf %34, %41 : vector<128x128xf32>
      %c1_i32_44 = arith.constant 1 : i32
      %43 = arith.addi %11, %c1_i32_44 : i32
      %44 = arith.index_cast %43 : i32 to index
      %c1_45 = arith.constant 1 : index
      %c0_46 = arith.constant 0 : index
      %45 = vector.load %arg7[%44, %c1_45, %c0_46] : memref<18x18x128xbf16, #tpu.memory_space<vmem>>, vector<8x16x128xbf16>
      %46 = vector.shape_cast %45 : vector<8x16x128xbf16> to vector<128x128xbf16>
      %c4 = arith.constant 4 : index
      %c0_47 = arith.constant 0 : index
      %c0_48 = arith.constant 0 : index
      %47 = vector.load %arg4[%c4, %c0_47, %c0_48] : memref<9x128x128xbf16, #tpu.memory_space<vmem>>, vector<1x128x128xbf16>
      %48 = vector.shape_cast %47 : vector<1x128x128xbf16> to vector<128x128xbf16>
      %cst_49 = arith.constant dense<0.000000e+00> : vector<128x128xf32>
      %49 = tpu.matmul %46, %48, %cst_49 {dimension_numbers = #tpu.dot_dimension_numbers<[1], [0], [0], [1], [0, 0, 1, 1], [], []>} : vector<128x128xbf16>, vector<128x128xbf16>, vector<128x128xf32> -> vector<128x128xf32>
      %50 = arith.addf %42, %49 : vector<128x128xf32>
      %c1_i32_50 = arith.constant 1 : i32
      %51 = arith.addi %11, %c1_i32_50 : i32
      %52 = arith.index_cast %51 : i32 to index
      %c2_51 = arith.constant 2 : index
      %c0_52 = arith.constant 0 : index
      %53 = vector.load %arg7[%52, %c2_51, %c0_52] : memref<18x18x128xbf16, #tpu.memory_space<vmem>>, vector<8x16x128xbf16>
      %54 = vector.shape_cast %53 : vector<8x16x128xbf16> to vector<128x128xbf16>
      %c5 = arith.constant 5 : index
      %c0_53 = arith.constant 0 : index
      %c0_54 = arith.constant 0 : index
      %55 = vector.load %arg4[%c5, %c0_53, %c0_54] : memref<9x128x128xbf16, #tpu.memory_space<vmem>>, vector<1x128x128xbf16>
      %56 = vector.shape_cast %55 : vector<1x128x128xbf16> to vector<128x128xbf16>
      %cst_55 = arith.constant dense<0.000000e+00> : vector<128x128xf32>
      %57 = tpu.matmul %54, %56, %cst_55 {dimension_numbers = #tpu.dot_dimension_numbers<[1], [0], [0], [1], [0, 0, 1, 1], [], []>} : vector<128x128xbf16>, vector<128x128xbf16>, vector<128x128xf32> -> vector<128x128xf32>
      %58 = arith.addf %50, %57 : vector<128x128xf32>
      %c2_i32_56 = arith.constant 2 : i32
      %59 = arith.addi %11, %c2_i32_56 : i32
      %60 = arith.index_cast %59 : i32 to index
      %c0_57 = arith.constant 0 : index
      %c0_58 = arith.constant 0 : index
      %61 = vector.load %arg7[%60, %c0_57, %c0_58] : memref<18x18x128xbf16, #tpu.memory_space<vmem>>, vector<8x16x128xbf16>
      %62 = vector.shape_cast %61 : vector<8x16x128xbf16> to vector<128x128xbf16>
      %c6 = arith.constant 6 : index
      %c0_59 = arith.constant 0 : index
      %c0_60 = arith.constant 0 : index
      %63 = vector.load %arg4[%c6, %c0_59, %c0_60] : memref<9x128x128xbf16, #tpu.memory_space<vmem>>, vector<1x128x128xbf16>
      %64 = vector.shape_cast %63 : vector<1x128x128xbf16> to vector<128x128xbf16>
      %cst_61 = arith.constant dense<0.000000e+00> : vector<128x128xf32>
      %65 = tpu.matmul %62, %64, %cst_61 {dimension_numbers = #tpu.dot_dimension_numbers<[1], [0], [0], [1], [0, 0, 1, 1], [], []>} : vector<128x128xbf16>, vector<128x128xbf16>, vector<128x128xf32> -> vector<128x128xf32>
      %66 = arith.addf %58, %65 : vector<128x128xf32>
      %c2_i32_62 = arith.constant 2 : i32
      %67 = arith.addi %11, %c2_i32_62 : i32
      %68 = arith.index_cast %67 : i32 to index
      %c1_63 = arith.constant 1 : index
      %c0_64 = arith.constant 0 : index
      %69 = vector.load %arg7[%68, %c1_63, %c0_64] : memref<18x18x128xbf16, #tpu.memory_space<vmem>>, vector<8x16x128xbf16>
      %70 = vector.shape_cast %69 : vector<8x16x128xbf16> to vector<128x128xbf16>
      %c7 = arith.constant 7 : index
      %c0_65 = arith.constant 0 : index
      %c0_66 = arith.constant 0 : index
      %71 = vector.load %arg4[%c7, %c0_65, %c0_66] : memref<9x128x128xbf16, #tpu.memory_space<vmem>>, vector<1x128x128xbf16>
      %72 = vector.shape_cast %71 : vector<1x128x128xbf16> to vector<128x128xbf16>
      %cst_67 = arith.constant dense<0.000000e+00> : vector<128x128xf32>
      %73 = tpu.matmul %70, %72, %cst_67 {dimension_numbers = #tpu.dot_dimension_numbers<[1], [0], [0], [1], [0, 0, 1, 1], [], []>} : vector<128x128xbf16>, vector<128x128xbf16>, vector<128x128xf32> -> vector<128x128xf32>
      %74 = arith.addf %66, %73 : vector<128x128xf32>
      %c2_i32_68 = arith.constant 2 : i32
      %75 = arith.addi %11, %c2_i32_68 : i32
      %76 = arith.index_cast %75 : i32 to index
      %c2_69 = arith.constant 2 : index
      %c0_70 = arith.constant 0 : index
      %77 = vector.load %arg7[%76, %c2_69, %c0_70] : memref<18x18x128xbf16, #tpu.memory_space<vmem>>, vector<8x16x128xbf16>
      %78 = vector.shape_cast %77 : vector<8x16x128xbf16> to vector<128x128xbf16>
      %c8 = arith.constant 8 : index
      %c0_71 = arith.constant 0 : index
      %c0_72 = arith.constant 0 : index
      %79 = vector.load %arg4[%c8, %c0_71, %c0_72] : memref<9x128x128xbf16, #tpu.memory_space<vmem>>, vector<1x128x128xbf16>
      %80 = vector.shape_cast %79 : vector<1x128x128xbf16> to vector<128x128xbf16>
      %cst_73 = arith.constant dense<0.000000e+00> : vector<128x128xf32>
      %81 = tpu.matmul %78, %80, %cst_73 {dimension_numbers = #tpu.dot_dimension_numbers<[1], [0], [0], [1], [0, 0, 1, 1], [], []>} : vector<128x128xbf16>, vector<128x128xbf16>, vector<128x128xf32> -> vector<128x128xf32>
      %82 = arith.addf %74, %81 : vector<128x128xf32>
      %c0_74 = arith.constant 0 : index
      %c0_75 = arith.constant 0 : index
      %83 = vector.load %arg5[%c0_74, %c0_75] : memref<1x128xf32, #tpu.memory_space<vmem>>, vector<1x128xf32>
      %84 = vector.broadcast %83 : vector<1x128xf32> to vector<128x128xf32>
      %85 = arith.addf %82, %84 : vector<128x128xf32>
      %c1_i32_76 = arith.constant 1 : i32
      %86 = arith.addi %c1_i32_76, %11 : i32
      %c0_77 = arith.constant 0 : index
      %87 = arith.index_cast %86 : i32 to index
      %c1_78 = arith.constant 1 : index
      %c0_79 = arith.constant 0 : index
      %88 = vector.load %arg1[%c0_77, %87, %c1_78, %c0_79] : memref<1x18x18x128xf32, #tpu.memory_space<vmem>>, vector<1x8x16x128xf32>
      %89 = vector.shape_cast %88 : vector<1x8x16x128xf32> to vector<8x16x128xf32>
      %90 = vector.shape_cast %85 : vector<128x128xf32> to vector<8x16x128xf32>
      %91 = arith.addf %90, %89 : vector<8x16x128xf32>
      %cst_80 = arith.constant 0.000000e+00 : f32
      %92 = vector.broadcast %cst_80 : f32 to vector<8x16x128xf32>
      %93 = arith.maximumf %91, %92 : vector<8x16x128xf32>
      %c0_81 = arith.constant 0 : index
      %94 = arith.index_cast %11 : i32 to index
      %c0_82 = arith.constant 0 : index
      %c0_83 = arith.constant 0 : index
      %95 = vector.load %arg6[%c0_81, %94, %c0_82, %c0_83] : memref<1x16x16x128xf32, #tpu.memory_space<vmem>>, vector<1x8x16x128xf32>
      %96 = vector.shape_cast %95 : vector<1x8x16x128xf32> to vector<8x16x128xf32>
      %97 = vector.shape_cast %93 : vector<8x16x128xf32> to vector<1x8x16x128xf32>
      tpu.vector_store %arg6[%c0_81, %94, %c0_82, %c0_83], %97 {strides = array<i32>} : memref<1x16x16x128xf32, #tpu.memory_space<vmem>>, vector<1x8x16x128xf32>,
    }
    %c2_i32_17 = arith.constant 2 : i32
    return
  }
  func.func @transform_0(%arg0: i32) -> (i32, i32, i32, i32) {
    %c0_i32 = arith.constant 0 : i32
    %c0_i32_0 = arith.constant 0 : i32
    %c0_i32_1 = arith.constant 0 : i32
    %c0_i32_2 = arith.constant 0 : i32
    return %arg0, %c0_i32, %c0_i32_0, %c0_i32_1 : i32, i32, i32, i32
  }
  func.func @transform_1(%arg0: i32) -> (i32, i32, i32) {
    %c0_i32 = arith.constant 0 : i32
    %c0_i32_0 = arith.constant 0 : i32
    %c0_i32_1 = arith.constant 0 : i32
    %c0_i32_2 = arith.constant 0 : i32
    return %c0_i32, %c0_i32_0, %c0_i32_1 : i32, i32, i32
  }
  func.func @transform_2(%arg0: i32) -> (i32, i32) {
    %c0_i32 = arith.constant 0 : i32
    %c0_i32_0 = arith.constant 0 : i32
    %c0_i32_1 = arith.constant 0 : i32
    return %c0_i32, %c0_i32_0 : i32, i32
  }
  func.func @transform_3(%arg0: i32) -> (i32, i32, i32) {
    %c0_i32 = arith.constant 0 : i32
    %c0_i32_0 = arith.constant 0 : i32
    %c0_i32_1 = arith.constant 0 : i32
    %c0_i32_2 = arith.constant 0 : i32
    return %c0_i32, %c0_i32_0, %c0_i32_1 : i32, i32, i32
  }
  func.func @transform_4(%arg0: i32) -> (i32, i32) {
    %c0_i32 = arith.constant 0 : i32
    %c0_i32_0 = arith.constant 0 : i32
    %c0_i32_1 = arith.constant 0 : i32
    return %c0_i32, %c0_i32_0 : i32, i32
  }
  func.func @transform_5(%arg0: i32) -> (i32, i32, i32, i32) {
    %c0_i32 = arith.constant 0 : i32
    %c0_i32_0 = arith.constant 0 : i32
    %c0_i32_1 = arith.constant 0 : i32
    %c0_i32_2 = arith.constant 0 : i32
    return %arg0, %c0_i32, %c0_i32_0, %c0_i32_1 : i32, i32, i32, i32
  }
}

</mosaic_0001>

<llo_original>
// kernel: basic_block_forward.1
$region0: #{basic_block_forward.1}
  #allocation0 [shape = 'u32[]', space=smem, size = 0x4, offset = 0x4, fixed_abs, tag = 'smem constant byte address 0x4 - core index']
  #allocation1 [shape = 'u32[144,128]{1,0:T(1,128)}', space=vmem, size = 0x12000, scoped, tag = 'internal scratch']
  #allocation2 [shape = 'bf16[18,18,128]{2,1,0:T(8,128)(2,1)}', space=vmem, size = 0x1b000, scoped, tag = 'scratch operand']
  %s0 = inlined_call_operand.vmem [shape: f32[2,18,18,128], index: 0, kind: input, shape index: {}]
  %s1 = inlined_call_operand.vmem [shape: bf16[9,128,128], index: 1, kind: input, shape index: {}]
  %s2 = inlined_call_operand.vmem [shape: f32[1,128], index: 2, kind: input, shape index: {}]
  %s3 = inlined_call_operand.vmem [shape: bf16[9,128,128], index: 3, kind: input, shape index: {}]
  %s4 = inlined_call_operand.vmem [shape: f32[1,128], index: 4, kind: input, shape index: {}]
  %s5 = inlined_call_operand.vmem [shape: f32[2,16,16,128], index: 5, kind: output, shape index: {}]
  %s6 = sld [smem:[#allocation0]]
  $region67: #{basic_block_forward.1} parent=0
    _
  %s8 = ssub.s32 1, %s6
  %s9 = scalar_select 0, %s8, %s6
  loop: start=0, step=1, limit=4
  $region2: #{basic_block_forward.1} parent=0 // loop_pre_header
    _
  $region3: #{basic_block_forward.1} parent=0 // loop_header
    %s11 = sphi 0, %s15
    %p12 = scmp.ge.s32.totalorder %s11, 4
    %s21 = sphi 0, %s23
    %s24 = sphi 0, %s21
    %s25 = sphi 0, %s24
    %s41 = sphi 0, %s25
    %s45 = sphi 0, %s45
    %s47 = sphi 0, %s45
    %s48 = sphi 0, %s47
    %s62 = sphi 0, %s48
    %s66 = sphi 0, %s66
    %s68 = sphi 0, %s66
    %s69 = sphi 0, %s68
    %s83 = sphi 0, %s69
    %s87 = sphi 0, %s87
    %s89 = sphi 0, %s87
    %s90 = sphi 0, %s89
    %s104 = sphi 0, %s90
    %s108 = sphi 0, %s108
    %s110 = sphi 0, %s108
    %s111 = sphi 0, %s110
    %s125 = sphi 0, %s111
    %s131 = sphi 0, %s133
    %s134 = sphi 0, %s131
    %s135 = sphi 0, %s134
    %s151 = sphi 0, %s135
  $region4: #{basic_block_forward.1} parent=0 // loop_header_branch
    %14 = sbr.rel (%p12) target = $region8
  $region5: #{basic_block_forward.1} parent=0 // loop_body
    %s16 = ssub.s32 %s11, 1
    %s17 = ssub.s32 %s11, 2
    %s18 = sadd.s32 %s11, 1
    %s19 = ssub.s32 %s11, %s18
    %p20 = scmp.eq.s32.totalorder %s19, 0
    %s22 = sadd.s32 %s21, 1
    %s23 = scalar_select %p20, %s21, %s22
    %p26 = pneg %p20
    %p27 = scmp.eq.s32.totalorder %s11, 1
    %p28 = por %p26, %p27
    %p29 = scmp.ne.s32.totalorder %s21, %s24
    %p30 = scmp.eq.s32.totalorder %s11, 0
    %p31 = por %p29, %p30
    %p32 = scmp.ne.s32.totalorder %s21, %s24
    %p33 = scmp.eq.s32.totalorder %s16, 1
    %p34 = por %p32, %p33
    %p35 = scmp.ne.s32.totalorder %s24, %s25
    %p36 = scmp.eq.s32.totalorder %s16, 0
    %p37 = por %p35, %p36
    %p38 = scmp.ne.s32.totalorder %s24, %s25
    %p39 = scmp.eq.s32.totalorder %s17, 1
    %p40 = por %p38, %p39
    %p42 = scmp.ne.s32.totalorder %s25, %s41
    %p43 = scmp.eq.s32.totalorder %s17, 0
    %p44 = por %p42, %p43
    %s46 = sadd.s32 %s45, 1
    %p49 = scmp.eq.s32.totalorder %s11, 1
    %p50 = scmp.ne.s32.totalorder %s45, %s47
    %p51 = scmp.eq.s32.totalorder %s11, 0
    %p52 = por %p50, %p51
    %p53 = scmp.ne.s32.totalorder %s45, %s47
    %p54 = scmp.eq.s32.totalorder %s16, 1
    %p55 = por %p53, %p54
    %p56 = scmp.ne.s32.totalorder %s47, %s48
    %p57 = scmp.eq.s32.totalorder %s16, 0
    %p58 = por %p56, %p57
    %p59 = scmp.ne.s32.totalorder %s47, %s48
    %p60 = scmp.eq.s32.totalorder %s17, 1
    %p61 = por %p59, %p60
    %p63 = scmp.ne.s32.totalorder %s48, %s62
    %p64 = scmp.eq.s32.totalorder %s17, 0
    %p65 = por %p63, %p64
    %s67 = sadd.s32 %s66, 1
    %p70 = scmp.eq.s32.totalorder %s11, 1
    %p71 = scmp.ne.s32.totalorder %s66, %s68
    %p72 = scmp.eq.s32.totalorder %s11, 0
    %p73 = por %p71, %p72
    %p74 = scmp.ne.s32.totalorder %s66, %s68
    %p75 = scmp.eq.s32.totalorder %s16, 1
    %p76 = por %p74, %p75
    %p77 = scmp.ne.s32.totalorder %s68, %s69
    %p78 = scmp.eq.s32.totalorder %s16, 0
    %p79 = por %p77, %p78
    %p80 = scmp.ne.s32.totalorder %s68, %s69
    %p81 = scmp.eq.s32.totalorder %s17, 1
    %p82 = por %p80, %p81
    %p84 = scmp.ne.s32.totalorder %s69, %s83
    %p85 = scmp.eq.s32.totalorder %s17, 0
    %p86 = por %p84, %p85
    %s88 = sadd.s32 %s87, 1
    %p91 = scmp.eq.s32.totalorder %s11, 1
    %p92 = scmp.ne.s32.totalorder %s87, %s89
    %p93 = scmp.eq.s32.totalorder %s11, 0
    %p94 = por %p92, %p93
    %p95 = scmp.ne.s32.totalorder %s87, %s89
    %p96 = scmp.eq.s32.totalorder %s16, 1
    %p97 = por %p95, %p96
    %p98 = scmp.ne.s32.totalorder %s89, %s90
    %p99 = scmp.eq.s32.totalorder %s16, 0
    %p100 = por %p98, %p99
    %p101 = scmp.ne.s32.totalorder %s89, %s90
    %p102 = scmp.eq.s32.totalorder %s17, 1
    %p103 = por %p101, %p102
    %p105 = scmp.ne.s32.totalorder %s90, %s104
    %p106 = scmp.eq.s32.totalorder %s17, 0
    %p107 = por %p105, %p106
    %s109 = sadd.s32 %s108, 1
    %p112 = scmp.eq.s32.totalorder %s11, 1
    %p113 = scmp.ne.s32.totalorder %s108, %s110
    %p114 = scmp.eq.s32.totalorder %s11, 0
    %p115 = por %p113, %p114
    %p116 = scmp.ne.s32.totalorder %s108, %s110
    %p117 = scmp.eq.s32.totalorder %s16, 1
    %p118 = por %p116, %p117
    %p119 = scmp.ne.s32.totalorder %s110, %s111
    %p120 = scmp.eq.s32.totalorder %s16, 0
    %p121 = por %p119, %p120
    %p122 = scmp.ne.s32.totalorder %s110, %s111
    %p123 = scmp.eq.s32.totalorder %s17, 1
    %p124 = por %p122, %p123
    %p126 = scmp.ne.s32.totalorder %s111, %s125
    %p127 = scmp.eq.s32.totalorder %s17, 0
    %p128 = por %p126, %p127
    %s129 = ssub.s32 %s11, %s18
    %p130 = scmp.eq.s32.totalorder %s129, 0
    %s132 = sadd.s32 %s131, 1
    %s133 = scalar_select %p130, %s131, %s132
    %p136 = pneg %p130
    %p137 = scmp.eq.s32.totalorder %s11, 1
    %p138 = por %p136, %p137
    %p139 = scmp.ne.s32.totalorder %s131, %s134
    %p140 = scmp.eq.s32.totalorder %s11, 0
    %p141 = por %p139, %p140
    %p142 = scmp.ne.s32.totalorder %s131, %s134
    %p143 = scmp.eq.s32.totalorder %s16, 1
    %p144 = por %p142, %p143
    %p145 = scmp.ne.s32.totalorder %s134, %s135
    %p146 = scmp.eq.s32.totalorder %s16, 0
    %p147 = por %p145, %p146
    %p148 = scmp.ne.s32.totalorder %s134, %s135
    %p149 = scmp.eq.s32.totalorder %s17, 1
    %p150 = por %p148, %p149
    %p152 = scmp.ne.s32.totalorder %s135, %s151
    %p153 = scmp.eq.s32.totalorder %s17, 0
    %p154 = por %p152, %p153
    %p155 = scmp.le.s32.totalorder 1, %s11
    %p156 = scmp.lt.s32.totalorder %s11, 3
    %p157 = pnand %p155, %p156
    %p158 = pneg %p157
    // Predicated region
    $region9: #{basic_block_forward.1} parent=5 // pred_check
      _
    $region10: #{basic_block_forward.1} parent=5 // pred_check_branch
      %160 = sbr.rel (%p157) target = $region12
    $region11: #{basic_block_forward.1} parent=5 // pred_region
      %s161 = ssub.s32 %s11, 1
      // Predicated region
      $region13: #{basic_block_forward.1} parent=11 // pred_check
        %p162 = pneg %p58
      $region14: #{basic_block_forward.1} parent=11 // pred_check_branch
        %164 = sbr.rel (%p162) target = $region16
      $region15: #{basic_block_forward.1} parent=11 // pred_region
        _
      $region16: #{basic_block_forward.1} parent=11 // pred_fallthru
        _
      // Predicated region
      $region17: #{basic_block_forward.1} parent=11 // pred_check
        %p165 = pneg %p79
      $region18: #{basic_block_forward.1} parent=11 // pred_check_branch
        %167 = sbr.rel (%p165) target = $region20
      $region19: #{basic_block_forward.1} parent=11 // pred_region
        _
      $region20: #{basic_block_forward.1} parent=11 // pred_fallthru
        _
      // Predicated region
      $region21: #{basic_block_forward.1} parent=11 // pred_check
        %p168 = pneg %p100
      $region22: #{basic_block_forward.1} parent=11 // pred_check_branch
        %170 = sbr.rel (%p168) target = $region24
      $region23: #{basic_block_forward.1} parent=11 // pred_region
        _
      $region24: #{basic_block_forward.1} parent=11 // pred_fallthru
        _
      // Predicated region
      $region25: #{basic_block_forward.1} parent=11 // pred_check
        %p171 = pneg %p121
      $region26: #{basic_block_forward.1} parent=11 // pred_check_branch
        %173 = sbr.rel (%p171) target = $region28
      $region27: #{basic_block_forward.1} parent=11 // pred_region
        _
      $region28: #{basic_block_forward.1} parent=11 // pred_fallthru
        _
    $region12: #{basic_block_forward.1} parent=5 // pred_fallthru
      _
    %p174 = scmp.lt.s32.totalorder %s11, 2
    // Predicated region
    $region29: #{basic_block_forward.1} parent=5 // pred_check
      %p175 = pneg %p174
    $region30: #{basic_block_forward.1} parent=5 // pred_check_branch
      %177 = sbr.rel (%p175) target = $region32
    $region31: #{basic_block_forward.1} parent=5 // pred_region
      // Predicated region
      $region33: #{basic_block_forward.1} parent=31 // pred_check
        %p178 = pneg %p31
      $region34: #{basic_block_forward.1} parent=31 // pred_check_branch
        %180 = sbr.rel (%p178) target = $region36
      $region35: #{basic_block_forward.1} parent=31 // pred_region
        %p181 = scmp.lt.s32.totalorder %s11, 1
        %s182 = scalar_select %p181, %s11, 1
        %s183 = smul.addr %s182, 54
        %s184 = smul.addr %s183, 8
        %s185 = scalar_lea.vmem %s0, %s184
      $region36: #{basic_block_forward.1} parent=31 // pred_fallthru
        _
    $region32: #{basic_block_forward.1} parent=5 // pred_fallthru
      _
    %p186 = scmp.le.s32.totalorder 1, %s11
    %p187 = scmp.lt.s32.totalorder %s11, 3
    %p188 = pnand %p186, %p187
    %p189 = pneg %p188
    // Predicated region
    $region37: #{basic_block_forward.1} parent=5 // pred_check
      _
    $region38: #{basic_block_forward.1} parent=5 // pred_check_branch
      %191 = sbr.rel (%p188) target = $region40
    $region39: #{basic_block_forward.1} parent=5 // pred_region
      %s192 = ssub.s32 %s11, 1
      %p193 = scmp.lt.s32.totalorder %s16, 1
      %s194 = scalar_select %p193, %s16, 1
      %s195 = smul.addr %s194, 54
      %s196 = smul.addr %s195, 8
      %s197 = scalar_lea.vmem %s0, %s196
      %p198 = pneg %p37
      %p199 = pneg %p34
      %p200 = pneg %p58
      %p201 = pneg %p55
      %p202 = pneg %p79
      %p203 = pneg %p76
      %p204 = pneg %p100
      %p205 = pneg %p97
      %p206 = pneg %p121
      %p207 = pneg %p118
      %p208 = pneg %p147
      %p209 = pneg %p144
      %p210 = scmp.lt.s32.totalorder %s16, 1
      %s211 = scalar_select %p210, %s16, 1
      %s212 = smul.addr %s211, 32
      %s213 = smul.addr %s212, 8
      %s214 = scalar_lea.vmem %s5, %s213
      %p215 = scmp.lt.s32.totalorder %s16, 1
      %s216 = scalar_select %p215, %s16, 1
      %s217 = smul.addr %s216, 54
      %s218 = smul.addr %s217, 8
      %s219 = scalar_lea.vmem %s0, %s218
      %p220 = scmp.lt.s32.totalorder %s16, 1
      %s221 = scalar_select %p220, %s16, 1
      %s222 = smul.addr %s221, 32
      %s223 = smul.addr %s222, 8
      %s224 = scalar_lea.vmem %s5, %s223
      %226 = vst [vmem:[#allocation2] sm:$0xf] 0
      %227 = vst [vmem:[#allocation2 + $0x4] sm:$0xf] 0
      %228 = vst [vmem:[#allocation2 + $0x8] sm:$0x1] 0
      %s229 = scalar_lea.vmem [#allocation2], 204
      %230 = vst [vmem:[%s229] sm:$0xf] 0
      %231 = vst [vmem:[%s229 + $0x4] sm:$0xf] 0
      %232 = vst [vmem:[%s229 + $0x8] sm:$0x1] 0
      %vm233 = vcmask 1040384
      %vm234 = vsmask.f32 256
      %vm235 = vmand %vm233, %vm234
      %v236 = vld [vmem:[#allocation2] sm:$0x1]
      %v237 = vsel %vm235, 0, %v236
      %238 = vst [vmem:[#allocation2] sm:$0x1] %v237
      %v239 = vld [vmem:[#allocation2 + $0xc] sm:$0x1]
      %v240 = vsel %vm235, 0, %v239
      %241 = vst [vmem:[#allocation2 + $0xc] sm:$0x1] %v240
      %v242 = vld [vmem:[#allocation2 + $0x18] sm:$0x1]
      %v243 = vsel %vm235, 0, %v242
      %244 = vst [vmem:[#allocation2 + $0x18] sm:$0x1] %v243
      %v245 = vld [vmem:[#allocation2 + $0x24] sm:$0x1]
      %v246 = vsel %vm235, 0, %v245
      %247 = vst [vmem:[#allocation2 + $0x24] sm:$0x1] %v246
      %v248 = vld [vmem:[#allocation2 + $0x30] sm:$0x1]
      %v249 = vsel %vm235, 0, %v248
      %250 = vst [vmem:[#allocation2 + $0x30] sm:$0x1] %v249
      %v251 = vld [vmem:[#allocation2 + $0x3c] sm:$0x1]
      %v252 = vsel %vm235, 0, %v251
      %253 = vst [vmem:[#allocation2 + $0x3c] sm:$0x1] %v252
      %v254 = vld [vmem:[#allocation2 + $0x48] sm:$0x1]
      %v255 = vsel %vm235, 0, %v254
      %256 = vst [vmem:[#allocation2 + $0x48] sm:$0x1] %v255
      %v257 = vld [vmem:[#allocation2 + $0x54] sm:$0x1]
      %v258 = vsel %vm235, 0, %v257
      %259 = vst [vmem:[#allocation2 + $0x54] sm:$0x1] %v258
      %v260 = vld [vmem:[#allocation2 + $0x60] sm:$0x1]
      %v261 = vsel %vm235, 0, %v260
      %262 = vst [vmem:[#allocation2 + $0x60] sm:$0x1] %v261
      %v263 = vld [vmem:[#allocation2 + $0x6c] sm:$0x1]
      %v264 = vsel %vm235, 0, %v263
      %265 = vst [vmem:[#allocation2 + $0x6c] sm:$0x1] %v264
      %v266 = vld [vmem:[#allocation2 + $0x78] sm:$0x1]
      %v267 = vsel %vm235, 0, %v266
      %268 = vst [vmem:[#allocation2 + $0x78] sm:$0x1] %v267
      %v269 = vld [vmem:[#allocation2 + $0x84] sm:$0x1]
      %v270 = vsel %vm235, 0, %v269
      %271 = vst [vmem:[#allocation2 + $0x84] sm:$0x1] %v270
      %v272 = vld [vmem:[#allocation2 + $0x90] sm:$0x1]
      %v273 = vsel %vm235, 0, %v272
      %274 = vst [vmem:[#allocation2 + $0x90] sm:$0x1] %v273
      %v275 = vld [vmem:[#allocation2 + $0x9c] sm:$0x1]
      %v276 = vsel %vm235, 0, %v275
      %277 = vst [vmem:[#allocation2 + $0x9c] sm:$0x1] %v276
      %v278 = vld [vmem:[#allocation2 + $0xa8] sm:$0x1]
      %v279 = vsel %vm235, 0, %v278
      %280 = vst [vmem:[#allocation2 + $0xa8] sm:$0x1] %v279
      %v281 = vld [vmem:[#allocation2 + $0xb4] sm:$0x1]
      %v282 = vsel %vm235, 0, %v281
      %283 = vst [vmem:[#allocation2 + $0xb4] sm:$0x1] %v282
      %v284 = vld [vmem:[#allocation2 + $0xc0] sm:$0x1]
      %v285 = vsel %vm235, 0, %v284
      %286 = vst [vmem:[#allocation2 + $0xc0] sm:$0x1] %v285
      %v287 = vld [vmem:[#allocation2 + $0xcc] sm:$0x1]
      %v288 = vsel %vm235, 0, %v287
      %289 = vst [vmem:[#allocation2 + $0xcc] sm:$0x1] %v288
      %vm290 = vsmask.f32 7938
      %vm291 = vmand %vm233, %vm290
      %v292 = vld [vmem:[#allocation2 + $0x8] sm:$0x1]
      %v293 = vsel %vm291, 0, %v292
      %294 = vst [vmem:[#allocation2 + $0x8] sm:$0x1] %v293
      %v295 = vld [vmem:[#allocation2 + $0x14] sm:$0x1]
      %v296 = vsel %vm291, 0, %v295
      %297 = vst [vmem:[#allocation2 + $0x14] sm:$0x1] %v296
      %v298 = vld [vmem:[#allocation2 + $0x20] sm:$0x1]
      %v299 = vsel %vm291, 0, %v298
      %300 = vst [vmem:[#allocation2 + $0x20] sm:$0x1] %v299
      %v301 = vld [vmem:[#allocation2 + $0x2c] sm:$0x1]
      %v302 = vsel %vm291, 0, %v301
      %303 = vst [vmem:[#allocation2 + $0x2c] sm:$0x1] %v302
      %v304 = vld [vmem:[#allocation2 + $0x38] sm:$0x1]
      %v305 = vsel %vm291, 0, %v304
      %306 = vst [vmem:[#allocation2 + $0x38] sm:$0x1] %v305
      %v307 = vld [vmem:[#allocation2 + $0x44] sm:$0x1]
      %v308 = vsel %vm291, 0, %v307
      %309 = vst [vmem:[#allocation2 + $0x44] sm:$0x1] %v308
      %v310 = vld [vmem:[#allocation2 + $0x50] sm:$0x1]
      %v311 = vsel %vm291, 0, %v310
      %312 = vst [vmem:[#allocation2 + $0x50] sm:$0x1] %v311
      %v313 = vld [vmem:[#allocation2 + $0x5c] sm:$0x1]
      %v314 = vsel %vm291, 0, %v313
      %315 = vst [vmem:[#allocation2 + $0x5c] sm:$0x1] %v314
      %v316 = vld [vmem:[#allocation2 + $0x68] sm:$0x1]
      %v317 = vsel %vm291, 0, %v316
      %318 = vst [vmem:[#allocation2 + $0x68] sm:$0x1] %v317
      %v319 = vld [vmem:[#allocation2 + $0x74] sm:$0x1]
      %v320 = vsel %vm291, 0, %v319
      %321 = vst [vmem:[#allocation2 + $0x74] sm:$0x1] %v320
      %v322 = vld [vmem:[#allocation2 + $0x80] sm:$0x1]
      %v323 = vsel %vm291, 0, %v322
      %324 = vst [vmem:[#allocation2 + $0x80] sm:$0x1] %v323
      %v325 = vld [vmem:[#allocation2 + $0x8c] sm:$0x1]
      %v326 = vsel %vm291, 0, %v325
      %327 = vst [vmem:[#allocation2 + $0x8c] sm:$0x1] %v326
      %v328 = vld [vmem:[#allocation2 + $0x98] sm:$0x1]
      %v329 = vsel %vm291, 0, %v328
      %330 = vst [vmem:[#allocation2 + $0x98] sm:$0x1] %v329
      %v331 = vld [vmem:[#allocation2 + $0xa4] sm:$0x1]
      %v332 = vsel %vm291, 0, %v331
      %333 = vst [vmem:[#allocation2 + $0xa4] sm:$0x1] %v332
      %v334 = vld [vmem:[#allocation2 + $0xb0] sm:$0x1]
      %v335 = vsel %vm291, 0, %v334
      %336 = vst [vmem:[#allocation2 + $0xb0] sm:$0x1] %v335
      %v337 = vld [vmem:[#allocation2 + $0xbc] sm:$0x1]
      %v338 = vsel %vm291, 0, %v337
      %339 = vst [vmem:[#allocation2 + $0xbc] sm:$0x1] %v338
      %v340 = vld [vmem:[#allocation2 + $0xc8] sm:$0x1]
      %v341 = vsel %vm291, 0, %v340
      %342 = vst [vmem:[#allocation2 + $0xc8] sm:$0x1] %v341
      %v343 = vld [vmem:[#allocation2 + $0xd4] sm:$0x1]
      %v344 = vsel %vm291, 0, %v343
      %345 = vst [vmem:[#allocation2 + $0xd4] sm:$0x1] %v344
      loop: start=0, step=1, limit=2
      $region41: #{basic_block_forward.1} parent=39 // loop_pre_header
        _
      $region42: #{basic_block_forward.1} parent=39 // loop_header
        %s347 = sphi 0, %s351
        %p348 = scmp.ge.s32.totalorder %s347, 2
      $region43: #{basic_block_forward.1} parent=39 // loop_header_branch
        %350 = sbr.rel (%p348) target = $region47
      $region44: #{basic_block_forward.1} parent=39 // loop_body
        %s352 = smul.u32 %s347, 8
        %p353 = scmp.lt.s32.totalorder %s352, 8
        %s354 = scalar_select %p353, %s352, 8
        %s355 = smul.u32 %s354, 24
        %s356 = scalar_lea.vmem %s219, %s355
        %v357 = vld [vmem:[%s356] sm:$0xff]
        %v358 = vld [vmem:[%s356 + $0x8] sm:$0xff]
        %v359 = vld [vmem:[%s356 + $0x18] sm:$0xff]
        %v360 = vld [vmem:[%s356 + $0x20] sm:$0xff]
        %v361 = vld [vmem:[%s356 + $0x30] sm:$0xff]
        %v362 = vld [vmem:[%s356 + $0x38] sm:$0xff]
        %v363 = vld [vmem:[%s356 + $0x48] sm:$0xff]
        %v364 = vld [vmem:[%s356 + $0x50] sm:$0xff]
        %v365 = vld [vmem:[%s356 + $0x60] sm:$0xff]
        %v366 = vld [vmem:[%s356 + $0x68] sm:$0xff]
        %v367 = vld [vmem:[%s356 + $0x78] sm:$0xff]
        %v368 = vld [vmem:[%s356 + $0x80] sm:$0xff]
        %v369 = vld [vmem:[%s356 + $0x90] sm:$0xff]
        %v370 = vld [vmem:[%s356 + $0x98] sm:$0xff]
        %v371 = vld [vmem:[%s356 + $0xa8] sm:$0xff]
        %v372 = vld [vmem:[%s356 + $0xb0] sm:$0xff]
        %v373 = vpack.c.bf16 %v358, %v357
        %v374 = vpack.c.bf16 %v360, %v359
        %v375 = vpack.c.bf16 %v362, %v361
        %v376 = vpack.c.bf16 %v364, %v363
        %v377 = vpack.c.bf16 %v366, %v365
        %v378 = vpack.c.bf16 %v368, %v367
        %v379 = vpack.c.bf16 %v370, %v369
        %v380 = vpack.c.bf16 %v372, %v371
        %v381 = vld [vmem:[%s1] sm:$0xf]
        %v382 = vld [vmem:[%s1 + $0x4] sm:$0xf]
        %v383 = vld [vmem:[%s1 + $0x8] sm:$0xf]
        %v384 = vld [vmem:[%s1 + $0xc] sm:$0xf]
        %v385 = vld [vmem:[%s1 + $0x10] sm:$0xf]
        %v386 = vld [vmem:[%s1 + $0x14] sm:$0xf]
        %v387 = vld [vmem:[%s1 + $0x18] sm:$0xf]
        %v388 = vld [vmem:[%s1 + $0x1c] sm:$0xf]
        %v389 = vld [vmem:[%s1 + $0x20] sm:$0xf]
        %v390 = vld [vmem:[%s1 + $0x24] sm:$0xf]
        %v391 = vld [vmem:[%s1 + $0x28] sm:$0xf]
        %v392 = vld [vmem:[%s1 + $0x2c] sm:$0xf]
        %v393 = vld [vmem:[%s1 + $0x30] sm:$0xf]
        %v394 = vld [vmem:[%s1 + $0x34] sm:$0xf]
        %v395 = vld [vmem:[%s1 + $0x38] sm:$0xf]
        %v396 = vld [vmem:[%s1 + $0x3c] sm:$0xf]
        %v397 = vld [vmem:[%s356 + $0x1] sm:$0xff]
        %v398 = vld [vmem:[%s356 + $0x9] sm:$0xff]
        %v399 = vld [vmem:[%s356 + $0x19] sm:$0xff]
        %v400 = vld [vmem:[%s356 + $0x21] sm:$0xff]
        %v401 = vld [vmem:[%s356 + $0x31] sm:$0xff]
        %v402 = vld [vmem:[%s356 + $0x39] sm:$0xff]
        %v403 = vld [vmem:[%s356 + $0x49] sm:$0xff]
        %v404 = vld [vmem:[%s356 + $0x51] sm:$0xff]
        %v405 = vld [vmem:[%s356 + $0x61] sm:$0xff]
        %v406 = vld [vmem:[%s356 + $0x69] sm:$0xff]
        %v407 = vld [vmem:[%s356 + $0x79] sm:$0xff]
        %v408 = vld [vmem:[%s356 + $0x81] sm:$0xff]
        %v409 = vld [vmem:[%s356 + $0x91] sm:$0xff]
        %v410 = vld [vmem:[%s356 + $0x99] sm:$0xff]
        %v411 = vld [vmem:[%s356 + $0xa9] sm:$0xff]
        %v412 = vld [vmem:[%s356 + $0xb1] sm:$0xff]
        %v413 = vpack.c.bf16 %v398, %v397
        %v414 = vpack.c.bf16 %v400, %v399
        %v415 = vpack.c.bf16 %v402, %v401
        %v416 = vpack.c.bf16 %v404, %v403
        %v417 = vpack.c.bf16 %v406, %v405
        %v418 = vpack.c.bf16 %v408, %v407
        %v419 = vpack.c.bf16 %v410, %v409
        %v420 = vpack.c.bf16 %v412, %v411
        %s421 = scalar_lea.vmem %s1, 64
        %v422 = vld [vmem:[%s421] sm:$0xf]
        %v423 = vld [vmem:[%s421 + $0x4] sm:$0xf]
        %v424 = vld [vmem:[%s421 + $0x8] sm:$0xf]
        %v425 = vld [vmem:[%s421 + $0xc] sm:$0xf]
        %v426 = vld [vmem:[%s421 + $0x10] sm:$0xf]
        %v427 = vld [vmem:[%s421 + $0x14] sm:$0xf]
        %v428 = vld [vmem:[%s421 + $0x18] sm:$0xf]
        %v429 = vld [vmem:[%s421 + $0x1c] sm:$0xf]
        %v430 = vld [vmem:[%s421 + $0x20] sm:$0xf]
        %v431 = vld [vmem:[%s421 + $0x24] sm:$0xf]
        %v432 = vld [vmem:[%s421 + $0x28] sm:$0xf]
        %v433 = vld [vmem:[%s421 + $0x2c] sm:$0xf]
        %v434 = vld [vmem:[%s421 + $0x30] sm:$0xf]
        %v435 = vld [vmem:[%s421 + $0x34] sm:$0xf]
        %v436 = vld [vmem:[%s421 + $0x38] sm:$0xf]
        %v437 = vld [vmem:[%s421 + $0x3c] sm:$0xf]
        %v454 = vunpack.c.l.b16 %v422
        %v455 = vunpack.c.l.b16 %v423
        %v456 = vunpack.c.l.b16 %v424
        %v457 = vunpack.c.l.b16 %v425
        %v458 = vunpack.c.l.b16 %v426
        %v459 = vunpack.c.l.b16 %v427
        %v460 = vunpack.c.l.b16 %v428
        %v461 = vunpack.c.l.b16 %v429
        %v462 = vunpack.c.l.b16 %v430
        %v463 = vunpack.c.l.b16 %v431
        %v464 = vunpack.c.l.b16 %v432
        %v465 = vunpack.c.l.b16 %v433
        %v466 = vunpack.c.l.b16 %v434
        %v467 = vunpack.c.l.b16 %v435
        %v468 = vunpack.c.l.b16 %v436
        %v469 = vunpack.c.l.b16 %v437
        %v470 = vpack.c.b16 %v455, %v454
        %v471 = vpack.c.b16 %v457, %v456
        %v472 = vpack.c.b16 %v459, %v458
        %v473 = vpack.c.b16 %v461, %v460
        %v474 = vpack.c.b16 %v463, %v462
        %v475 = vpack.c.b16 %v465, %v464
        %v476 = vpack.c.b16 %v467, %v466
        %v477 = vpack.c.b16 %v469, %v468
        %486 = vmatprep.subr.bf16.mxu0 0
        %487 = vmatpush1.bf16.msra.mxu0 %v470
        %488 = vmatprep.subr.bf16.mxu0 0
        %489 = vmatpush1.bf16.msra.mxu0 %v471
        %490 = vmatprep.subr.bf16.mxu0 0
        %491 = vmatpush1.bf16.msra.mxu0 %v472
        %492 = vmatprep.subr.bf16.mxu0 0
        %493 = vmatpush1.bf16.msra.mxu0 %v473
        %494 = vmatprep.subr.bf16.mxu0 0
        %495 = vmatpush1.bf16.msra.mxu0 %v474
        %496 = vmatprep.subr.bf16.mxu0 0
        %497 = vmatpush1.bf16.msra.mxu0 %v475
        %498 = vmatprep.subr.bf16.mxu0 0
        %499 = vmatpush1.bf16.msra.mxu0 %v476
        %500 = vmatprep.subr.bf16.mxu0 0
        %501 = vmatpush1.bf16.msra.mxu0 %v477
        %502 = vmatprep.subr.bf16.mxu0 0
        %503 = vmatpush1.bf16.msra.mxu0 0
        %504 = vmatprep.subr.bf16.mxu0 0
        %505 = vmatpush1.bf16.msra.mxu0 0
        %506 = vmatprep.subr.bf16.mxu0 0
        %507 = vmatpush1.bf16.msra.mxu0 0
        %508 = vmatprep.subr.bf16.mxu0 0
        %509 = vmatpush1.bf16.msra.mxu0 0
        %510 = vmatprep.subr.bf16.mxu0 0
        %511 = vmatpush1.bf16.msra.mxu0 0
        %512 = vmatprep.subr.bf16.mxu0 0
        %513 = vmatpush1.bf16.msra.mxu0 0
        %514 = vmatprep.subr.bf16.mxu0 0
        %515 = vmatpush1.bf16.msra.mxu0 0
        %516 = vmatprep.subr.bf16.mxu0 0
        %517 = vmatpush1.bf16.msra.mxu0 0
        %518 = vmatprep.mubr.bf16.mxu0 0
        %519 = vmatmul.mubr.bf16.gmra.mrb[0].mxu0 %v413
        %v520 = vpop.f32.mrb[0].mxu0
        %v521 = vadd.f32 0.0, %v520
        %v522 = vpop.f32.mrb[0].mxu0
        %v523 = vpop.f32.mrb[0].mxu0
        %v524 = vadd.f32 0.0, %v523
        %v525 = vpop.f32.mrb[0].mxu0
        %526 = vmatprep.mubr.bf16.mxu0 0
        %527 = vmatmul.mubr.bf16.gmra.mrb[0].mxu0 %v414
        %v528 = vpop.f32.mrb[0].mxu0
        %v529 = vadd.f32 0.0, %v528
        %v530 = vpop.f32.mrb[0].mxu0
        %v531 = vpop.f32.mrb[0].mxu0
        %v532 = vadd.f32 0.0, %v531
        %v533 = vpop.f32.mrb[0].mxu0
        %534 = vmatprep.mubr.bf16.mxu0 0
        %535 = vmatmul.mubr.bf16.gmra.mrb[0].mxu0 %v415
        %v536 = vpop.f32.mrb[0].mxu0
        %v537 = vadd.f32 0.0, %v536
        %v538 = vpop.f32.mrb[0].mxu0
        %v539 = vpop.f32.mrb[0].mxu0
        %v540 = vadd.f32 0.0, %v539
        %v541 = vpop.f32.mrb[0].mxu0
        %542 = vmatprep.mubr.bf16.mxu0 0
        %543 = vmatmul.mubr.bf16.gmra.mrb[0].mxu0 %v416
        %v544 = vpop.f32.mrb[0].mxu0
        %v545 = vadd.f32 0.0, %v544
        %v546 = vpop.f32.mrb[0].mxu0
        %v547 = vpop.f32.mrb[0].mxu0
        %v548 = vadd.f32 0.0, %v547
        %v549 = vpop.f32.mrb[0].mxu0
        %550 = vmatprep.mubr.bf16.mxu0 0
        %551 = vmatmul.mubr.bf16.gmra.mrb[0].mxu0 %v417
        %v552 = vpop.f32.mrb[0].mxu0
        %v553 = vadd.f32 0.0, %v552
        %v554 = vpop.f32.mrb[0].mxu0
        %v555 = vpop.f32.mrb[0].mxu0
        %v556 = vadd.f32 0.0, %v555
        %v557 = vpop.f32.mrb[0].mxu0
        %558 = vmatprep.mubr.bf16.mxu0 0
        %559 = vmatmul.mubr.bf16.gmra.mrb[0].mxu0 %v418
        %v560 = vpop.f32.mrb[0].mxu0
        %v561 = vadd.f32 0.0, %v560
        %v562 = vpop.f32.mrb[0].mxu0
        %v563 = vpop.f32.mrb[0].mxu0
        %v564 = vadd.f32 0.0, %v563
        %v565 = vpop.f32.mrb[0].mxu0
        %566 = vmatprep.mubr.bf16.mxu0 0
        %567 = vmatmul.mubr.bf16.gmra.mrb[0].mxu0 %v419
        %v568 = vpop.f32.mrb[0].mxu0
        %v569 = vadd.f32 0.0, %v568
        %v570 = vpop.f32.mrb[0].mxu0
        %v571 = vpop.f32.mrb[0].mxu0
        %v572 = vadd.f32 0.0, %v571
        %v573 = vpop.f32.mrb[0].mxu0
        %574 = vmatprep.mubr.bf16.mxu0 0
        %575 = vmatmul.mubr.bf16.gmra.mrb[0].mxu0 %v420
        %v576 = vpop.f32.mrb[0].mxu0
        %v577 = vadd.f32 0.0, %v576
        %v578 = vpop.f32.mrb[0].mxu0
        %v579 = vpop.f32.mrb[0].mxu0
        %v580 = vadd.f32 0.0, %v579
        %v581 = vpop.f32.mrb[0].mxu0
        %582 = vdwg.mxu0
        %v599 = vunpack.c.l.b16 %v381
        %v600 = vunpack.c.l.b16 %v382
        %v601 = vunpack.c.l.b16 %v383
        %v602 = vunpack.c.l.b16 %v384
        %v603 = vunpack.c.l.b16 %v385
        %v604 = vunpack.c.l.b16 %v386
        %v605 = vunpack.c.l.b16 %v387
        %v606 = vunpack.c.l.b16 %v388
        %v607 = vunpack.c.l.b16 %v389
        %v608 = vunpack.c.l.b16 %v390
        %v609 = vunpack.c.l.b16 %v391
        %v610 = vunpack.c.l.b16 %v392
        %v611 = vunpack.c.l.b16 %v393
        %v612 = vunpack.c.l.b16 %v394
        %v613 = vunpack.c.l.b16 %v395
        %v614 = vunpack.c.l.b16 %v396
        %v615 = vpack.c.b16 %v600, %v599
        %v616 = vpack.c.b16 %v602, %v601
        %v617 = vpack.c.b16 %v604, %v603
        %v618 = vpack.c.b16 %v606, %v605
        %v619 = vpack.c.b16 %v608, %v607
        %v620 = vpack.c.b16 %v610, %v609
        %v621 = vpack.c.b16 %v612, %v611
        %v622 = vpack.c.b16 %v614, %v613
        %631 = vmatprep.subr.bf16.mxu0 0
        %632 = vmatpush1.bf16.msra.mxu0 %v615
        %633 = vmatprep.subr.bf16.mxu0 0
        %634 = vmatpush1.bf16.msra.mxu0 %v616
        %635 = vmatprep.subr.bf16.mxu0 0
        %636 = vmatpush1.bf16.msra.mxu0 %v617
        %637 = vmatprep.subr.bf16.mxu0 0
        %638 = vmatpush1.bf16.msra.mxu0 %v618
        %639 = vmatprep.subr.bf16.mxu0 0
        %640 = vmatpush1.bf16.msra.mxu0 %v619
        %641 = vmatprep.subr.bf16.mxu0 0
        %642 = vmatpush1.bf16.msra.mxu0 %v620
        %643 = vmatprep.subr.bf16.mxu0 0
        %644 = vmatpush1.bf16.msra.mxu0 %v621
        %645 = vmatprep.subr.bf16.mxu0 0
        %646 = vmatpush1.bf16.msra.mxu0 %v622
        %647 = vmatprep.subr.bf16.mxu0 0
        %648 = vmatpush1.bf16.msra.mxu0 0
        %649 = vmatprep.subr.bf16.mxu0 0
        %650 = vmatpush1.bf16.msra.mxu0 0
        %651 = vmatprep.subr.bf16.mxu0 0
        %652 = vmatpush1.bf16.msra.mxu0 0
        %653 = vmatprep.subr.bf16.mxu0 0
        %654 = vmatpush1.bf16.msra.mxu0 0
        %655 = vmatprep.subr.bf16.mxu0 0
        %656 = vmatpush1.bf16.msra.mxu0 0
        %657 = vmatprep.subr.bf16.mxu0 0
        %658 = vmatpush1.bf16.msra.mxu0 0
        %659 = vmatprep.subr.bf16.mxu0 0
        %660 = vmatpush1.bf16.msra.mxu0 0
        %661 = vmatprep.subr.bf16.mxu0 0
        %662 = vmatpush1.bf16.msra.mxu0 0
        %663 = vmatprep.mubr.bf16.mxu0 0
        %664 = vmatmul.mubr.bf16.gmra.mrb[0].mxu0 %v373
        %v665 = vpop.f32.mrb[0].mxu0
        %v666 = vadd.f32 %v521, %v665
        %v667 = vpop.f32.mrb[0].mxu0
        %v668 = vpop.f32.mrb[0].mxu0
        %v669 = vadd.f32 %v524, %v668
        %v670 = vpop.f32.mrb[0].mxu0
        %671 = vmatprep.mubr.bf16.mxu0 0
        %672 = vmatmul.mubr.bf16.gmra.mrb[0].mxu0 %v374
        %v673 = vpop.f32.mrb[0].mxu0
        %v674 = vadd.f32 %v529, %v673
        %v675 = vpop.f32.mrb[0].mxu0
        %v676 = vpop.f32.mrb[0].mxu0
        %v677 = vadd.f32 %v532, %v676
        %v678 = vpop.f32.mrb[0].mxu0
        %679 = vmatprep.mubr.bf16.mxu0 0
        %680 = vmatmul.mubr.bf16.gmra.mrb[0].mxu0 %v375
        %v681 = vpop.f32.mrb[0].mxu0
        %v682 = vadd.f32 %v537, %v681
        %v683 = vpop.f32.mrb[0].mxu0
        %v684 = vpop.f32.mrb[0].mxu0
        %v685 = vadd.f32 %v540, %v684
        %v686 = vpop.f32.mrb[0].mxu0
        %687 = vmatprep.mubr.bf16.mxu0 0
        %688 = vmatmul.mubr.bf16.gmra.mrb[0].mxu0 %v376
        %v689 = vpop.f32.mrb[0].mxu0
        %v690 = vadd.f32 %v545, %v689
        %v691 = vpop.f32.mrb[0].mxu0
        %v692 = vpop.f32.mrb[0].mxu0
        %v693 = vadd.f32 %v548, %v692
        %v694 = vpop.f32.mrb[0].mxu0
        %695 = vmatprep.mubr.bf16.mxu0 0
        %696 = vmatmul.mubr.bf16.gmra.mrb[0].mxu0 %v377
        %v697 = vpop.f32.mrb[0].mxu0
        %v698 = vadd.f32 %v553, %v697
        %v699 = vpop.f32.mrb[0].mxu0
        %v700 = vpop.f32.mrb[0].mxu0
        %v701 = vadd.f32 %v556, %v700
        %v702 = vpop.f32.mrb[0].mxu0
        %703 = vmatprep.mubr.bf16.mxu0 0
        %704 = vmatmul.mubr.bf16.gmra.mrb[0].mxu0 %v378
        %v705 = vpop.f32.mrb[0].mxu0
        %v706 = vadd.f32 %v561, %v705
        %v707 = vpop.f32.mrb[0].mxu0
        %v708 = vpop.f32.mrb[0].mxu0
        %v709 = vadd.f32 %v564, %v708
        %v710 = vpop.f32.mrb[0].mxu0
        %711 = vmatprep.mubr.bf16.mxu0 0
        %712 = vmatmul.mubr.bf16.gmra.mrb[0].mxu0 %v379
        %v713 = vpop.f32.mrb[0].mxu0
        %v714 = vadd.f32 %v569, %v713
        %v715 = vpop.f32.mrb[0].mxu0
        %v716 = vpop.f32.mrb[0].mxu0
        %v717 = vadd.f32 %v572, %v716
        %v718 = vpop.f32.mrb[0].mxu0
        %719 = vmatprep.mubr.bf16.mxu0 0
        %720 = vmatmul.mubr.bf16.gmra.mrb[0].mxu0 %v380
        %v721 = vpop.f32.mrb[0].mxu0
        %v722 = vadd.f32 %v577, %v721
        %v723 = vpop.f32.mrb[0].mxu0
        %v724 = vpop.f32.mrb[0].mxu0
        %v725 = vadd.f32 %v580, %v724
        %v726 = vpop.f32.mrb[0].mxu0
        %727 = vdwg.mxu0
        %v728 = vld [vmem:[%s356 + $0x2] sm:$0xff]
        %v729 = vld [vmem:[%s356 + $0xa] sm:$0xff]
        %v730 = vld [vmem:[%s356 + $0x1a] sm:$0xff]
        %v731 = vld [vmem:[%s356 + $0x22] sm:$0xff]
        %v732 = vld [vmem:[%s356 + $0x32] sm:$0xff]
        %v733 = vld [vmem:[%s356 + $0x3a] sm:$0xff]
        %v734 = vld [vmem:[%s356 + $0x4a] sm:$0xff]
        %v735 = vld [vmem:[%s356 + $0x52] sm:$0xff]
        %v736 = vld [vmem:[%s356 + $0x62] sm:$0xff]
        %v737 = vld [vmem:[%s356 + $0x6a] sm:$0xff]
        %v738 = vld [vmem:[%s356 + $0x7a] sm:$0xff]
        %v739 = vld [vmem:[%s356 + $0x82] sm:$0xff]
        %v740 = vld [vmem:[%s356 + $0x92] sm:$0xff]
        %v741 = vld [vmem:[%s356 + $0x9a] sm:$0xff]
        %v742 = vld [vmem:[%s356 + $0xaa] sm:$0xff]
        %v743 = vld [vmem:[%s356 + $0xb2] sm:$0xff]
        %v744 = vpack.c.bf16 %v729, %v728
        %v745 = vpack.c.bf16 %v731, %v730
        %v746 = vpack.c.bf16 %v733, %v732
        %v747 = vpack.c.bf16 %v735, %v734
        %v748 = vpack.c.bf16 %v737, %v736
        %v749 = vpack.c.bf16 %v739, %v738
        %v750 = vpack.c.bf16 %v741, %v740
        %v751 = vpack.c.bf16 %v743, %v742
        %s752 = scalar_lea.vmem %s1, 128
        %v753 = vld [vmem:[%s752] sm:$0xf]
        %v754 = vld [vmem:[%s752 + $0x4] sm:$0xf]
        %v755 = vld [vmem:[%s752 + $0x8] sm:$0xf]
        %v756 = vld [vmem:[%s752 + $0xc] sm:$0xf]
        %v757 = vld [vmem:[%s752 + $0x10] sm:$0xf]
        %v758 = vld [vmem:[%s752 + $0x14] sm:$0xf]
        %v759 = vld [vmem:[%s752 + $0x18] sm:$0xf]
        %v760 = vld [vmem:[%s752 + $0x1c] sm:$0xf]
        %v761 = vld [vmem:[%s752 + $0x20] sm:$0xf]
        %v762 = vld [vmem:[%s752 + $0x24] sm:$0xf]
        %v763 = vld [vmem:[%s752 + $0x28] sm:$0xf]
        %v764 = vld [vmem:[%s752 + $0x2c] sm:$0xf]
        %v765 = vld [vmem:[%s752 + $0x30] sm:$0xf]
        %v766 = vld [vmem:[%s752 + $0x34] sm:$0xf]
        %v767 = vld [vmem:[%s752 + $0x38] sm:$0xf]
        %v768 = vld [vmem:[%s752 + $0x3c] sm:$0xf]
        %v785 = vunpack.c.l.b16 %v753
        %v786 = vunpack.c.l.b16 %v754
        %v787 = vunpack.c.l.b16 %v755
        %v788 = vunpack.c.l.b16 %v756
        %v789 = vunpack.c.l.b16 %v757
        %v790 = vunpack.c.l.b16 %v758
        %v791 = vunpack.c.l.b16 %v759
        %v792 = vunpack.c.l.b16 %v760
        %v793 = vunpack.c.l.b16 %v761
        %v794 = vunpack.c.l.b16 %v762
        %v795 = vunpack.c.l.b16 %v763
        %v796 = vunpack.c.l.b16 %v764
        %v797 = vunpack.c.l.b16 %v765
        %v798 = vunpack.c.l.b16 %v766
        %v799 = vunpack.c.l.b16 %v767
        %v800 = vunpack.c.l.b16 %v768
        %v801 = vpack.c.b16 %v786, %v785
        %v802 = vpack.c.b16 %v788, %v787
        %v803 = vpack.c.b16 %v790, %v789
        %v804 = vpack.c.b16 %v792, %v791
        %v805 = vpack.c.b16 %v794, %v793
        %v806 = vpack.c.b16 %v796, %v795
        %v807 = vpack.c.b16 %v798, %v797
        %v808 = vpack.c.b16 %v800, %v799
        %817 = vmatprep.subr.bf16.mxu0 0
        %818 = vmatpush1.bf16.msra.mxu0 %v801
        %819 = vmatprep.subr.bf16.mxu0 0
        %820 = vmatpush1.bf16.msra.mxu0 %v802
        %821 = vmatprep.subr.bf16.mxu0 0
        %822 = vmatpush1.bf16.msra.mxu0 %v803
        %823 = vmatprep.subr.bf16.mxu0 0
        %824 = vmatpush1.bf16.msra.mxu0 %v804
        %825 = vmatprep.subr.bf16.mxu0 0
        %826 = vmatpush1.bf16.msra.mxu0 %v805
        %827 = vmatprep.subr.bf16.mxu0 0
        %828 = vmatpush1.bf16.msra.mxu0 %v806
        %829 = vmatprep.subr.bf16.mxu0 0
        %830 = vmatpush1.bf16.msra.mxu0 %v807
        %831 = vmatprep.subr.bf16.mxu0 0
        %832 = vmatpush1.bf16.msra.mxu0 %v808
        %833 = vmatprep.subr.bf16.mxu0 0
        %834 = vmatpush1.bf16.msra.mxu0 0
        %835 = vmatprep.subr.bf16.mxu0 0
        %836 = vmatpush1.bf16.msra.mxu0 0
        %837 = vmatprep.subr.bf16.mxu0 0
        %838 = vmatpush1.bf16.msra.mxu0 0
        %839 = vmatprep.subr.bf16.mxu0 0
        %840 = vmatpush1.bf16.msra.mxu0 0
        %841 = vmatprep.subr.bf16.mxu0 0
        %842 = vmatpush1.bf16.msra.mxu0 0
        %843 = vmatprep.subr.bf16.mxu0 0
        %844 = vmatpush1.bf16.msra.mxu0 0
        %845 = vmatprep.subr.bf16.mxu0 0
        %846 = vmatpush1.bf16.msra.mxu0 0
        %847 = vmatprep.subr.bf16.mxu0 0
        %848 = vmatpush1.bf16.msra.mxu0 0
        %849 = vmatprep.mubr.bf16.mxu0 0
        %850 = vmatmul.mubr.bf16.gmra.mrb[0].mxu0 %v744
        %v851 = vpop.f32.mrb[0].mxu0
        %v852 = vadd.f32 0.0, %v851
        %v853 = vpop.f32.mrb[0].mxu0
        %v854 = vpop.f32.mrb[0].mxu0
        %v855 = vadd.f32 0.0, %v854
        %v856 = vpop.f32.mrb[0].mxu0
        %857 = vmatprep.mubr.bf16.mxu0 0
        %858 = vmatmul.mubr.bf16.gmra.mrb[0].mxu0 %v745
        %v859 = vpop.f32.mrb[0].mxu0
        %v860 = vadd.f32 0.0, %v859
        %v861 = vpop.f32.mrb[0].mxu0
        %v862 = vpop.f32.mrb[0].mxu0
        %v863 = vadd.f32 0.0, %v862
        %v864 = vpop.f32.mrb[0].mxu0
        %865 = vmatprep.mubr.bf16.mxu0 0
        %866 = vmatmul.mubr.bf16.gmra.mrb[0].mxu0 %v746
        %v867 = vpop.f32.mrb[0].mxu0
        %v868 = vadd.f32 0.0, %v867
        %v869 = vpop.f32.mrb[0].mxu0
        %v870 = vpop.f32.mrb[0].mxu0
        %v871 = vadd.f32 0.0, %v870
        %v872 = vpop.f32.mrb[0].mxu0
        %873 = vmatprep.mubr.bf16.mxu0 0
        %874 = vmatmul.mubr.bf16.gmra.mrb[0].mxu0 %v747
        %v875 = vpop.f32.mrb[0].mxu0
        %v876 = vadd.f32 0.0, %v875
        %v877 = vpop.f32.mrb[0].mxu0
        %v878 = vpop.f32.mrb[0].mxu0
        %v879 = vadd.f32 0.0, %v878
        %v880 = vpop.f32.mrb[0].mxu0
        %881 = vmatprep.mubr.bf16.mxu0 0
        %882 = vmatmul.mubr.bf16.gmra.mrb[0].mxu0 %v748
        %v883 = vpop.f32.mrb[0].mxu0
        %v884 = vadd.f32 0.0, %v883
        %v885 = vpop.f32.mrb[0].mxu0
        %v886 = vpop.f32.mrb[0].mxu0
        %v887 = vadd.f32 0.0, %v886
        %v888 = vpop.f32.mrb[0].mxu0
        %889 = vmatprep.mubr.bf16.mxu0 0
        %890 = vmatmul.mubr.bf16.gmra.mrb[0].mxu0 %v749
        %v891 = vpop.f32.mrb[0].mxu0
        %v892 = vadd.f32 0.0, %v891
        %v893 = vpop.f32.mrb[0].mxu0
        %v894 = vpop.f32.mrb[0].mxu0
        %v895 = vadd.f32 0.0, %v894
        %v896 = vpop.f32.mrb[0].mxu0
        %897 = vmatprep.mubr.bf16.mxu0 0
        %898 = vmatmul.mubr.bf16.gmra.mrb[0].mxu0 %v750
        %v899 = vpop.f32.mrb[0].mxu0
        %v900 = vadd.f32 0.0, %v899
        %v901 = vpop.f32.mrb[0].mxu0
        %v902 = vpop.f32.mrb[0].mxu0
        %v903 = vadd.f32 0.0, %v902
        %v904 = vpop.f32.mrb[0].mxu0
        %905 = vmatprep.mubr.bf16.mxu0 0
        %906 = vmatmul.mubr.bf16.gmra.mrb[0].mxu0 %v751
        %v907 = vpop.f32.mrb[0].mxu0
        %v908 = vadd.f32 0.0, %v907
        %v909 = vpop.f32.mrb[0].mxu0
        %v910 = vpop.f32.mrb[0].mxu0
        %v911 = vadd.f32 0.0, %v910
        %v912 = vpop.f32.mrb[0].mxu0
        %913 = vdwg.mxu0
        %v914 = vadd.f32 %v666, %v852
        %v915 = vadd.f32 %v669, %v855
        %v916 = vadd.f32 %v674, %v860
        %v917 = vadd.f32 %v677, %v863
        %v918 = vadd.f32 %v682, %v868
        %v919 = vadd.f32 %v685, %v871
        %v920 = vadd.f32 %v690, %v876
        %v921 = vadd.f32 %v693, %v879
        %v922 = vadd.f32 %v698, %v884
        %v923 = vadd.f32 %v701, %v887
        %v924 = vadd.f32 %v706, %v892
        %v925 = vadd.f32 %v709, %v895
        %v926 = vadd.f32 %v714, %v900
        %v927 = vadd.f32 %v717, %v903
        %v928 = vadd.f32 %v722, %v908
        %v929 = vadd.f32 %v725, %v911
        %s930 = sadd.s32 %s354, 1
        %s931 = smul.u32 %s930, 24
        %s932 = scalar_lea.vmem %s219, %s931
        %v933 = vld [vmem:[%s932] sm:$0xff]
        %v934 = vld [vmem:[%s932 + $0x8] sm:$0xff]
        %v935 = vld [vmem:[%s932 + $0x18] sm:$0xff]
        %v936 = vld [vmem:[%s932 + $0x20] sm:$0xff]
        %v937 = vld [vmem:[%s932 + $0x30] sm:$0xff]
        %v938 = vld [vmem:[%s932 + $0x38] sm:$0xff]
        %v939 = vld [vmem:[%s932 + $0x48] sm:$0xff]
        %v940 = vld [vmem:[%s932 + $0x50] sm:$0xff]
        %v941 = vld [vmem:[%s932 + $0x60] sm:$0xff]
        %v942 = vld [vmem:[%s932 + $0x68] sm:$0xff]
        %v943 = vld [vmem:[%s932 + $0x78] sm:$0xff]
        %v944 = vld [vmem:[%s932 + $0x80] sm:$0xff]
        %v945 = vld [vmem:[%s932 + $0x90] sm:$0xff]
        %v946 = vld [vmem:[%s932 + $0x98] sm:$0xff]
        %v947 = vld [vmem:[%s932 + $0xa8] sm:$0xff]
        %v948 = vld [vmem:[%s932 + $0xb0] sm:$0xff]
        %v949 = vpack.c.bf16 %v934, %v933
        %v950 = vpack.c.bf16 %v936, %v935
        %v951 = vpack.c.bf16 %v938, %v937
        %v952 = vpack.c.bf16 %v940, %v939
        %v953 = vpack.c.bf16 %v942, %v941
        %v954 = vpack.c.bf16 %v944, %v943
        %v955 = vpack.c.bf16 %v946, %v945
        %v956 = vpack.c.bf16 %v948, %v947
        %s957 = scalar_lea.vmem %s1, 192
        %v958 = vld [vmem:[%s957] sm:$0xf]
        %v959 = vld [vmem:[%s957 + $0x4] sm:$0xf]
        %v960 = vld [vmem:[%s957 + $0x8] sm:$0xf]
        %v961 = vld [vmem:[%s957 + $0xc] sm:$0xf]
        %v962 = vld [vmem:[%s957 + $0x10] sm:$0xf]
        %v963 = vld [vmem:[%s957 + $0x14] sm:$0xf]
        %v964 = vld [vmem:[%s957 + $0x18] sm:$0xf]
        %v965 = vld [vmem:[%s957 + $0x1c] sm:$0xf]
        %v966 = vld [vmem:[%s957 + $0x20] sm:$0xf]
        %v967 = vld [vmem:[%s957 + $0x24] sm:$0xf]
        %v968 = vld [vmem:[%s957 + $0x28] sm:$0xf]
        %v969 = vld [vmem:[%s957 + $0x2c] sm:$0xf]
        %v970 = vld [vmem:[%s957 + $0x30] sm:$0xf]
        %v971 = vld [vmem:[%s957 + $0x34] sm:$0xf]
        %v972 = vld [vmem:[%s957 + $0x38] sm:$0xf]
        %v973 = vld [vmem:[%s957 + $0x3c] sm:$0xf]
        %v990 = vunpack.c.l.b16 %v958
        %v991 = vunpack.c.l.b16 %v959
        %v992 = vunpack.c.l.b16 %v960
        %v993 = vunpack.c.l.b16 %v961
        %v994 = vunpack.c.l.b16 %v962
        %v995 = vunpack.c.l.b16 %v963
        %v996 = vunpack.c.l.b16 %v964
        %v997 = vunpack.c.l.b16 %v965
        %v998 = vunpack.c.l.b16 %v966
        %v999 = vunpack.c.l.b16 %v967
        %v1000 = vunpack.c.l.b16 %v968
        %v1001 = vunpack.c.l.b16 %v969
        %v1002 = vunpack.c.l.b16 %v970
        %v1003 = vunpack.c.l.b16 %v971
        %v1004 = vunpack.c.l.b16 %v972
        %v1005 = vunpack.c.l.b16 %v973
        %v1006 = vpack.c.b16 %v991, %v990
        %v1007 = vpack.c.b16 %v993, %v992
        %v1008 = vpack.c.b16 %v995, %v994
        %v1009 = vpack.c.b16 %v997, %v996
        %v1010 = vpack.c.b16 %v999, %v998
        %v1011 = vpack.c.b16 %v1001, %v1000
        %v1012 = vpack.c.b16 %v1003, %v1002
        %v1013 = vpack.c.b16 %v1005, %v1004
        %1022 = vmatprep.subr.bf16.mxu0 0
        %1023 = vmatpush1.bf16.msra.mxu0 %v1006
        %1024 = vmatprep.subr.bf16.mxu0 0
        %1025 = vmatpush1.bf16.msra.mxu0 %v1007
        %1026 = vmatprep.subr.bf16.mxu0 0
        %1027 = vmatpush1.bf16.msra.mxu0 %v1008
        %1028 = vmatprep.subr.bf16.mxu0 0
        %1029 = vmatpush1.bf16.msra.mxu0 %v1009
        %1030 = vmatprep.subr.bf16.mxu0 0
        %1031 = vmatpush1.bf16.msra.mxu0 %v1010
        %1032 = vmatprep.subr.bf16.mxu0 0
        %1033 = vmatpush1.bf16.msra.mxu0 %v1011
        %1034 = vmatprep.subr.bf16.mxu0 0
        %1035 = vmatpush1.bf16.msra.mxu0 %v1012
        %1036 = vmatprep.subr.bf16.mxu0 0
        %1037 = vmatpush1.bf16.msra.mxu0 %v1013
        %1038 = vmatprep.subr.bf16.mxu0 0
        %1039 = vmatpush1.bf16.msra.mxu0 0
        %1040 = vmatprep.subr.bf16.mxu0 0
        %1041 = vmatpush1.bf16.msra.mxu0 0
        %1042 = vmatprep.subr.bf16.mxu0 0
        %1043 = vmatpush1.bf16.msra.mxu0 0
        %1044 = vmatprep.subr.bf16.mxu0 0
        %1045 = vmatpush1.bf16.msra.mxu0 0
        %1046 = vmatprep.subr.bf16.mxu0 0
        %1047 = vmatpush1.bf16.msra.mxu0 0
        %1048 = vmatprep.subr.bf16.mxu0 0
        %1049 = vmatpush1.bf16.msra.mxu0 0
        %1050 = vmatprep.subr.bf16.mxu0 0
        %1051 = vmatpush1.bf16.msra.mxu0 0
        %1052 = vmatprep.subr.bf16.mxu0 0
        %1053 = vmatpush1.bf16.msra.mxu0 0
        %1054 = vmatprep.mubr.bf16.mxu0 0
        %1055 = vmatmul.mubr.bf16.gmra.mrb[0].mxu0 %v949
        %v1056 = vpop.f32.mrb[0].mxu0
        %v1057 = vadd.f32 0.0, %v1056
        %v1058 = vpop.f32.mrb[0].mxu0
        %v1059 = vpop.f32.mrb[0].mxu0
        %v1060 = vadd.f32 0.0, %v1059
        %v1061 = vpop.f32.mrb[0].mxu0
        %1062 = vmatprep.mubr.bf16.mxu0 0
        %1063 = vmatmul.mubr.bf16.gmra.mrb[0].mxu0 %v950
        %v1064 = vpop.f32.mrb[0].mxu0
        %v1065 = vadd.f32 0.0, %v1064
        %v1066 = vpop.f32.mrb[0].mxu0
        %v1067 = vpop.f32.mrb[0].mxu0
        %v1068 = vadd.f32 0.0, %v1067
        %v1069 = vpop.f32.mrb[0].mxu0
        %1070 = vmatprep.mubr.bf16.mxu0 0
        %1071 = vmatmul.mubr.bf16.gmra.mrb[0].mxu0 %v951
        %v1072 = vpop.f32.mrb[0].mxu0
        %v1073 = vadd.f32 0.0, %v1072
        %v1074 = vpop.f32.mrb[0].mxu0
        %v1075 = vpop.f32.mrb[0].mxu0
        %v1076 = vadd.f32 0.0, %v1075
        %v1077 = vpop.f32.mrb[0].mxu0
        %1078 = vmatprep.mubr.bf16.mxu0 0
        %1079 = vmatmul.mubr.bf16.gmra.mrb[0].mxu0 %v952
        %v1080 = vpop.f32.mrb[0].mxu0
        %v1081 = vadd.f32 0.0, %v1080
        %v1082 = vpop.f32.mrb[0].mxu0
        %v1083 = vpop.f32.mrb[0].mxu0
        %v1084 = vadd.f32 0.0, %v1083
        %v1085 = vpop.f32.mrb[0].mxu0
        %1086 = vmatprep.mubr.bf16.mxu0 0
        %1087 = vmatmul.mubr.bf16.gmra.mrb[0].mxu0 %v953
        %v1088 = vpop.f32.mrb[0].mxu0
        %v1089 = vadd.f32 0.0, %v1088
        %v1090 = vpop.f32.mrb[0].mxu0
        %v1091 = vpop.f32.mrb[0].mxu0
        %v1092 = vadd.f32 0.0, %v1091
        %v1093 = vpop.f32.mrb[0].mxu0
        %1094 = vmatprep.mubr.bf16.mxu0 0
        %1095 = vmatmul.mubr.bf16.gmra.mrb[0].mxu0 %v954
        %v1096 = vpop.f32.mrb[0].mxu0
        %v1097 = vadd.f32 0.0, %v1096
        %v1098 = vpop.f32.mrb[0].mxu0
        %v1099 = vpop.f32.mrb[0].mxu0
        %v1100 = vadd.f32 0.0, %v1099
        %v1101 = vpop.f32.mrb[0].mxu0
        %1102 = vmatprep.mubr.bf16.mxu0 0
        %1103 = vmatmul.mubr.bf16.gmra.mrb[0].mxu0 %v955
        %v1104 = vpop.f32.mrb[0].mxu0
        %v1105 = vadd.f32 0.0, %v1104
        %v1106 = vpop.f32.mrb[0].mxu0
        %v1107 = vpop.f32.mrb[0].mxu0
        %v1108 = vadd.f32 0.0, %v1107
        %v1109 = vpop.f32.mrb[0].mxu0
        %1110 = vmatprep.mubr.bf16.mxu0 0
        %1111 = vmatmul.mubr.bf16.gmra.mrb[0].mxu0 %v956
        %v1112 = vpop.f32.mrb[0].mxu0
        %v1113 = vadd.f32 0.0, %v1112
        %v1114 = vpop.f32.mrb[0].mxu0
        %v1115 = vpop.f32.mrb[0].mxu0
        %v1116 = vadd.f32 0.0, %v1115
        %v1117 = vpop.f32.mrb[0].mxu0
        %1118 = vdwg.mxu0
        %v1119 = vadd.f32 %v914, %v1057
        %v1120 = vadd.f32 %v915, %v1060
        %v1121 = vadd.f32 %v916, %v1065
        %v1122 = vadd.f32 %v917, %v1068
        %v1123 = vadd.f32 %v918, %v1073
        %v1124 = vadd.f32 %v919, %v1076
        %v1125 = vadd.f32 %v920, %v1081
        %v1126 = vadd.f32 %v921, %v1084
        %v1127 = vadd.f32 %v922, %v1089
        %v1128 = vadd.f32 %v923, %v1092
        %v1129 = vadd.f32 %v924, %v1097
        %v1130 = vadd.f32 %v925, %v1100
        %v1131 = vadd.f32 %v926, %v1105
        %v1132 = vadd.f32 %v927, %v1108
        %v1133 = vadd.f32 %v928, %v1113
        %v1134 = vadd.f32 %v929, %v1116
        %v1135 = vld [vmem:[%s932 + $0x1] sm:$0xff]
        %v1136 = vld [vmem:[%s932 + $0x9] sm:$0xff]
        %v1137 = vld [vmem:[%s932 + $0x19] sm:$0xff]
        %v1138 = vld [vmem:[%s932 + $0x21] sm:$0xff]
        %v1139 = vld [vmem:[%s932 + $0x31] sm:$0xff]
        %v1140 = vld [vmem:[%s932 + $0x39] sm:$0xff]
        %v1141 = vld [vmem:[%s932 + $0x49] sm:$0xff]
        %v1142 = vld [vmem:[%s932 + $0x51] sm:$0xff]
        %v1143 = vld [vmem:[%s932 + $0x61] sm:$0xff]
        %v1144 = vld [vmem:[%s932 + $0x69] sm:$0xff]
        %v1145 = vld [vmem:[%s932 + $0x79] sm:$0xff]
        %v1146 = vld [vmem:[%s932 + $0x81] sm:$0xff]
        %v1147 = vld [vmem:[%s932 + $0x91] sm:$0xff]
        %v1148 = vld [vmem:[%s932 + $0x99] sm:$0xff]
        %v1149 = vld [vmem:[%s932 + $0xa9] sm:$0xff]
        %v1150 = vld [vmem:[%s932 + $0xb1] sm:$0xff]
        %v1151 = vpack.c.bf16 %v1136, %v1135
        %v1152 = vpack.c.bf16 %v1138, %v1137
        %v1153 = vpack.c.bf16 %v1140, %v1139
        %v1154 = vpack.c.bf16 %v1142, %v1141
        %v1155 = vpack.c.bf16 %v1144, %v1143
        %v1156 = vpack.c.bf16 %v1146, %v1145
        %v1157 = vpack.c.bf16 %v1148, %v1147
        %v1158 = vpack.c.bf16 %v1150, %v1149
        %s1159 = scalar_lea.vmem %s1, 256
        %v1160 = vld [vmem:[%s1159] sm:$0xf]
        %v1161 = vld [vmem:[%s1159 + $0x4] sm:$0xf]
        %v1162 = vld [vmem:[%s1159 + $0x8] sm:$0xf]
        %v1163 = vld [vmem:[%s1159 + $0xc] sm:$0xf]
        %v1164 = vld [vmem:[%s1159 + $0x10] sm:$0xf]
        %v1165 = vld [vmem:[%s1159 + $0x14] sm:$0xf]
        %v1166 = vld [vmem:[%s1159 + $0x18] sm:$0xf]
        %v1167 = vld [vmem:[%s1159 + $0x1c] sm:$0xf]
        %v1168 = vld [vmem:[%s1159 + $0x20] sm:$0xf]
        %v1169 = vld [vmem:[%s1159 + $0x24] sm:$0xf]
        %v1170 = vld [vmem:[%s1159 + $0x28] sm:$0xf]
        %v1171 = vld [vmem:[%s1159 + $0x2c] sm:$0xf]
        %v1172 = vld [vmem:[%s1159 + $0x30] sm:$0xf]
        %v1173 = vld [vmem:[%s1159 + $0x34] sm:$0xf]
        %v1174 = vld [vmem:[%s1159 + $0x38] sm:$0xf]
        %v1175 = vld [vmem:[%s1159 + $0x3c] sm:$0xf]
        %v1192 = vunpack.c.l.b16 %v1160
        %v1193 = vunpack.c.l.b16 %v1161
        %v1194 = vunpack.c.l.b16 %v1162
        %v1195 = vunpack.c.l.b16 %v1163
        %v1196 = vunpack.c.l.b16 %v1164
        %v1197 = vunpack.c.l.b16 %v1165
        %v1198 = vunpack.c.l.b16 %v1166
        %v1199 = vunpack.c.l.b16 %v1167
        %v1200 = vunpack.c.l.b16 %v1168
        %v1201 = vunpack.c.l.b16 %v1169
        %v1202 = vunpack.c.l.b16 %v1170
        %v1203 = vunpack.c.l.b16 %v1171
        %v1204 = vunpack.c.l.b16 %v1172
        %v1205 = vunpack.c.l.b16 %v1173
        %v1206 = vunpack.c.l.b16 %v1174
        %v1207 = vunpack.c.l.b16 %v1175
        %v1208 = vpack.c.b16 %v1193, %v1192
        %v1209 = vpack.c.b16 %v1195, %v1194
        %v1210 = vpack.c.b16 %v1197, %v1196
        %v1211 = vpack.c.b16 %v1199, %v1198
        %v1212 = vpack.c.b16 %v1201, %v1200
        %v1213 = vpack.c.b16 %v1203, %v1202
        %v1214 = vpack.c.b16 %v1205, %v1204
        %v1215 = vpack.c.b16 %v1207, %v1206
        %1224 = vmatprep.subr.bf16.mxu0 0
        %1225 = vmatpush1.bf16.msra.mxu0 %v1208
        %1226 = vmatprep.subr.bf16.mxu0 0
        %1227 = vmatpush1.bf16.msra.mxu0 %v1209
        %1228 = vmatprep.subr.bf16.mxu0 0
        %1229 = vmatpush1.bf16.msra.mxu0 %v1210
        %1230 = vmatprep.subr.bf16.mxu0 0
        %1231 = vmatpush1.bf16.msra.mxu0 %v1211
        %1232 = vmatprep.subr.bf16.mxu0 0
        %1233 = vmatpush1.bf16.msra.mxu0 %v1212
        %1234 = vmatprep.subr.bf16.mxu0 0
        %1235 = vmatpush1.bf16.msra.mxu0 %v1213
        %1236 = vmatprep.subr.bf16.mxu0 0
        %1237 = vmatpush1.bf16.msra.mxu0 %v1214
        %1238 = vmatprep.subr.bf16.mxu0 0
        %1239 = vmatpush1.bf16.msra.mxu0 %v1215
        %1240 = vmatprep.subr.bf16.mxu0 0
        %1241 = vmatpush1.bf16.msra.mxu0 0
        %1242 = vmatprep.subr.bf16.mxu0 0
        %1243 = vmatpush1.bf16.msra.mxu0 0
        %1244 = vmatprep.subr.bf16.mxu0 0
        %1245 = vmatpush1.bf16.msra.mxu0 0
        %1246 = vmatprep.subr.bf16.mxu0 0
        %1247 = vmatpush1.bf16.msra.mxu0 0
        %1248 = vmatprep.subr.bf16.mxu0 0
        %1249 = vmatpush1.bf16.msra.mxu0 0
        %1250 = vmatprep.subr.bf16.mxu0 0
        %1251 = vmatpush1.bf16.msra.mxu0 0
        %1252 = vmatprep.subr.bf16.mxu0 0
        %1253 = vmatpush1.bf16.msra.mxu0 0
        %1254 = vmatprep.subr.bf16.mxu0 0
        %1255 = vmatpush1.bf16.msra.mxu0 0
        %1256 = vmatprep.mubr.bf16.mxu0 0
        %1257 = vmatmul.mubr.bf16.gmra.mrb[0].mxu0 %v1151
        %v1258 = vpop.f32.mrb[0].mxu0
        %v1259 = vadd.f32 0.0, %v1258
        %v1260 = vpop.f32.mrb[0].mxu0
        %v1261 = vpop.f32.mrb[0].mxu0
        %v1262 = vadd.f32 0.0, %v1261
        %v1263 = vpop.f32.mrb[0].mxu0
        %1264 = vmatprep.mubr.bf16.mxu0 0
        %1265 = vmatmul.mubr.bf16.gmra.mrb[0].mxu0 %v1152
        %v1266 = vpop.f32.mrb[0].mxu0
        %v1267 = vadd.f32 0.0, %v1266
        %v1268 = vpop.f32.mrb[0].mxu0
        %v1269 = vpop.f32.mrb[0].mxu0
        %v1270 = vadd.f32 0.0, %v1269
        %v1271 = vpop.f32.mrb[0].mxu0
        %1272 = vmatprep.mubr.bf16.mxu0 0
        %1273 = vmatmul.mubr.bf16.gmra.mrb[0].mxu0 %v1153
        %v1274 = vpop.f32.mrb[0].mxu0
        %v1275 = vadd.f32 0.0, %v1274
        %v1276 = vpop.f32.mrb[0].mxu0
        %v1277 = vpop.f32.mrb[0].mxu0
        %v1278 = vadd.f32 0.0, %v1277
        %v1279 = vpop.f32.mrb[0].mxu0
        %1280 = vmatprep.mubr.bf16.mxu0 0
        %1281 = vmatmul.mubr.bf16.gmra.mrb[0].mxu0 %v1154
        %v1282 = vpop.f32.mrb[0].mxu0
        %v1283 = vadd.f32 0.0, %v1282
        %v1284 = vpop.f32.mrb[0].mxu0
        %v1285 = vpop.f32.mrb[0].mxu0
        %v1286 = vadd.f32 0.0, %v1285
        %v1287 = vpop.f32.mrb[0].mxu0
        %1288 = vmatprep.mubr.bf16.mxu0 0
        %1289 = vmatmul.mubr.bf16.gmra.mrb[0].mxu0 %v1155
        %v1290 = vpop.f32.mrb[0].mxu0
        %v1291 = vadd.f32 0.0, %v1290
        %v1292 = vpop.f32.mrb[0].mxu0
        %v1293 = vpop.f32.mrb[0].mxu0
        %v1294 = vadd.f32 0.0, %v1293
        %v1295 = vpop.f32.mrb[0].mxu0
        %1296 = vmatprep.mubr.bf16.mxu0 0
        %1297 = vmatmul.mubr.bf16.gmra.mrb[0].mxu0 %v1156
        %v1298 = vpop.f32.mrb[0].mxu0
        %v1299 = vadd.f32 0.0, %v1298
        %v1300 = vpop.f32.mrb[0].mxu0
        %v1301 = vpop.f32.mrb[0].mxu0
        %v1302 = vadd.f32 0.0, %v1301
        %v1303 = vpop.f32.mrb[0].mxu0
        %1304 = vmatprep.mubr.bf16.mxu0 0
        %1305 = vmatmul.mubr.bf16.gmra.mrb[0].mxu0 %v1157
        %v1306 = vpop.f32.mrb[0].mxu0
        %v1307 = vadd.f32 0.0, %v1306
        %v1308 = vpop.f32.mrb[0].mxu0
        %v1309 = vpop.f32.mrb[0].mxu0
        %v1310 = vadd.f32 0.0, %v1309
        %v1311 = vpop.f32.mrb[0].mxu0
        %1312 = vmatprep.mubr.bf16.mxu0 0
        %1313 = vmatmul.mubr.bf16.gmra.mrb[0].mxu0 %v1158
        %v1314 = vpop.f32.mrb[0].mxu0
        %v1315 = vadd.f32 0.0, %v1314
        %v1316 = vpop.f32.mrb[0].mxu0
        %v1317 = vpop.f32.mrb[0].mxu0
        %v1318 = vadd.f32 0.0, %v1317
        %v1319 = vpop.f32.mrb[0].mxu0
        %1320 = vdwg.mxu0
        %v1321 = vadd.f32 %v1119, %v1259
        %v1322 = vadd.f32 %v1120, %v1262
        %v1323 = vadd.f32 %v1121, %v1267
        %v1324 = vadd.f32 %v1122, %v1270
        %v1325 = vadd.f32 %v1123, %v1275
        %v1326 = vadd.f32 %v1124, %v1278
        %v1327 = vadd.f32 %v1125, %v1283
        %v1328 = vadd.f32 %v1126, %v1286
        %v1329 = vadd.f32 %v1127, %v1291
        %v1330 = vadd.f32 %v1128, %v1294
        %v1331 = vadd.f32 %v1129, %v1299
        %v1332 = vadd.f32 %v1130, %v1302
        %v1333 = vadd.f32 %v1131, %v1307
        %v1334 = vadd.f32 %v1132, %v1310
        %v1335 = vadd.f32 %v1133, %v1315
        %v1336 = vadd.f32 %v1134, %v1318
        %v1337 = vld [vmem:[%s932 + $0x2] sm:$0xff]
        %v1338 = vld [vmem:[%s932 + $0xa] sm:$0xff]
        %v1339 = vld [vmem:[%s932 + $0x1a] sm:$0xff]
        %v1340 = vld [vmem:[%s932 + $0x22] sm:$0xff]
        %v1341 = vld [vmem:[%s932 + $0x32] sm:$0xff]
        %v1342 = vld [vmem:[%s932 + $0x3a] sm:$0xff]
        %v1343 = vld [vmem:[%s932 + $0x4a] sm:$0xff]
        %v1344 = vld [vmem:[%s932 + $0x52] sm:$0xff]
        %v1345 = vld [vmem:[%s932 + $0x62] sm:$0xff]
        %v1346 = vld [vmem:[%s932 + $0x6a] sm:$0xff]
        %v1347 = vld [vmem:[%s932 + $0x7a] sm:$0xff]
        %v1348 = vld [vmem:[%s932 + $0x82] sm:$0xff]
        %v1349 = vld [vmem:[%s932 + $0x92] sm:$0xff]
        %v1350 = vld [vmem:[%s932 + $0x9a] sm:$0xff]
        %v1351 = vld [vmem:[%s932 + $0xaa] sm:$0xff]
        %v1352 = vld [vmem:[%s932 + $0xb2] sm:$0xff]
        %v1353 = vpack.c.bf16 %v1338, %v1337
        %v1354 = vpack.c.bf16 %v1340, %v1339
        %v1355 = vpack.c.bf16 %v1342, %v1341
        %v1356 = vpack.c.bf16 %v1344, %v1343
        %v1357 = vpack.c.bf16 %v1346, %v1345
        %v1358 = vpack.c.bf16 %v1348, %v1347
        %v1359 = vpack.c.bf16 %v1350, %v1349
        %v1360 = vpack.c.bf16 %v1352, %v1351
        %s1361 = scalar_lea.vmem %s1, 320
        %v1362 = vld [vmem:[%s1361] sm:$0xf]
        %v1363 = vld [vmem:[%s1361 + $0x4] sm:$0xf]
        %v1364 = vld [vmem:[%s1361 + $0x8] sm:$0xf]
        %v1365 = vld [vmem:[%s1361 + $0xc] sm:$0xf]
        %v1366 = vld [vmem:[%s1361 + $0x10] sm:$0xf]
        %v1367 = vld [vmem:[%s1361 + $0x14] sm:$0xf]
        %v1368 = vld [vmem:[%s1361 + $0x18] sm:$0xf]
        %v1369 = vld [vmem:[%s1361 + $0x1c] sm:$0xf]
        %v1370 = vld [vmem:[%s1361 + $0x20] sm:$0xf]
        %v1371 = vld [vmem:[%s1361 + $0x24] sm:$0xf]
        %v1372 = vld [vmem:[%s1361 + $0x28] sm:$0xf]
        %v1373 = vld [vmem:[%s1361 + $0x2c] sm:$0xf]
        %v1374 = vld [vmem:[%s1361 + $0x30] sm:$0xf]
        %v1375 = vld [vmem:[%s1361 + $0x34] sm:$0xf]
        %v1376 = vld [vmem:[%s1361 + $0x38] sm:$0xf]
        %v1377 = vld [vmem:[%s1361 + $0x3c] sm:$0xf]
        %v1394 = vunpack.c.l.b16 %v1362
        %v1395 = vunpack.c.l.b16 %v1363
        %v1396 = vunpack.c.l.b16 %v1364
        %v1397 = vunpack.c.l.b16 %v1365
        %v1398 = vunpack.c.l.b16 %v1366
        %v1399 = vunpack.c.l.b16 %v1367
        %v1400 = vunpack.c.l.b16 %v1368
        %v1401 = vunpack.c.l.b16 %v1369
        %v1402 = vunpack.c.l.b16 %v1370
        %v1403 = vunpack.c.l.b16 %v1371
        %v1404 = vunpack.c.l.b16 %v1372
        %v1405 = vunpack.c.l.b16 %v1373
        %v1406 = vunpack.c.l.b16 %v1374
        %v1407 = vunpack.c.l.b16 %v1375
        %v1408 = vunpack.c.l.b16 %v1376
        %v1409 = vunpack.c.l.b16 %v1377
        %v1410 = vpack.c.b16 %v1395, %v1394
        %v1411 = vpack.c.b16 %v1397, %v1396
        %v1412 = vpack.c.b16 %v1399, %v1398
        %v1413 = vpack.c.b16 %v1401, %v1400
        %v1414 = vpack.c.b16 %v1403, %v1402
        %v1415 = vpack.c.b16 %v1405, %v1404
        %v1416 = vpack.c.b16 %v1407, %v1406
        %v1417 = vpack.c.b16 %v1409, %v1408
        %1426 = vmatprep.subr.bf16.mxu0 0
        %1427 = vmatpush1.bf16.msra.mxu0 %v1410
        %1428 = vmatprep.subr.bf16.mxu0 0
        %1429 = vmatpush1.bf16.msra.mxu0 %v1411
        %1430 = vmatprep.subr.bf16.mxu0 0
        %1431 = vmatpush1.bf16.msra.mxu0 %v1412
        %1432 = vmatprep.subr.bf16.mxu0 0
        %1433 = vmatpush1.bf16.msra.mxu0 %v1413
        %1434 = vmatprep.subr.bf16.mxu0 0
        %1435 = vmatpush1.bf16.msra.mxu0 %v1414
        %1436 = vmatprep.subr.bf16.mxu0 0
        %1437 = vmatpush1.bf16.msra.mxu0 %v1415
        %1438 = vmatprep.subr.bf16.mxu0 0
        %1439 = vmatpush1.bf16.msra.mxu0 %v1416
        %1440 = vmatprep.subr.bf16.mxu0 0
        %1441 = vmatpush1.bf16.msra.mxu0 %v1417
        %1442 = vmatprep.subr.bf16.mxu0 0
        %1443 = vmatpush1.bf16.msra.mxu0 0
        %1444 = vmatprep.subr.bf16.mxu0 0
        %1445 = vmatpush1.bf16.msra.mxu0 0
        %1446 = vmatprep.subr.bf16.mxu0 0
        %1447 = vmatpush1.bf16.msra.mxu0 0
        %1448 = vmatprep.subr.bf16.mxu0 0
        %1449 = vmatpush1.bf16.msra.mxu0 0
        %1450 = vmatprep.subr.bf16.mxu0 0
        %1451 = vmatpush1.bf16.msra.mxu0 0
        %1452 = vmatprep.subr.bf16.mxu0 0
        %1453 = vmatpush1.bf16.msra.mxu0 0
        %1454 = vmatprep.subr.bf16.mxu0 0
        %1455 = vmatpush1.bf16.msra.mxu0 0
        %1456 = vmatprep.subr.bf16.mxu0 0
        %1457 = vmatpush1.bf16.msra.mxu0 0
        %1458 = vmatprep.mubr.bf16.mxu0 0
        %1459 = vmatmul.mubr.bf16.gmra.mrb[0].mxu0 %v1353
        %v1460 = vpop.f32.mrb[0].mxu0
        %v1461 = vadd.f32 0.0, %v1460
        %v1462 = vpop.f32.mrb[0].mxu0
        %v1463 = vpop.f32.mrb[0].mxu0
        %v1464 = vadd.f32 0.0, %v1463
        %v1465 = vpop.f32.mrb[0].mxu0
        %1466 = vmatprep.mubr.bf16.mxu0 0
        %1467 = vmatmul.mubr.bf16.gmra.mrb[0].mxu0 %v1354
        %v1468 = vpop.f32.mrb[0].mxu0
        %v1469 = vadd.f32 0.0, %v1468
        %v1470 = vpop.f32.mrb[0].mxu0
        %v1471 = vpop.f32.mrb[0].mxu0
        %v1472 = vadd.f32 0.0, %v1471
        %v1473 = vpop.f32.mrb[0].mxu0
        %1474 = vmatprep.mubr.bf16.mxu0 0
        %1475 = vmatmul.mubr.bf16.gmra.mrb[0].mxu0 %v1355
        %v1476 = vpop.f32.mrb[0].mxu0
        %v1477 = vadd.f32 0.0, %v1476
        %v1478 = vpop.f32.mrb[0].mxu0
        %v1479 = vpop.f32.mrb[0].mxu0
        %v1480 = vadd.f32 0.0, %v1479
        %v1481 = vpop.f32.mrb[0].mxu0
        %1482 = vmatprep.mubr.bf16.mxu0 0
        %1483 = vmatmul.mubr.bf16.gmra.mrb[0].mxu0 %v1356
        %v1484 = vpop.f32.mrb[0].mxu0
        %v1485 = vadd.f32 0.0, %v1484
        %v1486 = vpop.f32.mrb[0].mxu0
        %v1487 = vpop.f32.mrb[0].mxu0
        %v1488 = vadd.f32 0.0, %v1487
        %v1489 = vpop.f32.mrb[0].mxu0
        %1490 = vmatprep.mubr.bf16.mxu0 0
        %1491 = vmatmul.mubr.bf16.gmra.mrb[0].mxu0 %v1357
        %v1492 = vpop.f32.mrb[0].mxu0
        %v1493 = vadd.f32 0.0, %v1492
        %v1494 = vpop.f32.mrb[0].mxu0
        %v1495 = vpop.f32.mrb[0].mxu0
        %v1496 = vadd.f32 0.0, %v1495
        %v1497 = vpop.f32.mrb[0].mxu0
        %1498 = vmatprep.mubr.bf16.mxu0 0
        %1499 = vmatmul.mubr.bf16.gmra.mrb[0].mxu0 %v1358
        %v1500 = vpop.f32.mrb[0].mxu0
        %v1501 = vadd.f32 0.0, %v1500
        %v1502 = vpop.f32.mrb[0].mxu0
        %v1503 = vpop.f32.mrb[0].mxu0
        %v1504 = vadd.f32 0.0, %v1503
        %v1505 = vpop.f32.mrb[0].mxu0
        %1506 = vmatprep.mubr.bf16.mxu0 0
        %1507 = vmatmul.mubr.bf16.gmra.mrb[0].mxu0 %v1359
        %v1508 = vpop.f32.mrb[0].mxu0
        %v1509 = vadd.f32 0.0, %v1508
        %v1510 = vpop.f32.mrb[0].mxu0
        %v1511 = vpop.f32.mrb[0].mxu0
        %v1512 = vadd.f32 0.0, %v1511
        %v1513 = vpop.f32.mrb[0].mxu0
        %1514 = vmatprep.mubr.bf16.mxu0 0
        %1515 = vmatmul.mubr.bf16.gmra.mrb[0].mxu0 %v1360
        %v1516 = vpop.f32.mrb[0].mxu0
        %v1517 = vadd.f32 0.0, %v1516
        %v1518 = vpop.f32.mrb[0].mxu0
        %v1519 = vpop.f32.mrb[0].mxu0
        %v1520 = vadd.f32 0.0, %v1519
        %v1521 = vpop.f32.mrb[0].mxu0
        %1522 = vdwg.mxu0
        %v1523 = vadd.f32 %v1321, %v1461
        %v1524 = vadd.f32 %v1322, %v1464
        %v1525 = vadd.f32 %v1323, %v1469
        %v1526 = vadd.f32 %v1324, %v1472
        %v1527 = vadd.f32 %v1325, %v1477
        %v1528 = vadd.f32 %v1326, %v1480
        %v1529 = vadd.f32 %v1327, %v1485
        %v1530 = vadd.f32 %v1328, %v1488
        %v1531 = vadd.f32 %v1329, %v1493
        %v1532 = vadd.f32 %v1330, %v1496
        %v1533 = vadd.f32 %v1331, %v1501
        %v1534 = vadd.f32 %v1332, %v1504
        %v1535 = vadd.f32 %v1333, %v1509
        %v1536 = vadd.f32 %v1334, %v1512
        %v1537 = vadd.f32 %v1335, %v1517
        %v1538 = vadd.f32 %v1336, %v1520
        %s1539 = sadd.s32 %s354, 2
        %s1540 = smul.u32 %s1539, 24
        %s1541 = scalar_lea.vmem %s219, %s1540
        %v1542 = vld [vmem:[%s1541] sm:$0xff]
        %v1543 = vld [vmem:[%s1541 + $0x8] sm:$0xff]
        %v1544 = vld [vmem:[%s1541 + $0x18] sm:$0xff]
        %v1545 = vld [vmem:[%s1541 + $0x20] sm:$0xff]
        %v1546 = vld [vmem:[%s1541 + $0x30] sm:$0xff]
        %v1547 = vld [vmem:[%s1541 + $0x38] sm:$0xff]
        %v1548 = vld [vmem:[%s1541 + $0x48] sm:$0xff]
        %v1549 = vld [vmem:[%s1541 + $0x50] sm:$0xff]
        %v1550 = vld [vmem:[%s1541 + $0x60] sm:$0xff]
        %v1551 = vld [vmem:[%s1541 + $0x68] sm:$0xff]
        %v1552 = vld [vmem:[%s1541 + $0x78] sm:$0xff]
        %v1553 = vld [vmem:[%s1541 + $0x80] sm:$0xff]
        %v1554 = vld [vmem:[%s1541 + $0x90] sm:$0xff]
        %v1555 = vld [vmem:[%s1541 + $0x98] sm:$0xff]
        %v1556 = vld [vmem:[%s1541 + $0xa8] sm:$0xff]
        %v1557 = vld [vmem:[%s1541 + $0xb0] sm:$0xff]
        %v1558 = vpack.c.bf16 %v1543, %v1542
        %v1559 = vpack.c.bf16 %v1545, %v1544
        %v1560 = vpack.c.bf16 %v1547, %v1546
        %v1561 = vpack.c.bf16 %v1549, %v1548
        %v1562 = vpack.c.bf16 %v1551, %v1550
        %v1563 = vpack.c.bf16 %v1553, %v1552
        %v1564 = vpack.c.bf16 %v1555, %v1554
        %v1565 = vpack.c.bf16 %v1557, %v1556
        %s1566 = scalar_lea.vmem %s1, 384
        %v1567 = vld [vmem:[%s1566] sm:$0xf]
        %v1568 = vld [vmem:[%s1566 + $0x4] sm:$0xf]
        %v1569 = vld [vmem:[%s1566 + $0x8] sm:$0xf]
        %v1570 = vld [vmem:[%s1566 + $0xc] sm:$0xf]
        %v1571 = vld [vmem:[%s1566 + $0x10] sm:$0xf]
        %v1572 = vld [vmem:[%s1566 + $0x14] sm:$0xf]
        %v1573 = vld [vmem:[%s1566 + $0x18] sm:$0xf]
        %v1574 = vld [vmem:[%s1566 + $0x1c] sm:$0xf]
        %v1575 = vld [vmem:[%s1566 + $0x20] sm:$0xf]
        %v1576 = vld [vmem:[%s1566 + $0x24] sm:$0xf]
        %v1577 = vld [vmem:[%s1566 + $0x28] sm:$0xf]
        %v1578 = vld [vmem:[%s1566 + $0x2c] sm:$0xf]
        %v1579 = vld [vmem:[%s1566 + $0x30] sm:$0xf]
        %v1580 = vld [vmem:[%s1566 + $0x34] sm:$0xf]
        %v1581 = vld [vmem:[%s1566 + $0x38] sm:$0xf]
        %v1582 = vld [vmem:[%s1566 + $0x3c] sm:$0xf]
        %v1599 = vunpack.c.l.b16 %v1567
        %v1600 = vunpack.c.l.b16 %v1568
        %v1601 = vunpack.c.l.b16 %v1569
        %v1602 = vunpack.c.l.b16 %v1570
        %v1603 = vunpack.c.l.b16 %v1571
        %v1604 = vunpack.c.l.b16 %v1572
        %v1605 = vunpack.c.l.b16 %v1573
        %v1606 = vunpack.c.l.b16 %v1574
        %v1607 = vunpack.c.l.b16 %v1575
        %v1608 = vunpack.c.l.b16 %v1576
        %v1609 = vunpack.c.l.b16 %v1577
        %v1610 = vunpack.c.l.b16 %v1578
        %v1611 = vunpack.c.l.b16 %v1579
        %v1612 = vunpack.c.l.b16 %v1580
        %v1613 = vunpack.c.l.b16 %v1581
        %v1614 = vunpack.c.l.b16 %v1582
        %v1615 = vpack.c.b16 %v1600, %v1599
        %v1616 = vpack.c.b16 %v1602, %v1601
        %v1617 = vpack.c.b16 %v1604, %v1603
        %v1618 = vpack.c.b16 %v1606, %v1605
        %v1619 = vpack.c.b16 %v1608, %v1607
        %v1620 = vpack.c.b16 %v1610, %v1609
        %v1621 = vpack.c.b16 %v1612, %v1611
        %v1622 = vpack.c.b16 %v1614, %v1613
        %1631 = vmatprep.subr.bf16.mxu0 0
        %1632 = vmatpush1.bf16.msra.mxu0 %v1615
        %1633 = vmatprep.subr.bf16.mxu0 0
        %1634 = vmatpush1.bf16.msra.mxu0 %v1616
        %1635 = vmatprep.subr.bf16.mxu0 0
        %1636 = vmatpush1.bf16.msra.mxu0 %v1617
        %1637 = vmatprep.subr.bf16.mxu0 0
        %1638 = vmatpush1.bf16.msra.mxu0 %v1618
        %1639 = vmatprep.subr.bf16.mxu0 0
        %1640 = vmatpush1.bf16.msra.mxu0 %v1619
        %1641 = vmatprep.subr.bf16.mxu0 0
        %1642 = vmatpush1.bf16.msra.mxu0 %v1620
        %1643 = vmatprep.subr.bf16.mxu0 0
        %1644 = vmatpush1.bf16.msra.mxu0 %v1621
        %1645 = vmatprep.subr.bf16.mxu0 0
        %1646 = vmatpush1.bf16.msra.mxu0 %v1622
        %1647 = vmatprep.subr.bf16.mxu0 0
        %1648 = vmatpush1.bf16.msra.mxu0 0
        %1649 = vmatprep.subr.bf16.mxu0 0
        %1650 = vmatpush1.bf16.msra.mxu0 0
        %1651 = vmatprep.subr.bf16.mxu0 0
        %1652 = vmatpush1.bf16.msra.mxu0 0
        %1653 = vmatprep.subr.bf16.mxu0 0
        %1654 = vmatpush1.bf16.msra.mxu0 0
        %1655 = vmatprep.subr.bf16.mxu0 0
        %1656 = vmatpush1.bf16.msra.mxu0 0
        %1657 = vmatprep.subr.bf16.mxu0 0
        %1658 = vmatpush1.bf16.msra.mxu0 0
        %1659 = vmatprep.subr.bf16.mxu0 0
        %1660 = vmatpush1.bf16.msra.mxu0 0
        %1661 = vmatprep.subr.bf16.mxu0 0
        %1662 = vmatpush1.bf16.msra.mxu0 0
        %1663 = vmatprep.mubr.bf16.mxu0 0
        %1664 = vmatmul.mubr.bf16.gmra.mrb[0].mxu0 %v1558
        %v1665 = vpop.f32.mrb[0].mxu0
        %v1666 = vadd.f32 0.0, %v1665
        %v1667 = vpop.f32.mrb[0].mxu0
        %v1668 = vpop.f32.mrb[0].mxu0
        %v1669 = vadd.f32 0.0, %v1668
        %v1670 = vpop.f32.mrb[0].mxu0
        %1671 = vmatprep.mubr.bf16.mxu0 0
        %1672 = vmatmul.mubr.bf16.gmra.mrb[0].mxu0 %v1559
        %v1673 = vpop.f32.mrb[0].mxu0
        %v1674 = vadd.f32 0.0, %v1673
        %v1675 = vpop.f32.mrb[0].mxu0
        %v1676 = vpop.f32.mrb[0].mxu0
        %v1677 = vadd.f32 0.0, %v1676
        %v1678 = vpop.f32.mrb[0].mxu0
        %1679 = vmatprep.mubr.bf16.mxu0 0
        %1680 = vmatmul.mubr.bf16.gmra.mrb[0].mxu0 %v1560
        %v1681 = vpop.f32.mrb[0].mxu0
        %v1682 = vadd.f32 0.0, %v1681
        %v1683 = vpop.f32.mrb[0].mxu0
        %v1684 = vpop.f32.mrb[0].mxu0
        %v1685 = vadd.f32 0.0, %v1684
        %v1686 = vpop.f32.mrb[0].mxu0
        %1687 = vmatprep.mubr.bf16.mxu0 0
        %1688 = vmatmul.mubr.bf16.gmra.mrb[0].mxu0 %v1561
        %v1689 = vpop.f32.mrb[0].mxu0
        %v1690 = vadd.f32 0.0, %v1689
        %v1691 = vpop.f32.mrb[0].mxu0
        %v1692 = vpop.f32.mrb[0].mxu0
        %v1693 = vadd.f32 0.0, %v1692
        %v1694 = vpop.f32.mrb[0].mxu0
        %1695 = vmatprep.mubr.bf16.mxu0 0
        %1696 = vmatmul.mubr.bf16.gmra.mrb[0].mxu0 %v1562
        %v1697 = vpop.f32.mrb[0].mxu0
        %v1698 = vadd.f32 0.0, %v1697
        %v1699 = vpop.f32.mrb[0].mxu0
        %v1700 = vpop.f32.mrb[0].mxu0
        %v1701 = vadd.f32 0.0, %v1700
        %v1702 = vpop.f32.mrb[0].mxu0
        %1703 = vmatprep.mubr.bf16.mxu0 0
        %1704 = vmatmul.mubr.bf16.gmra.mrb[0].mxu0 %v1563
        %v1705 = vpop.f32.mrb[0].mxu0
        %v1706 = vadd.f32 0.0, %v1705
        %v1707 = vpop.f32.mrb[0].mxu0
        %v1708 = vpop.f32.mrb[0].mxu0
        %v1709 = vadd.f32 0.0, %v1708
        %v1710 = vpop.f32.mrb[0].mxu0
        %1711 = vmatprep.mubr.bf16.mxu0 0
        %1712 = vmatmul.mubr.bf16.gmra.mrb[0].mxu0 %v1564
        %v1713 = vpop.f32.mrb[0].mxu0
        %v1714 = vadd.f32 0.0, %v1713
        %v1715 = vpop.f32.mrb[0].mxu0
        %v1716 = vpop.f32.mrb[0].mxu0
        %v1717 = vadd.f32 0.0, %v1716
        %v1718 = vpop.f32.mrb[0].mxu0
        %1719 = vmatprep.mubr.bf16.mxu0 0
        %1720 = vmatmul.mubr.bf16.gmra.mrb[0].mxu0 %v1565
        %v1721 = vpop.f32.mrb[0].mxu0
        %v1722 = vadd.f32 0.0, %v1721
        %v1723 = vpop.f32.mrb[0].mxu0
        %v1724 = vpop.f32.mrb[0].mxu0
        %v1725 = vadd.f32 0.0, %v1724
        %v1726 = vpop.f32.mrb[0].mxu0
        %1727 = vdwg.mxu0
        %v1728 = vadd.f32 %v1523, %v1666
        %v1729 = vadd.f32 %v1524, %v1669
        %v1730 = vadd.f32 %v1525, %v1674
        %v1731 = vadd.f32 %v1526, %v1677
        %v1732 = vadd.f32 %v1527, %v1682
        %v1733 = vadd.f32 %v1528, %v1685
        %v1734 = vadd.f32 %v1529, %v1690
        %v1735 = vadd.f32 %v1530, %v1693
        %v1736 = vadd.f32 %v1531, %v1698
        %v1737 = vadd.f32 %v1532, %v1701
        %v1738 = vadd.f32 %v1533, %v1706
        %v1739 = vadd.f32 %v1534, %v1709
        %v1740 = vadd.f32 %v1535, %v1714
        %v1741 = vadd.f32 %v1536, %v1717
        %v1742 = vadd.f32 %v1537, %v1722
        %v1743 = vadd.f32 %v1538, %v1725
        %v1744 = vld [vmem:[%s1541 + $0x1] sm:$0xff]
        %v1745 = vld [vmem:[%s1541 + $0x9] sm:$0xff]
        %v1746 = vld [vmem:[%s1541 + $0x19] sm:$0xff]
        %v1747 = vld [vmem:[%s1541 + $0x21] sm:$0xff]
        %v1748 = vld [vmem:[%s1541 + $0x31] sm:$0xff]
        %v1749 = vld [vmem:[%s1541 + $0x39] sm:$0xff]
        %v1750 = vld [vmem:[%s1541 + $0x49] sm:$0xff]
        %v1751 = vld [vmem:[%s1541 + $0x51] sm:$0xff]
        %v1752 = vld [vmem:[%s1541 + $0x61] sm:$0xff]
        %v1753 = vld [vmem:[%s1541 + $0x69] sm:$0xff]
        %v1754 = vld [vmem:[%s1541 + $0x79] sm:$0xff]
        %v1755 = vld [vmem:[%s1541 + $0x81] sm:$0xff]
        %v1756 = vld [vmem:[%s1541 + $0x91] sm:$0xff]
        %v1757 = vld [vmem:[%s1541 + $0x99] sm:$0xff]
        %v1758 = vld [vmem:[%s1541 + $0xa9] sm:$0xff]
        %v1759 = vld [vmem:[%s1541 + $0xb1] sm:$0xff]
        %v1760 = vpack.c.bf16 %v1745, %v1744
        %v1761 = vpack.c.bf16 %v1747, %v1746
        %v1762 = vpack.c.bf16 %v1749, %v1748
        %v1763 = vpack.c.bf16 %v1751, %v1750
        %v1764 = vpack.c.bf16 %v1753, %v1752
        %v1765 = vpack.c.bf16 %v1755, %v1754
        %v1766 = vpack.c.bf16 %v1757, %v1756
        %v1767 = vpack.c.bf16 %v1759, %v1758
        %s1768 = scalar_lea.vmem %s1, 448
        %v1769 = vld [vmem:[%s1768] sm:$0xf]
        %v1770 = vld [vmem:[%s1768 + $0x4] sm:$0xf]
        %v1771 = vld [vmem:[%s1768 + $0x8] sm:$0xf]
        %v1772 = vld [vmem:[%s1768 + $0xc] sm:$0xf]
        %v1773 = vld [vmem:[%s1768 + $0x10] sm:$0xf]
        %v1774 = vld [vmem:[%s1768 + $0x14] sm:$0xf]
        %v1775 = vld [vmem:[%s1768 + $0x18] sm:$0xf]
        %v1776 = vld [vmem:[%s1768 + $0x1c] sm:$0xf]
        %v1777 = vld [vmem:[%s1768 + $0x20] sm:$0xf]
        %v1778 = vld [vmem:[%s1768 + $0x24] sm:$0xf]
        %v1779 = vld [vmem:[%s1768 + $0x28] sm:$0xf]
        %v1780 = vld [vmem:[%s1768 + $0x2c] sm:$0xf]
        %v1781 = vld [vmem:[%s1768 + $0x30] sm:$0xf]
        %v1782 = vld [vmem:[%s1768 + $0x34] sm:$0xf]
        %v1783 = vld [vmem:[%s1768 + $0x38] sm:$0xf]
        %v1784 = vld [vmem:[%s1768 + $0x3c] sm:$0xf]
        %v1801 = vunpack.c.l.b16 %v1769
        %v1802 = vunpack.c.l.b16 %v1770
        %v1803 = vunpack.c.l.b16 %v1771
        %v1804 = vunpack.c.l.b16 %v1772
        %v1805 = vunpack.c.l.b16 %v1773
        %v1806 = vunpack.c.l.b16 %v1774
        %v1807 = vunpack.c.l.b16 %v1775
        %v1808 = vunpack.c.l.b16 %v1776
        %v1809 = vunpack.c.l.b16 %v1777
        %v1810 = vunpack.c.l.b16 %v1778
        %v1811 = vunpack.c.l.b16 %v1779
        %v1812 = vunpack.c.l.b16 %v1780
        %v1813 = vunpack.c.l.b16 %v1781
        %v1814 = vunpack.c.l.b16 %v1782
        %v1815 = vunpack.c.l.b16 %v1783
        %v1816 = vunpack.c.l.b16 %v1784
        %v1817 = vpack.c.b16 %v1802, %v1801
        %v1818 = vpack.c.b16 %v1804, %v1803
        %v1819 = vpack.c.b16 %v1806, %v1805
        %v1820 = vpack.c.b16 %v1808, %v1807
        %v1821 = vpack.c.b16 %v1810, %v1809
        %v1822 = vpack.c.b16 %v1812, %v1811
        %v1823 = vpack.c.b16 %v1814, %v1813
        %v1824 = vpack.c.b16 %v1816, %v1815
        %1833 = vmatprep.subr.bf16.mxu0 0
        %1834 = vmatpush1.bf16.msra.mxu0 %v1817
        %1835 = vmatprep.subr.bf16.mxu0 0
        %1836 = vmatpush1.bf16.msra.mxu0 %v1818
        %1837 = vmatprep.subr.bf16.mxu0 0
        %1838 = vmatpush1.bf16.msra.mxu0 %v1819
        %1839 = vmatprep.subr.bf16.mxu0 0
        %1840 = vmatpush1.bf16.msra.mxu0 %v1820
        %1841 = vmatprep.subr.bf16.mxu0 0
        %1842 = vmatpush1.bf16.msra.mxu0 %v1821
        %1843 = vmatprep.subr.bf16.mxu0 0
        %1844 = vmatpush1.bf16.msra.mxu0 %v1822
        %1845 = vmatprep.subr.bf16.mxu0 0
        %1846 = vmatpush1.bf16.msra.mxu0 %v1823
        %1847 = vmatprep.subr.bf16.mxu0 0
        %1848 = vmatpush1.bf16.msra.mxu0 %v1824
        %1849 = vmatprep.subr.bf16.mxu0 0
        %1850 = vmatpush1.bf16.msra.mxu0 0
        %1851 = vmatprep.subr.bf16.mxu0 0
        %1852 = vmatpush1.bf16.msra.mxu0 0
        %1853 = vmatprep.subr.bf16.mxu0 0
        %1854 = vmatpush1.bf16.msra.mxu0 0
        %1855 = vmatprep.subr.bf16.mxu0 0
        %1856 = vmatpush1.bf16.msra.mxu0 0
        %1857 = vmatprep.subr.bf16.mxu0 0
        %1858 = vmatpush1.bf16.msra.mxu0 0
        %1859 = vmatprep.subr.bf16.mxu0 0
        %1860 = vmatpush1.bf16.msra.mxu0 0
        %1861 = vmatprep.subr.bf16.mxu0 0
        %1862 = vmatpush1.bf16.msra.mxu0 0
        %1863 = vmatprep.subr.bf16.mxu0 0
        %1864 = vmatpush1.bf16.msra.mxu0 0
        %1865 = vmatprep.mubr.bf16.mxu0 0
        %1866 = vmatmul.mubr.bf16.gmra.mrb[0].mxu0 %v1760
        %v1867 = vpop.f32.mrb[0].mxu0
        %v1868 = vadd.f32 0.0, %v1867
        %v1869 = vpop.f32.mrb[0].mxu0
        %v1870 = vpop.f32.mrb[0].mxu0
        %v1871 = vadd.f32 0.0, %v1870
        %v1872 = vpop.f32.mrb[0].mxu0
        %1873 = vmatprep.mubr.bf16.mxu0 0
        %1874 = vmatmul.mubr.bf16.gmra.mrb[0].mxu0 %v1761
        %v1875 = vpop.f32.mrb[0].mxu0
        %v1876 = vadd.f32 0.0, %v1875
        %v1877 = vpop.f32.mrb[0].mxu0
        %v1878 = vpop.f32.mrb[0].mxu0
        %v1879 = vadd.f32 0.0, %v1878
        %v1880 = vpop.f32.mrb[0].mxu0
        %1881 = vmatprep.mubr.bf16.mxu0 0
        %1882 = vmatmul.mubr.bf16.gmra.mrb[0].mxu0 %v1762
        %v1883 = vpop.f32.mrb[0].mxu0
        %v1884 = vadd.f32 0.0, %v1883
        %v1885 = vpop.f32.mrb[0].mxu0
        %v1886 = vpop.f32.mrb[0].mxu0
        %v1887 = vadd.f32 0.0, %v1886
        %v1888 = vpop.f32.mrb[0].mxu0
        %1889 = vmatprep.mubr.bf16.mxu0 0
        %1890 = vmatmul.mubr.bf16.gmra.mrb[0].mxu0 %v1763
        %v1891 = vpop.f32.mrb[0].mxu0
        %v1892 = vadd.f32 0.0, %v1891
        %v1893 = vpop.f32.mrb[0].mxu0
        %v1894 = vpop.f32.mrb[0].mxu0
        %v1895 = vadd.f32 0.0, %v1894
        %v1896 = vpop.f32.mrb[0].mxu0
        %1897 = vmatprep.mubr.bf16.mxu0 0
        %1898 = vmatmul.mubr.bf16.gmra.mrb[0].mxu0 %v1764
        %v1899 = vpop.f32.mrb[0].mxu0
        %v1900 = vadd.f32 0.0, %v1899
        %v1901 = vpop.f32.mrb[0].mxu0
        %v1902 = vpop.f32.mrb[0].mxu0
        %v1903 = vadd.f32 0.0, %v1902
        %v1904 = vpop.f32.mrb[0].mxu0
        %1905 = vmatprep.mubr.bf16.mxu0 0
        %1906 = vmatmul.mubr.bf16.gmra.mrb[0].mxu0 %v1765
        %v1907 = vpop.f32.mrb[0].mxu0
        %v1908 = vadd.f32 0.0, %v1907
        %v1909 = vpop.f32.mrb[0].mxu0
        %v1910 = vpop.f32.mrb[0].mxu0
        %v1911 = vadd.f32 0.0, %v1910
        %v1912 = vpop.f32.mrb[0].mxu0
        %1913 = vmatprep.mubr.bf16.mxu0 0
        %1914 = vmatmul.mubr.bf16.gmra.mrb[0].mxu0 %v1766
        %v1915 = vpop.f32.mrb[0].mxu0
        %v1916 = vadd.f32 0.0, %v1915
        %v1917 = vpop.f32.mrb[0].mxu0
        %v1918 = vpop.f32.mrb[0].mxu0
        %v1919 = vadd.f32 0.0, %v1918
        %v1920 = vpop.f32.mrb[0].mxu0
        %1921 = vmatprep.mubr.bf16.mxu0 0
        %1922 = vmatmul.mubr.bf16.gmra.mrb[0].mxu0 %v1767
        %v1923 = vpop.f32.mrb[0].mxu0
        %v1924 = vadd.f32 0.0, %v1923
        %v1925 = vpop.f32.mrb[0].mxu0
        %v1926 = vpop.f32.mrb[0].mxu0
        %v1927 = vadd.f32 0.0, %v1926
        %v1928 = vpop.f32.mrb[0].mxu0
        %1929 = vdwg.mxu0
        %v1930 = vadd.f32 %v1728, %v1868
        %v1931 = vadd.f32 %v1729, %v1871
        %v1932 = vadd.f32 %v1730, %v1876
        %v1933 = vadd.f32 %v1731, %v1879
        %v1934 = vadd.f32 %v1732, %v1884
        %v1935 = vadd.f32 %v1733, %v1887
        %v1936 = vadd.f32 %v1734, %v1892
        %v1937 = vadd.f32 %v1735, %v1895
        %v1938 = vadd.f32 %v1736, %v1900
        %v1939 = vadd.f32 %v1737, %v1903
        %v1940 = vadd.f32 %v1738, %v1908
        %v1941 = vadd.f32 %v1739, %v1911
        %v1942 = vadd.f32 %v1740, %v1916
        %v1943 = vadd.f32 %v1741, %v1919
        %v1944 = vadd.f32 %v1742, %v1924
        %v1945 = vadd.f32 %v1743, %v1927
        %v1946 = vld [vmem:[%s1541 + $0x2] sm:$0xff]
        %v1947 = vld [vmem:[%s1541 + $0xa] sm:$0xff]
        %v1948 = vld [vmem:[%s1541 + $0x1a] sm:$0xff]
        %v1949 = vld [vmem:[%s1541 + $0x22] sm:$0xff]
        %v1950 = vld [vmem:[%s1541 + $0x32] sm:$0xff]
        %v1951 = vld [vmem:[%s1541 + $0x3a] sm:$0xff]
        %v1952 = vld [vmem:[%s1541 + $0x4a] sm:$0xff]
        %v1953 = vld [vmem:[%s1541 + $0x52] sm:$0xff]
        %v1954 = vld [vmem:[%s1541 + $0x62] sm:$0xff]
        %v1955 = vld [vmem:[%s1541 + $0x6a] sm:$0xff]
        %v1956 = vld [vmem:[%s1541 + $0x7a] sm:$0xff]
        %v1957 = vld [vmem:[%s1541 + $0x82] sm:$0xff]
        %v1958 = vld [vmem:[%s1541 + $0x92] sm:$0xff]
        %v1959 = vld [vmem:[%s1541 + $0x9a] sm:$0xff]
        %v1960 = vld [vmem:[%s1541 + $0xaa] sm:$0xff]
        %v1961 = vld [vmem:[%s1541 + $0xb2] sm:$0xff]
        %v1962 = vpack.c.bf16 %v1947, %v1946
        %v1963 = vpack.c.bf16 %v1949, %v1948
        %v1964 = vpack.c.bf16 %v1951, %v1950
        %v1965 = vpack.c.bf16 %v1953, %v1952
        %v1966 = vpack.c.bf16 %v1955, %v1954
        %v1967 = vpack.c.bf16 %v1957, %v1956
        %v1968 = vpack.c.bf16 %v1959, %v1958
        %v1969 = vpack.c.bf16 %v1961, %v1960
        %s1970 = scalar_lea.vmem %s1, 512
        %v1971 = vld [vmem:[%s1970] sm:$0xf]
        %v1972 = vld [vmem:[%s1970 + $0x4] sm:$0xf]
        %v1973 = vld [vmem:[%s1970 + $0x8] sm:$0xf]
        %v1974 = vld [vmem:[%s1970 + $0xc] sm:$0xf]
        %v1975 = vld [vmem:[%s1970 + $0x10] sm:$0xf]
        %v1976 = vld [vmem:[%s1970 + $0x14] sm:$0xf]
        %v1977 = vld [vmem:[%s1970 + $0x18] sm:$0xf]
        %v1978 = vld [vmem:[%s1970 + $0x1c] sm:$0xf]
        %v1979 = vld [vmem:[%s1970 + $0x20] sm:$0xf]
        %v1980 = vld [vmem:[%s1970 + $0x24] sm:$0xf]
        %v1981 = vld [vmem:[%s1970 + $0x28] sm:$0xf]
        %v1982 = vld [vmem:[%s1970 + $0x2c] sm:$0xf]
        %v1983 = vld [vmem:[%s1970 + $0x30] sm:$0xf]
        %v1984 = vld [vmem:[%s1970 + $0x34] sm:$0xf]
        %v1985 = vld [vmem:[%s1970 + $0x38] sm:$0xf]
        %v1986 = vld [vmem:[%s1970 + $0x3c] sm:$0xf]
        %v2003 = vunpack.c.l.b16 %v1971
        %v2004 = vunpack.c.l.b16 %v1972
        %v2005 = vunpack.c.l.b16 %v1973
        %v2006 = vunpack.c.l.b16 %v1974
        %v2007 = vunpack.c.l.b16 %v1975
        %v2008 = vunpack.c.l.b16 %v1976
        %v2009 = vunpack.c.l.b16 %v1977
        %v2010 = vunpack.c.l.b16 %v1978
        %v2011 = vunpack.c.l.b16 %v1979
        %v2012 = vunpack.c.l.b16 %v1980
        %v2013 = vunpack.c.l.b16 %v1981
        %v2014 = vunpack.c.l.b16 %v1982
        %v2015 = vunpack.c.l.b16 %v1983
        %v2016 = vunpack.c.l.b16 %v1984
        %v2017 = vunpack.c.l.b16 %v1985
        %v2018 = vunpack.c.l.b16 %v1986
        %v2019 = vpack.c.b16 %v2004, %v2003
        %v2020 = vpack.c.b16 %v2006, %v2005
        %v2021 = vpack.c.b16 %v2008, %v2007
        %v2022 = vpack.c.b16 %v2010, %v2009
        %v2023 = vpack.c.b16 %v2012, %v2011
        %v2024 = vpack.c.b16 %v2014, %v2013
        %v2025 = vpack.c.b16 %v2016, %v2015
        %v2026 = vpack.c.b16 %v2018, %v2017
        %2035 = vmatprep.subr.bf16.mxu0 0
        %2036 = vmatpush1.bf16.msra.mxu0 %v2019
        %2037 = vmatprep.subr.bf16.mxu0 0
        %2038 = vmatpush1.bf16.msra.mxu0 %v2020
        %2039 = vmatprep.subr.bf16.mxu0 0
        %2040 = vmatpush1.bf16.msra.mxu0 %v2021
        %2041 = vmatprep.subr.bf16.mxu0 0
        %2042 = vmatpush1.bf16.msra.mxu0 %v2022
        %2043 = vmatprep.subr.bf16.mxu0 0
        %2044 = vmatpush1.bf16.msra.mxu0 %v2023
        %2045 = vmatprep.subr.bf16.mxu0 0
        %2046 = vmatpush1.bf16.msra.mxu0 %v2024
        %2047 = vmatprep.subr.bf16.mxu0 0
        %2048 = vmatpush1.bf16.msra.mxu0 %v2025
        %2049 = vmatprep.subr.bf16.mxu0 0
        %2050 = vmatpush1.bf16.msra.mxu0 %v2026
        %2051 = vmatprep.subr.bf16.mxu0 0
        %2052 = vmatpush1.bf16.msra.mxu0 0
        %2053 = vmatprep.subr.bf16.mxu0 0
        %2054 = vmatpush1.bf16.msra.mxu0 0
        %2055 = vmatprep.subr.bf16.mxu0 0
        %2056 = vmatpush1.bf16.msra.mxu0 0
        %2057 = vmatprep.subr.bf16.mxu0 0
        %2058 = vmatpush1.bf16.msra.mxu0 0
        %2059 = vmatprep.subr.bf16.mxu0 0
        %2060 = vmatpush1.bf16.msra.mxu0 0
        %2061 = vmatprep.subr.bf16.mxu0 0
        %2062 = vmatpush1.bf16.msra.mxu0 0
        %2063 = vmatprep.subr.bf16.mxu0 0
        %2064 = vmatpush1.bf16.msra.mxu0 0
        %2065 = vmatprep.subr.bf16.mxu0 0
        %2066 = vmatpush1.bf16.msra.mxu0 0
        %2067 = vmatprep.mubr.bf16.mxu0 0
        %2068 = vmatmul.mubr.bf16.gmra.mrb[0].mxu0 %v1962
        %v2069 = vpop.f32.mrb[0].mxu0
        %v2070 = vadd.f32 0.0, %v2069
        %v2071 = vpop.f32.mrb[0].mxu0
        %v2072 = vpop.f32.mrb[0].mxu0
        %v2073 = vadd.f32 0.0, %v2072
        %v2074 = vpop.f32.mrb[0].mxu0
        %2075 = vmatprep.mubr.bf16.mxu0 0
        %2076 = vmatmul.mubr.bf16.gmra.mrb[0].mxu0 %v1963
        %v2077 = vpop.f32.mrb[0].mxu0
        %v2078 = vadd.f32 0.0, %v2077
        %v2079 = vpop.f32.mrb[0].mxu0
        %v2080 = vpop.f32.mrb[0].mxu0
        %v2081 = vadd.f32 0.0, %v2080
        %v2082 = vpop.f32.mrb[0].mxu0
        %2083 = vmatprep.mubr.bf16.mxu0 0
        %2084 = vmatmul.mubr.bf16.gmra.mrb[0].mxu0 %v1964
        %v2085 = vpop.f32.mrb[0].mxu0
        %v2086 = vadd.f32 0.0, %v2085
        %v2087 = vpop.f32.mrb[0].mxu0
        %v2088 = vpop.f32.mrb[0].mxu0
        %v2089 = vadd.f32 0.0, %v2088
        %v2090 = vpop.f32.mrb[0].mxu0
        %2091 = vmatprep.mubr.bf16.mxu0 0
        %2092 = vmatmul.mubr.bf16.gmra.mrb[0].mxu0 %v1965
        %v2093 = vpop.f32.mrb[0].mxu0
        %v2094 = vadd.f32 0.0, %v2093
        %v2095 = vpop.f32.mrb[0].mxu0
        %v2096 = vpop.f32.mrb[0].mxu0
        %v2097 = vadd.f32 0.0, %v2096
        %v2098 = vpop.f32.mrb[0].mxu0
        %2099 = vmatprep.mubr.bf16.mxu0 0
        %2100 = vmatmul.mubr.bf16.gmra.mrb[0].mxu0 %v1966
        %v2101 = vpop.f32.mrb[0].mxu0
        %v2102 = vadd.f32 0.0, %v2101
        %v2103 = vpop.f32.mrb[0].mxu0
        %v2104 = vpop.f32.mrb[0].mxu0
        %v2105 = vadd.f32 0.0, %v2104
        %v2106 = vpop.f32.mrb[0].mxu0
        %2107 = vmatprep.mubr.bf16.mxu0 0
        %2108 = vmatmul.mubr.bf16.gmra.mrb[0].mxu0 %v1967
        %v2109 = vpop.f32.mrb[0].mxu0
        %v2110 = vadd.f32 0.0, %v2109
        %v2111 = vpop.f32.mrb[0].mxu0
        %v2112 = vpop.f32.mrb[0].mxu0
        %v2113 = vadd.f32 0.0, %v2112
        %v2114 = vpop.f32.mrb[0].mxu0
        %2115 = vmatprep.mubr.bf16.mxu0 0
        %2116 = vmatmul.mubr.bf16.gmra.mrb[0].mxu0 %v1968
        %v2117 = vpop.f32.mrb[0].mxu0
        %v2118 = vadd.f32 0.0, %v2117
        %v2119 = vpop.f32.mrb[0].mxu0
        %v2120 = vpop.f32.mrb[0].mxu0
        %v2121 = vadd.f32 0.0, %v2120
        %v2122 = vpop.f32.mrb[0].mxu0
        %2123 = vmatprep.mubr.bf16.mxu0 0
        %2124 = vmatmul.mubr.bf16.gmra.mrb[0].mxu0 %v1969
        %v2125 = vpop.f32.mrb[0].mxu0
        %v2126 = vadd.f32 0.0, %v2125
        %v2127 = vpop.f32.mrb[0].mxu0
        %v2128 = vpop.f32.mrb[0].mxu0
        %v2129 = vadd.f32 0.0, %v2128
        %v2130 = vpop.f32.mrb[0].mxu0
        %2131 = vdwg.mxu0
        %v2132 = vadd.f32 %v1930, %v2070
        %v2133 = vadd.f32 %v1931, %v2073
        %v2134 = vadd.f32 %v1932, %v2078
        %v2135 = vadd.f32 %v1933, %v2081
        %v2136 = vadd.f32 %v1934, %v2086
        %v2137 = vadd.f32 %v1935, %v2089
        %v2138 = vadd.f32 %v1936, %v2094
        %v2139 = vadd.f32 %v1937, %v2097
        %v2140 = vadd.f32 %v1938, %v2102
        %v2141 = vadd.f32 %v1939, %v2105
        %v2142 = vadd.f32 %v1940, %v2110
        %v2143 = vadd.f32 %v1941, %v2113
        %v2144 = vadd.f32 %v1942, %v2118
        %v2145 = vadd.f32 %v1943, %v2121
        %v2146 = vadd.f32 %v1944, %v2126
        %v2147 = vadd.f32 %v1945, %v2129
        %v2148 = vld [vmem:[%s2] sm:$0x1]
        %v2150 = vlaneseq
        %v2151 = vshrl.u32 %v2150, 7
        %v2152 = vsub.s32 0, %v2151
        %v2153 = vrot.slane %v2148, %v2152
        %v2155 = vadd.f32 %v2132, %v2153
        %v2156 = vadd.f32 %v2133, %v2153
        %v2157 = vadd.f32 %v2134, %v2153
        %v2158 = vadd.f32 %v2135, %v2153
        %v2159 = vadd.f32 %v2136, %v2153
        %v2160 = vadd.f32 %v2137, %v2153
        %v2161 = vadd.f32 %v2138, %v2153
        %v2162 = vadd.f32 %v2139, %v2153
        %v2163 = vadd.f32 %v2140, %v2153
        %v2164 = vadd.f32 %v2141, %v2153
        %v2165 = vadd.f32 %v2142, %v2153
        %v2166 = vadd.f32 %v2143, %v2153
        %v2167 = vadd.f32 %v2144, %v2153
        %v2168 = vadd.f32 %v2145, %v2153
        %v2169 = vadd.f32 %v2146, %v2153
        %v2170 = vadd.f32 %v2147, %v2153
        %v2171 = vmax.f32 %v2155, 0.0
        %v2172 = vmax.f32 %v2156, 0.0
        %v2173 = vmax.f32 %v2157, 0.0
        %v2174 = vmax.f32 %v2158, 0.0
        %v2175 = vmax.f32 %v2159, 0.0
        %v2176 = vmax.f32 %v2160, 0.0
        %v2177 = vmax.f32 %v2161, 0.0
        %v2178 = vmax.f32 %v2162, 0.0
        %v2179 = vmax.f32 %v2163, 0.0
        %v2180 = vmax.f32 %v2164, 0.0
        %v2181 = vmax.f32 %v2165, 0.0
        %v2182 = vmax.f32 %v2166, 0.0
        %v2183 = vmax.f32 %v2167, 0.0
        %v2184 = vmax.f32 %v2168, 0.0
        %v2185 = vmax.f32 %v2169, 0.0
        %v2186 = vmax.f32 %v2170, 0.0
        %v2187 = vpack.c.bf16 %v2172, %v2171
        %v2188 = vpack.c.bf16 %v2174, %v2173
        %v2189 = vpack.c.bf16 %v2176, %v2175
        %v2190 = vpack.c.bf16 %v2178, %v2177
        %v2191 = vpack.c.bf16 %v2180, %v2179
        %v2192 = vpack.c.bf16 %v2182, %v2181
        %v2193 = vpack.c.bf16 %v2184, %v2183
        %v2194 = vpack.c.bf16 %v2186, %v2185
        %v2203 = vunpack.c.l.b16 %v2187
        %v2204 = vunpack.c.h.b16 %v2187
        %v2205 = vunpack.c.l.b16 %v2188
        %v2206 = vunpack.c.h.b16 %v2188
        %v2207 = vunpack.c.l.b16 %v2189
        %v2208 = vunpack.c.h.b16 %v2189
        %v2209 = vunpack.c.l.b16 %v2190
        %v2210 = vunpack.c.h.b16 %v2190
        %v2211 = vunpack.c.l.b16 %v2191
        %v2212 = vunpack.c.h.b16 %v2191
        %v2213 = vunpack.c.l.b16 %v2192
        %v2214 = vunpack.c.h.b16 %v2192
        %v2215 = vunpack.c.l.b16 %v2193
        %v2216 = vunpack.c.h.b16 %v2193
        %v2217 = vunpack.c.l.b16 %v2194
        %v2218 = vunpack.c.h.b16 %v2194
        %v2219 = vpack.c.b16 %v2203, %v2203
        %v2220 = vpack.c.b16 %v2204, %v2204
        %v2221 = vpack.c.b16 %v2205, %v2205
        %v2222 = vpack.c.b16 %v2206, %v2206
        %v2223 = vpack.c.b16 %v2207, %v2207
        %v2224 = vpack.c.b16 %v2208, %v2208
        %v2225 = vpack.c.b16 %v2209, %v2209
        %v2226 = vpack.c.b16 %v2210, %v2210
        %v2227 = vpack.c.b16 %v2211, %v2211
        %v2228 = vpack.c.b16 %v2212, %v2212
        %v2229 = vpack.c.b16 %v2213, %v2213
        %v2230 = vpack.c.b16 %v2214, %v2214
        %v2231 = vpack.c.b16 %v2215, %v2215
        %v2232 = vpack.c.b16 %v2216, %v2216
        %v2233 = vpack.c.b16 %v2217, %v2217
        %v2234 = vpack.c.b16 %v2218, %v2218
        %vm2235 = vsmask.f32 4368
        %vm2236 = vmor %vm234, %vm2235
        %v2238 = vshrl.u32 %v2219, 16
        %v2240 = vrot.slane %v2238, 7
        %v2241 = vshll.u32 %v2219, 16
        %v2243 = vor.u32 %v2240, %v2241
        %v2244 = vrot.slane %v2240, 4
        %v2246 = vshrl.u32 %v2220, 16
        %v2248 = vrot.slane %v2246, 7
        %v2249 = vshll.u32 %v2220, 16
        %v2251 = vor.u32 %v2248, %v2249
        %v2252 = vsel %vm2236, %v2244, %v2251
        %v2253 = vrot.slane %v2248, 4
        %v2255 = vshrl.u32 %v2221, 16
        %v2257 = vrot.slane %v2255, 7
        %v2258 = vshll.u32 %v2221, 16
        %v2260 = vor.u32 %v2257, %v2258
        %v2261 = vrot.slane %v2257, 4
        %v2263 = vshrl.u32 %v2222, 16
        %v2265 = vrot.slane %v2263, 7
        %v2266 = vshll.u32 %v2222, 16
        %v2268 = vor.u32 %v2265, %v2266
        %v2269 = vsel %vm2236, %v2261, %v2268
        %v2270 = vrot.slane %v2265, 4
        %v2272 = vshrl.u32 %v2223, 16
        %v2274 = vrot.slane %v2272, 7
        %v2275 = vshll.u32 %v2223, 16
        %v2277 = vor.u32 %v2274, %v2275
        %v2278 = vrot.slane %v2274, 4
        %v2280 = vshrl.u32 %v2224, 16
        %v2282 = vrot.slane %v2280, 7
        %v2283 = vshll.u32 %v2224, 16
        %v2285 = vor.u32 %v2282, %v2283
        %v2286 = vsel %vm2236, %v2278, %v2285
        %v2287 = vrot.slane %v2282, 4
        %v2289 = vshrl.u32 %v2225, 16
        %v2291 = vrot.slane %v2289, 7
        %v2292 = vshll.u32 %v2225, 16
        %v2294 = vor.u32 %v2291, %v2292
        %v2295 = vrot.slane %v2291, 4
        %v2297 = vshrl.u32 %v2226, 16
        %v2299 = vrot.slane %v2297, 7
        %v2300 = vshll.u32 %v2226, 16
        %v2302 = vor.u32 %v2299, %v2300
        %v2303 = vsel %vm2236, %v2295, %v2302
        %v2304 = vrot.slane %v2299, 4
        %v2306 = vshrl.u32 %v2227, 16
        %v2308 = vrot.slane %v2306, 7
        %v2309 = vshll.u32 %v2227, 16
        %v2311 = vor.u32 %v2308, %v2309
        %v2312 = vrot.slane %v2308, 4
        %v2314 = vshrl.u32 %v2228, 16
        %v2316 = vrot.slane %v2314, 7
        %v2317 = vshll.u32 %v2228, 16
        %v2319 = vor.u32 %v2316, %v2317
        %v2320 = vsel %vm2236, %v2312, %v2319
        %v2321 = vrot.slane %v2316, 4
        %v2323 = vshrl.u32 %v2229, 16
        %v2325 = vrot.slane %v2323, 7
        %v2326 = vshll.u32 %v2229, 16
        %v2328 = vor.u32 %v2325, %v2326
        %v2329 = vrot.slane %v2325, 4
        %v2331 = vshrl.u32 %v2230, 16
        %v2333 = vrot.slane %v2331, 7
        %v2334 = vshll.u32 %v2230, 16
        %v2336 = vor.u32 %v2333, %v2334
        %v2337 = vsel %vm2236, %v2329, %v2336
        %v2338 = vrot.slane %v2333, 4
        %v2340 = vshrl.u32 %v2231, 16
        %v2342 = vrot.slane %v2340, 7
        %v2343 = vshll.u32 %v2231, 16
        %v2345 = vor.u32 %v2342, %v2343
        %v2346 = vrot.slane %v2342, 4
        %v2348 = vshrl.u32 %v2232, 16
        %v2350 = vrot.slane %v2348, 7
        %v2351 = vshll.u32 %v2232, 16
        %v2353 = vor.u32 %v2350, %v2351
        %v2354 = vsel %vm2236, %v2346, %v2353
        %v2355 = vrot.slane %v2350, 4
        %v2357 = vshrl.u32 %v2233, 16
        %v2359 = vrot.slane %v2357, 7
        %v2360 = vshll.u32 %v2233, 16
        %v2362 = vor.u32 %v2359, %v2360
        %v2363 = vrot.slane %v2359, 4
        %v2365 = vshrl.u32 %v2234, 16
        %v2367 = vrot.slane %v2365, 7
        %v2368 = vshll.u32 %v2234, 16
        %v2370 = vor.u32 %v2367, %v2368
        %v2371 = vsel %vm2236, %v2363, %v2370
        %v2372 = vrot.slane %v2367, 4
        %s2397 = smul.u32 %s930, 3
        %s2398 = smul.addr %s2397, 4
        %s2399 = scalar_lea.vmem [#allocation2], %s2398
        %vm2400 = vcmask 1043456
        %vm2401 = vmand %vm2400, %vm290
        %v2402 = vld [vmem:[%s2399] sm:$0xf]
        %v2403 = vsel %vm2401, %v2243, %v2402
        %2404 = vst [vmem:[%s2399] sm:$0xf] %v2403
        %2405 = vst [vmem:[%s2399 + $0x4] sm:$0xf] %v2252
        %v2406 = vld [vmem:[%s2399 + $0x8] sm:$0x1]
        %v2407 = vsel %vm235, %v2253, %v2406
        %2408 = vst [vmem:[%s2399 + $0x8] sm:$0x1] %v2407
        %v2409 = vld [vmem:[%s2399 + $0xc] sm:$0xf]
        %v2410 = vsel %vm2401, %v2260, %v2409
        %2411 = vst [vmem:[%s2399 + $0xc] sm:$0xf] %v2410
        %2412 = vst [vmem:[%s2399 + $0x10] sm:$0xf] %v2269
        %v2413 = vld [vmem:[%s2399 + $0x14] sm:$0x1]
        %v2414 = vsel %vm235, %v2270, %v2413
        %2415 = vst [vmem:[%s2399 + $0x14] sm:$0x1] %v2414
        %v2416 = vld [vmem:[%s2399 + $0x18] sm:$0xf]
        %v2417 = vsel %vm2401, %v2277, %v2416
        %2418 = vst [vmem:[%s2399 + $0x18] sm:$0xf] %v2417
        %2419 = vst [vmem:[%s2399 + $0x1c] sm:$0xf] %v2286
        %v2420 = vld [vmem:[%s2399 + $0x20] sm:$0x1]
        %v2421 = vsel %vm235, %v2287, %v2420
        %2422 = vst [vmem:[%s2399 + $0x20] sm:$0x1] %v2421
        %v2423 = vld [vmem:[%s2399 + $0x24] sm:$0xf]
        %v2424 = vsel %vm2401, %v2294, %v2423
        %2425 = vst [vmem:[%s2399 + $0x24] sm:$0xf] %v2424
        %2426 = vst [vmem:[%s2399 + $0x28] sm:$0xf] %v2303
        %v2427 = vld [vmem:[%s2399 + $0x2c] sm:$0x1]
        %v2428 = vsel %vm235, %v2304, %v2427
        %2429 = vst [vmem:[%s2399 + $0x2c] sm:$0x1] %v2428
        %v2430 = vld [vmem:[%s2399 + $0x30] sm:$0xf]
        %v2431 = vsel %vm2401, %v2311, %v2430
        %2432 = vst [vmem:[%s2399 + $0x30] sm:$0xf] %v2431
        %2433 = vst [vmem:[%s2399 + $0x34] sm:$0xf] %v2320
        %v2434 = vld [vmem:[%s2399 + $0x38] sm:$0x1]
        %v2435 = vsel %vm235, %v2321, %v2434
        %2436 = vst [vmem:[%s2399 + $0x38] sm:$0x1] %v2435
        %v2437 = vld [vmem:[%s2399 + $0x3c] sm:$0xf]
        %v2438 = vsel %vm2401, %v2328, %v2437
        %2439 = vst [vmem:[%s2399 + $0x3c] sm:$0xf] %v2438
        %2440 = vst [vmem:[%s2399 + $0x40] sm:$0xf] %v2337
        %v2441 = vld [vmem:[%s2399 + $0x44] sm:$0x1]
        %v2442 = vsel %vm235, %v2338, %v2441
        %2443 = vst [vmem:[%s2399 + $0x44] sm:$0x1] %v2442
        %v2444 = vld [vmem:[%s2399 + $0x48] sm:$0xf]
        %v2445 = vsel %vm2401, %v2345, %v2444
        %2446 = vst [vmem:[%s2399 + $0x48] sm:$0xf] %v2445
        %2447 = vst [vmem:[%s2399 + $0x4c] sm:$0xf] %v2354
        %v2448 = vld [vmem:[%s2399 + $0x50] sm:$0x1]
        %v2449 = vsel %vm235, %v2355, %v2448
        %2450 = vst [vmem:[%s2399 + $0x50] sm:$0x1] %v2449
        %v2451 = vld [vmem:[%s2399 + $0x54] sm:$0xf]
        %v2452 = vsel %vm2401, %v2362, %v2451
        %2453 = vst [vmem:[%s2399 + $0x54] sm:$0xf] %v2452
        %2454 = vst [vmem:[%s2399 + $0x58] sm:$0xf] %v2371
        %v2455 = vld [vmem:[%s2399 + $0x5c] sm:$0x1]
        %v2456 = vsel %vm235, %v2372, %v2455
        %2457 = vst [vmem:[%s2399 + $0x5c] sm:$0x1] %v2456
      $region45: #{basic_block_forward.1} parent=39 // loop_footer
        %s351 = sadd.s32 1, %s347
      $region46: #{basic_block_forward.1} parent=39 // loop_footer_branch
        %346 = sbr.rel target = $region42
      $region47: #{basic_block_forward.1} parent=39 // loop_exit
        _
      loop: start=0, step=1, limit=2
      $region48: #{basic_block_forward.1} parent=39 // loop_pre_header
        _
      $region49: #{basic_block_forward.1} parent=39 // loop_header
        %s2459 = sphi 0, %s2463
        %p2460 = scmp.ge.s32.totalorder %s2459, 2
      $region50: #{basic_block_forward.1} parent=39 // loop_header_branch
        %2462 = sbr.rel (%p2460) target = $region54
      $region51: #{basic_block_forward.1} parent=39 // loop_body
        %s2464 = smul.u32 %s2459, 8
        %p2465 = scmp.lt.s32.totalorder %s2464, 8
        %s2466 = scalar_select %p2465, %s2464, 8
        %s2467 = smul.u32 %s2466, 3
        %s2468 = smul.addr %s2467, 4
        %s2469 = scalar_lea.vmem [#allocation2], %s2468
        %v2470 = vld [vmem:[%s2469] sm:$0xf]
        %v2471 = vld [vmem:[%s2469 + $0x4] sm:$0xf]
        %v2472 = vld [vmem:[%s2469 + $0xc] sm:$0xf]
        %v2473 = vld [vmem:[%s2469 + $0x10] sm:$0xf]
        %v2474 = vld [vmem:[%s2469 + $0x18] sm:$0xf]
        %v2475 = vld [vmem:[%s2469 + $0x1c] sm:$0xf]
        %v2476 = vld [vmem:[%s2469 + $0x24] sm:$0xf]
        %v2477 = vld [vmem:[%s2469 + $0x28] sm:$0xf]
        %v2478 = vld [vmem:[%s2469 + $0x30] sm:$0xf]
        %v2479 = vld [vmem:[%s2469 + $0x34] sm:$0xf]
        %v2480 = vld [vmem:[%s2469 + $0x3c] sm:$0xf]
        %v2481 = vld [vmem:[%s2469 + $0x40] sm:$0xf]
        %v2482 = vld [vmem:[%s2469 + $0x48] sm:$0xf]
        %v2483 = vld [vmem:[%s2469 + $0x4c] sm:$0xf]
        %v2484 = vld [vmem:[%s2469 + $0x54] sm:$0xf]
        %v2485 = vld [vmem:[%s2469 + $0x58] sm:$0xf]
        %v2486 = vld [vmem:[%s3] sm:$0xf]
        %v2487 = vld [vmem:[%s3 + $0x4] sm:$0xf]
        %v2488 = vld [vmem:[%s3 + $0x8] sm:$0xf]
        %v2489 = vld [vmem:[%s3 + $0xc] sm:$0xf]
        %v2490 = vld [vmem:[%s3 + $0x10] sm:$0xf]
        %v2491 = vld [vmem:[%s3 + $0x14] sm:$0xf]
        %v2492 = vld [vmem:[%s3 + $0x18] sm:$0xf]
        %v2493 = vld [vmem:[%s3 + $0x1c] sm:$0xf]
        %v2494 = vld [vmem:[%s3 + $0x20] sm:$0xf]
        %v2495 = vld [vmem:[%s3 + $0x24] sm:$0xf]
        %v2496 = vld [vmem:[%s3 + $0x28] sm:$0xf]
        %v2497 = vld [vmem:[%s3 + $0x2c] sm:$0xf]
        %v2498 = vld [vmem:[%s3 + $0x30] sm:$0xf]
        %v2499 = vld [vmem:[%s3 + $0x34] sm:$0xf]
        %v2500 = vld [vmem:[%s3 + $0x38] sm:$0xf]
        %v2501 = vld [vmem:[%s3 + $0x3c] sm:$0xf]
        %v2502 = vld [vmem:[%s2469 + $0x8] sm:$0x1]
        %v2503 = vld [vmem:[%s2469 + $0x14] sm:$0x1]
        %v2504 = vld [vmem:[%s2469 + $0x20] sm:$0x1]
        %v2505 = vld [vmem:[%s2469 + $0x2c] sm:$0x1]
        %v2506 = vld [vmem:[%s2469 + $0x38] sm:$0x1]
        %v2507 = vld [vmem:[%s2469 + $0x44] sm:$0x1]
        %v2508 = vld [vmem:[%s2469 + $0x50] sm:$0x1]
        %v2509 = vld [vmem:[%s2469 + $0x5c] sm:$0x1]
        %vm2510 = vsmask.f32 3328
        %vm2511 = vsmask.f32 7440
        %vm2512 = vmor %vm2510, %vm2511
        %v2514 = vshrl.u32 %v2470, 16
        %v2516 = vrot.slane %v2514, 4
        %v2517 = vshll.u32 %v2470, 16
        %v2519 = vrot.slane %v2517, 5
        %v2520 = vor.u32 %v2516, %v2519
        %v2521 = vrot.slane %v2520, 4
        %v2523 = vshll.u32 %v2471, 16
        %v2525 = vrot.slane %v2523, 5
        %v2526 = vsel %vm2512, %v2521, %v2525
        %v2527 = vshrl.u32 %v2471, 16
        %v2529 = vrot.slane %v2527, 4
        %v2530 = vor.u32 %v2529, %v2525
        %v2531 = vrot.slane %v2530, 4
        %v2533 = vshll.u32 %v2502, 16
        %v2535 = vrot.slane %v2533, 5
        %v2536 = vsel %vm2512, %v2531, %v2535
        %v2538 = vshrl.u32 %v2472, 16
        %v2540 = vrot.slane %v2538, 4
        %v2541 = vshll.u32 %v2472, 16
        %v2543 = vrot.slane %v2541, 5
        %v2544 = vor.u32 %v2540, %v2543
        %v2545 = vrot.slane %v2544, 4
        %v2547 = vshll.u32 %v2473, 16
        %v2549 = vrot.slane %v2547, 5
        %v2550 = vsel %vm2512, %v2545, %v2549
        %v2551 = vshrl.u32 %v2473, 16
        %v2553 = vrot.slane %v2551, 4
        %v2554 = vor.u32 %v2553, %v2549
        %v2555 = vrot.slane %v2554, 4
        %v2557 = vshll.u32 %v2503, 16
        %v2559 = vrot.slane %v2557, 5
        %v2560 = vsel %vm2512, %v2555, %v2559
        %v2562 = vshrl.u32 %v2474, 16
        %v2564 = vrot.slane %v2562, 4
        %v2565 = vshll.u32 %v2474, 16
        %v2567 = vrot.slane %v2565, 5
        %v2568 = vor.u32 %v2564, %v2567
        %v2569 = vrot.slane %v2568, 4
        %v2571 = vshll.u32 %v2475, 16
        %v2573 = vrot.slane %v2571, 5
        %v2574 = vsel %vm2512, %v2569, %v2573
        %v2575 = vshrl.u32 %v2475, 16
        %v2577 = vrot.slane %v2575, 4
        %v2578 = vor.u32 %v2577, %v2573
        %v2579 = vrot.slane %v2578, 4
        %v2581 = vshll.u32 %v2504, 16
        %v2583 = vrot.slane %v2581, 5
        %v2584 = vsel %vm2512, %v2579, %v2583
        %v2586 = vshrl.u32 %v2476, 16
        %v2588 = vrot.slane %v2586, 4
        %v2589 = vshll.u32 %v2476, 16
        %v2591 = vrot.slane %v2589, 5
        %v2592 = vor.u32 %v2588, %v2591
        %v2593 = vrot.slane %v2592, 4
        %v2595 = vshll.u32 %v2477, 16
        %v2597 = vrot.slane %v2595, 5
        %v2598 = vsel %vm2512, %v2593, %v2597
        %v2599 = vshrl.u32 %v2477, 16
        %v2601 = vrot.slane %v2599, 4
        %v2602 = vor.u32 %v2601, %v2597
        %v2603 = vrot.slane %v2602, 4
        %v2605 = vshll.u32 %v2505, 16
        %v2607 = vrot.slane %v2605, 5
        %v2608 = vsel %vm2512, %v2603, %v2607
        %v2610 = vshrl.u32 %v2478, 16
        %v2612 = vrot.slane %v2610, 4
        %v2613 = vshll.u32 %v2478, 16
        %v2615 = vrot.slane %v2613, 5
        %v2616 = vor.u32 %v2612, %v2615
        %v2617 = vrot.slane %v2616, 4
        %v2619 = vshll.u32 %v2479, 16
        %v2621 = vrot.slane %v2619, 5
        %v2622 = vsel %vm2512, %v2617, %v2621
        %v2623 = vshrl.u32 %v2479, 16
        %v2625 = vrot.slane %v2623, 4
        %v2626 = vor.u32 %v2625, %v2621
        %v2627 = vrot.slane %v2626, 4
        %v2629 = vshll.u32 %v2506, 16
        %v2631 = vrot.slane %v2629, 5
        %v2632 = vsel %vm2512, %v2627, %v2631
        %v2634 = vshrl.u32 %v2480, 16
        %v2636 = vrot.slane %v2634, 4
        %v2637 = vshll.u32 %v2480, 16
        %v2639 = vrot.slane %v2637, 5
        %v2640 = vor.u32 %v2636, %v2639
        %v2641 = vrot.slane %v2640, 4
        %v2643 = vshll.u32 %v2481, 16
        %v2645 = vrot.slane %v2643, 5
        %v2646 = vsel %vm2512, %v2641, %v2645
        %v2647 = vshrl.u32 %v2481, 16
        %v2649 = vrot.slane %v2647, 4
        %v2650 = vor.u32 %v2649, %v2645
        %v2651 = vrot.slane %v2650, 4
        %v2653 = vshll.u32 %v2507, 16
        %v2655 = vrot.slane %v2653, 5
        %v2656 = vsel %vm2512, %v2651, %v2655
        %v2658 = vshrl.u32 %v2482, 16
        %v2660 = vrot.slane %v2658, 4
        %v2661 = vshll.u32 %v2482, 16
        %v2663 = vrot.slane %v2661, 5
        %v2664 = vor.u32 %v2660, %v2663
        %v2665 = vrot.slane %v2664, 4
        %v2667 = vshll.u32 %v2483, 16
        %v2669 = vrot.slane %v2667, 5
        %v2670 = vsel %vm2512, %v2665, %v2669
        %v2671 = vshrl.u32 %v2483, 16
        %v2673 = vrot.slane %v2671, 4
        %v2674 = vor.u32 %v2673, %v2669
        %v2675 = vrot.slane %v2674, 4
        %v2677 = vshll.u32 %v2508, 16
        %v2679 = vrot.slane %v2677, 5
        %v2680 = vsel %vm2512, %v2675, %v2679
        %v2682 = vshrl.u32 %v2484, 16
        %v2684 = vrot.slane %v2682, 4
        %v2685 = vshll.u32 %v2484, 16
        %v2687 = vrot.slane %v2685, 5
        %v2688 = vor.u32 %v2684, %v2687
        %v2689 = vrot.slane %v2688, 4
        %v2691 = vshll.u32 %v2485, 16
        %v2693 = vrot.slane %v2691, 5
        %v2694 = vsel %vm2512, %v2689, %v2693
        %v2695 = vshrl.u32 %v2485, 16
        %v2697 = vrot.slane %v2695, 4
        %v2698 = vor.u32 %v2697, %v2693
        %v2699 = vrot.slane %v2698, 4
        %v2701 = vshll.u32 %v2509, 16
        %v2703 = vrot.slane %v2701, 5
        %v2704 = vsel %vm2512, %v2699, %v2703
        %s2705 = scalar_lea.vmem %s3, 64
        %v2706 = vld [vmem:[%s2705] sm:$0xf]
        %v2707 = vld [vmem:[%s2705 + $0x4] sm:$0xf]
        %v2708 = vld [vmem:[%s2705 + $0x8] sm:$0xf]
        %v2709 = vld [vmem:[%s2705 + $0xc] sm:$0xf]
        %v2710 = vld [vmem:[%s2705 + $0x10] sm:$0xf]
        %v2711 = vld [vmem:[%s2705 + $0x14] sm:$0xf]
        %v2712 = vld [vmem:[%s2705 + $0x18] sm:$0xf]
        %v2713 = vld [vmem:[%s2705 + $0x1c] sm:$0xf]
        %v2714 = vld [vmem:[%s2705 + $0x20] sm:$0xf]
        %v2715 = vld [vmem:[%s2705 + $0x24] sm:$0xf]
        %v2716 = vld [vmem:[%s2705 + $0x28] sm:$0xf]
        %v2717 = vld [vmem:[%s2705 + $0x2c] sm:$0xf]
        %v2718 = vld [vmem:[%s2705 + $0x30] sm:$0xf]
        %v2719 = vld [vmem:[%s2705 + $0x34] sm:$0xf]
        %v2720 = vld [vmem:[%s2705 + $0x38] sm:$0xf]
        %v2721 = vld [vmem:[%s2705 + $0x3c] sm:$0xf]
        %v2722 = vunpack.c.l.b16 %v2526
        %v2723 = vunpack.c.l.b16 %v2536
        %v2724 = vunpack.c.l.b16 %v2550
        %v2725 = vunpack.c.l.b16 %v2560
        %v2726 = vunpack.c.l.b16 %v2574
        %v2727 = vunpack.c.l.b16 %v2584
        %v2728 = vunpack.c.l.b16 %v2598
        %v2729 = vunpack.c.l.b16 %v2608
        %v2730 = vunpack.c.l.b16 %v2622
        %v2731 = vunpack.c.l.b16 %v2632
        %v2732 = vunpack.c.l.b16 %v2646
        %v2733 = vunpack.c.l.b16 %v2656
        %v2734 = vunpack.c.l.b16 %v2670
        %v2735 = vunpack.c.l.b16 %v2680
        %v2736 = vunpack.c.l.b16 %v2694
        %v2737 = vunpack.c.l.b16 %v2704
        %v2738 = vpack.c.b16 %v2723, %v2722
        %v2739 = vpack.c.b16 %v2725, %v2724
        %v2740 = vpack.c.b16 %v2727, %v2726
        %v2741 = vpack.c.b16 %v2729, %v2728
        %v2742 = vpack.c.b16 %v2731, %v2730
        %v2743 = vpack.c.b16 %v2733, %v2732
        %v2744 = vpack.c.b16 %v2735, %v2734
        %v2745 = vpack.c.b16 %v2737, %v2736
        %v2770 = vunpack.c.l.b16 %v2706
        %v2771 = vunpack.c.l.b16 %v2707
        %v2772 = vunpack.c.l.b16 %v2708
        %v2773 = vunpack.c.l.b16 %v2709
        %v2774 = vunpack.c.l.b16 %v2710
        %v2775 = vunpack.c.l.b16 %v2711
        %v2776 = vunpack.c.l.b16 %v2712
        %v2777 = vunpack.c.l.b16 %v2713
        %v2778 = vunpack.c.l.b16 %v2714
        %v2779 = vunpack.c.l.b16 %v2715
        %v2780 = vunpack.c.l.b16 %v2716
        %v2781 = vunpack.c.l.b16 %v2717
        %v2782 = vunpack.c.l.b16 %v2718
        %v2783 = vunpack.c.l.b16 %v2719
        %v2784 = vunpack.c.l.b16 %v2720
        %v2785 = vunpack.c.l.b16 %v2721
        %v2786 = vpack.c.b16 %v2771, %v2770
        %v2787 = vpack.c.b16 %v2773, %v2772
        %v2788 = vpack.c.b16 %v2775, %v2774
        %v2789 = vpack.c.b16 %v2777, %v2776
        %v2790 = vpack.c.b16 %v2779, %v2778
        %v2791 = vpack.c.b16 %v2781, %v2780
        %v2792 = vpack.c.b16 %v2783, %v2782
        %v2793 = vpack.c.b16 %v2785, %v2784
        %2802 = vmatprep.subr.bf16.mxu0 0
        %2803 = vmatpush1.bf16.msra.mxu0 %v2786
        %2804 = vmatprep.subr.bf16.mxu0 0
        %2805 = vmatpush1.bf16.msra.mxu0 %v2787
        %2806 = vmatprep.subr.bf16.mxu0 0
        %2807 = vmatpush1.bf16.msra.mxu0 %v2788
        %2808 = vmatprep.subr.bf16.mxu0 0
        %2809 = vmatpush1.bf16.msra.mxu0 %v2789
        %2810 = vmatprep.subr.bf16.mxu0 0
        %2811 = vmatpush1.bf16.msra.mxu0 %v2790
        %2812 = vmatprep.subr.bf16.mxu0 0
        %2813 = vmatpush1.bf16.msra.mxu0 %v2791
        %2814 = vmatprep.subr.bf16.mxu0 0
        %2815 = vmatpush1.bf16.msra.mxu0 %v2792
        %2816 = vmatprep.subr.bf16.mxu0 0
        %2817 = vmatpush1.bf16.msra.mxu0 %v2793
        %2818 = vmatprep.subr.bf16.mxu0 0
        %2819 = vmatpush1.bf16.msra.mxu0 0
        %2820 = vmatprep.subr.bf16.mxu0 0
        %2821 = vmatpush1.bf16.msra.mxu0 0
        %2822 = vmatprep.subr.bf16.mxu0 0
        %2823 = vmatpush1.bf16.msra.mxu0 0
        %2824 = vmatprep.subr.bf16.mxu0 0
        %2825 = vmatpush1.bf16.msra.mxu0 0
        %2826 = vmatprep.subr.bf16.mxu0 0
        %2827 = vmatpush1.bf16.msra.mxu0 0
        %2828 = vmatprep.subr.bf16.mxu0 0
        %2829 = vmatpush1.bf16.msra.mxu0 0
        %2830 = vmatprep.subr.bf16.mxu0 0
        %2831 = vmatpush1.bf16.msra.mxu0 0
        %2832 = vmatprep.subr.bf16.mxu0 0
        %2833 = vmatpush1.bf16.msra.mxu0 0
        %2834 = vmatprep.mubr.bf16.mxu0 0
        %2835 = vmatmul.mubr.bf16.gmra.mrb[0].mxu0 %v2738
        %v2836 = vpop.f32.mrb[0].mxu0
        %v2837 = vadd.f32 0.0, %v2836
        %v2838 = vpop.f32.mrb[0].mxu0
        %v2839 = vpop.f32.mrb[0].mxu0
        %v2840 = vadd.f32 0.0, %v2839
        %v2841 = vpop.f32.mrb[0].mxu0
        %2842 = vmatprep.mubr.bf16.mxu0 0
        %2843 = vmatmul.mubr.bf16.gmra.mrb[0].mxu0 %v2739
        %v2844 = vpop.f32.mrb[0].mxu0
        %v2845 = vadd.f32 0.0, %v2844
        %v2846 = vpop.f32.mrb[0].mxu0
        %v2847 = vpop.f32.mrb[0].mxu0
        %v2848 = vadd.f32 0.0, %v2847
        %v2849 = vpop.f32.mrb[0].mxu0
        %2850 = vmatprep.mubr.bf16.mxu0 0
        %2851 = vmatmul.mubr.bf16.gmra.mrb[0].mxu0 %v2740
        %v2852 = vpop.f32.mrb[0].mxu0
        %v2853 = vadd.f32 0.0, %v2852
        %v2854 = vpop.f32.mrb[0].mxu0
        %v2855 = vpop.f32.mrb[0].mxu0
        %v2856 = vadd.f32 0.0, %v2855
        %v2857 = vpop.f32.mrb[0].mxu0
        %2858 = vmatprep.mubr.bf16.mxu0 0
        %2859 = vmatmul.mubr.bf16.gmra.mrb[0].mxu0 %v2741
        %v2860 = vpop.f32.mrb[0].mxu0
        %v2861 = vadd.f32 0.0, %v2860
        %v2862 = vpop.f32.mrb[0].mxu0
        %v2863 = vpop.f32.mrb[0].mxu0
        %v2864 = vadd.f32 0.0, %v2863
        %v2865 = vpop.f32.mrb[0].mxu0
        %2866 = vmatprep.mubr.bf16.mxu0 0
        %2867 = vmatmul.mubr.bf16.gmra.mrb[0].mxu0 %v2742
        %v2868 = vpop.f32.mrb[0].mxu0
        %v2869 = vadd.f32 0.0, %v2868
        %v2870 = vpop.f32.mrb[0].mxu0
        %v2871 = vpop.f32.mrb[0].mxu0
        %v2872 = vadd.f32 0.0, %v2871
        %v2873 = vpop.f32.mrb[0].mxu0
        %2874 = vmatprep.mubr.bf16.mxu0 0
        %2875 = vmatmul.mubr.bf16.gmra.mrb[0].mxu0 %v2743
        %v2876 = vpop.f32.mrb[0].mxu0
        %v2877 = vadd.f32 0.0, %v2876
        %v2878 = vpop.f32.mrb[0].mxu0
        %v2879 = vpop.f32.mrb[0].mxu0
        %v2880 = vadd.f32 0.0, %v2879
        %v2881 = vpop.f32.mrb[0].mxu0
        %2882 = vmatprep.mubr.bf16.mxu0 0
        %2883 = vmatmul.mubr.bf16.gmra.mrb[0].mxu0 %v2744
        %v2884 = vpop.f32.mrb[0].mxu0
        %v2885 = vadd.f32 0.0, %v2884
        %v2886 = vpop.f32.mrb[0].mxu0
        %v2887 = vpop.f32.mrb[0].mxu0
        %v2888 = vadd.f32 0.0, %v2887
        %v2889 = vpop.f32.mrb[0].mxu0
        %2890 = vmatprep.mubr.bf16.mxu0 0
        %2891 = vmatmul.mubr.bf16.gmra.mrb[0].mxu0 %v2745
        %v2892 = vpop.f32.mrb[0].mxu0
        %v2893 = vadd.f32 0.0, %v2892
        %v2894 = vpop.f32.mrb[0].mxu0
        %v2895 = vpop.f32.mrb[0].mxu0
        %v2896 = vadd.f32 0.0, %v2895
        %v2897 = vpop.f32.mrb[0].mxu0
        %2898 = vdwg.mxu0
        %v2915 = vunpack.c.l.b16 %v2470
        %v2916 = vunpack.c.l.b16 %v2471
        %v2917 = vunpack.c.l.b16 %v2472
        %v2918 = vunpack.c.l.b16 %v2473
        %v2919 = vunpack.c.l.b16 %v2474
        %v2920 = vunpack.c.l.b16 %v2475
        %v2921 = vunpack.c.l.b16 %v2476
        %v2922 = vunpack.c.l.b16 %v2477
        %v2923 = vunpack.c.l.b16 %v2478
        %v2924 = vunpack.c.l.b16 %v2479
        %v2925 = vunpack.c.l.b16 %v2480
        %v2926 = vunpack.c.l.b16 %v2481
        %v2927 = vunpack.c.l.b16 %v2482
        %v2928 = vunpack.c.l.b16 %v2483
        %v2929 = vunpack.c.l.b16 %v2484
        %v2930 = vunpack.c.l.b16 %v2485
        %v2931 = vpack.c.b16 %v2916, %v2915
        %v2932 = vpack.c.b16 %v2918, %v2917
        %v2933 = vpack.c.b16 %v2920, %v2919
        %v2934 = vpack.c.b16 %v2922, %v2921
        %v2935 = vpack.c.b16 %v2924, %v2923
        %v2936 = vpack.c.b16 %v2926, %v2925
        %v2937 = vpack.c.b16 %v2928, %v2927
        %v2938 = vpack.c.b16 %v2930, %v2929
        %v2963 = vunpack.c.l.b16 %v2486
        %v2964 = vunpack.c.l.b16 %v2487
        %v2965 = vunpack.c.l.b16 %v2488
        %v2966 = vunpack.c.l.b16 %v2489
        %v2967 = vunpack.c.l.b16 %v2490
        %v2968 = vunpack.c.l.b16 %v2491
        %v2969 = vunpack.c.l.b16 %v2492
        %v2970 = vunpack.c.l.b16 %v2493
        %v2971 = vunpack.c.l.b16 %v2494
        %v2972 = vunpack.c.l.b16 %v2495
        %v2973 = vunpack.c.l.b16 %v2496
        %v2974 = vunpack.c.l.b16 %v2497
        %v2975 = vunpack.c.l.b16 %v2498
        %v2976 = vunpack.c.l.b16 %v2499
        %v2977 = vunpack.c.l.b16 %v2500
        %v2978 = vunpack.c.l.b16 %v2501
        %v2979 = vpack.c.b16 %v2964, %v2963
        %v2980 = vpack.c.b16 %v2966, %v2965
        %v2981 = vpack.c.b16 %v2968, %v2967
        %v2982 = vpack.c.b16 %v2970, %v2969
        %v2983 = vpack.c.b16 %v2972, %v2971
        %v2984 = vpack.c.b16 %v2974, %v2973
        %v2985 = vpack.c.b16 %v2976, %v2975
        %v2986 = vpack.c.b16 %v2978, %v2977
        %2995 = vmatprep.subr.bf16.mxu0 0
        %2996 = vmatpush1.bf16.msra.mxu0 %v2979
        %2997 = vmatprep.subr.bf16.mxu0 0
        %2998 = vmatpush1.bf16.msra.mxu0 %v2980
        %2999 = vmatprep.subr.bf16.mxu0 0
        %3000 = vmatpush1.bf16.msra.mxu0 %v2981
        %3001 = vmatprep.subr.bf16.mxu0 0
        %3002 = vmatpush1.bf16.msra.mxu0 %v2982
        %3003 = vmatprep.subr.bf16.mxu0 0
        %3004 = vmatpush1.bf16.msra.mxu0 %v2983
        %3005 = vmatprep.subr.bf16.mxu0 0
        %3006 = vmatpush1.bf16.msra.mxu0 %v2984
        %3007 = vmatprep.subr.bf16.mxu0 0
        %3008 = vmatpush1.bf16.msra.mxu0 %v2985
        %3009 = vmatprep.subr.bf16.mxu0 0
        %3010 = vmatpush1.bf16.msra.mxu0 %v2986
        %3011 = vmatprep.subr.bf16.mxu0 0
        %3012 = vmatpush1.bf16.msra.mxu0 0
        %3013 = vmatprep.subr.bf16.mxu0 0
        %3014 = vmatpush1.bf16.msra.mxu0 0
        %3015 = vmatprep.subr.bf16.mxu0 0
        %3016 = vmatpush1.bf16.msra.mxu0 0
        %3017 = vmatprep.subr.bf16.mxu0 0
        %3018 = vmatpush1.bf16.msra.mxu0 0
        %3019 = vmatprep.subr.bf16.mxu0 0
        %3020 = vmatpush1.bf16.msra.mxu0 0
        %3021 = vmatprep.subr.bf16.mxu0 0
        %3022 = vmatpush1.bf16.msra.mxu0 0
        %3023 = vmatprep.subr.bf16.mxu0 0
        %3024 = vmatpush1.bf16.msra.mxu0 0
        %3025 = vmatprep.subr.bf16.mxu0 0
        %3026 = vmatpush1.bf16.msra.mxu0 0
        %3027 = vmatprep.mubr.bf16.mxu0 0
        %3028 = vmatmul.mubr.bf16.gmra.mrb[0].mxu0 %v2931
        %v3029 = vpop.f32.mrb[0].mxu0
        %v3030 = vadd.f32 %v2837, %v3029
        %v3031 = vpop.f32.mrb[0].mxu0
        %v3032 = vpop.f32.mrb[0].mxu0
        %v3033 = vadd.f32 %v2840, %v3032
        %v3034 = vpop.f32.mrb[0].mxu0
        %3035 = vmatprep.mubr.bf16.mxu0 0
        %3036 = vmatmul.mubr.bf16.gmra.mrb[0].mxu0 %v2932
        %v3037 = vpop.f32.mrb[0].mxu0
        %v3038 = vadd.f32 %v2845, %v3037
        %v3039 = vpop.f32.mrb[0].mxu0
        %v3040 = vpop.f32.mrb[0].mxu0
        %v3041 = vadd.f32 %v2848, %v3040
        %v3042 = vpop.f32.mrb[0].mxu0
        %3043 = vmatprep.mubr.bf16.mxu0 0
        %3044 = vmatmul.mubr.bf16.gmra.mrb[0].mxu0 %v2933
        %v3045 = vpop.f32.mrb[0].mxu0
        %v3046 = vadd.f32 %v2853, %v3045
        %v3047 = vpop.f32.mrb[0].mxu0
        %v3048 = vpop.f32.mrb[0].mxu0
        %v3049 = vadd.f32 %v2856, %v3048
        %v3050 = vpop.f32.mrb[0].mxu0
        %3051 = vmatprep.mubr.bf16.mxu0 0
        %3052 = vmatmul.mubr.bf16.gmra.mrb[0].mxu0 %v2934
        %v3053 = vpop.f32.mrb[0].mxu0
        %v3054 = vadd.f32 %v2861, %v3053
        %v3055 = vpop.f32.mrb[0].mxu0
        %v3056 = vpop.f32.mrb[0].mxu0
        %v3057 = vadd.f32 %v2864, %v3056
        %v3058 = vpop.f32.mrb[0].mxu0
        %3059 = vmatprep.mubr.bf16.mxu0 0
        %3060 = vmatmul.mubr.bf16.gmra.mrb[0].mxu0 %v2935
        %v3061 = vpop.f32.mrb[0].mxu0
        %v3062 = vadd.f32 %v2869, %v3061
        %v3063 = vpop.f32.mrb[0].mxu0
        %v3064 = vpop.f32.mrb[0].mxu0
        %v3065 = vadd.f32 %v2872, %v3064
        %v3066 = vpop.f32.mrb[0].mxu0
        %3067 = vmatprep.mubr.bf16.mxu0 0
        %3068 = vmatmul.mubr.bf16.gmra.mrb[0].mxu0 %v2936
        %v3069 = vpop.f32.mrb[0].mxu0
        %v3070 = vadd.f32 %v2877, %v3069
        %v3071 = vpop.f32.mrb[0].mxu0
        %v3072 = vpop.f32.mrb[0].mxu0
        %v3073 = vadd.f32 %v2880, %v3072
        %v3074 = vpop.f32.mrb[0].mxu0
        %3075 = vmatprep.mubr.bf16.mxu0 0
        %3076 = vmatmul.mubr.bf16.gmra.mrb[0].mxu0 %v2937
        %v3077 = vpop.f32.mrb[0].mxu0
        %v3078 = vadd.f32 %v2885, %v3077
        %v3079 = vpop.f32.mrb[0].mxu0
        %v3080 = vpop.f32.mrb[0].mxu0
        %v3081 = vadd.f32 %v2888, %v3080
        %v3082 = vpop.f32.mrb[0].mxu0
        %3083 = vmatprep.mubr.bf16.mxu0 0
        %3084 = vmatmul.mubr.bf16.gmra.mrb[0].mxu0 %v2938
        %v3085 = vpop.f32.mrb[0].mxu0
        %v3086 = vadd.f32 %v2893, %v3085
        %v3087 = vpop.f32.mrb[0].mxu0
        %v3088 = vpop.f32.mrb[0].mxu0
        %v3089 = vadd.f32 %v2896, %v3088
        %v3090 = vpop.f32.mrb[0].mxu0
        %3091 = vdwg.mxu0
        %v3092 = vld [vmem:[%s2469] sm:$0xe]
        %v3093 = vld [vmem:[%s2469 + $0xc] sm:$0xe]
        %v3094 = vld [vmem:[%s2469 + $0x18] sm:$0xe]
        %v3095 = vld [vmem:[%s2469 + $0x24] sm:$0xe]
        %v3096 = vld [vmem:[%s2469 + $0x30] sm:$0xe]
        %v3097 = vld [vmem:[%s2469 + $0x3c] sm:$0xe]
        %v3098 = vld [vmem:[%s2469 + $0x48] sm:$0xe]
        %v3099 = vld [vmem:[%s2469 + $0x54] sm:$0xe]
        %vm3116 = vcmask 1042432
        %vm3117 = vcmask 1046532
        %vm3118 = vmor %vm3116, %vm3117
        %v3119 = vrot.slane %v3092, 5
        %v3120 = vrot.slane %v3119, 4
        %v3121 = vrot.slane %v2471, 5
        %v3122 = vsel %vm3118, %v3120, %v3121
        %v3123 = vrot.slane %v3121, 4
        %v3124 = vrot.slane %v2502, 5
        %v3125 = vsel %vm3118, %v3123, %v3124
        %v3126 = vrot.slane %v3093, 5
        %v3127 = vrot.slane %v3126, 4
        %v3128 = vrot.slane %v2473, 5
        %v3129 = vsel %vm3118, %v3127, %v3128
        %v3130 = vrot.slane %v3128, 4
        %v3131 = vrot.slane %v2503, 5
        %v3132 = vsel %vm3118, %v3130, %v3131
        %v3133 = vrot.slane %v3094, 5
        %v3134 = vrot.slane %v3133, 4
        %v3135 = vrot.slane %v2475, 5
        %v3136 = vsel %vm3118, %v3134, %v3135
        %v3137 = vrot.slane %v3135, 4
        %v3138 = vrot.slane %v2504, 5
        %v3139 = vsel %vm3118, %v3137, %v3138
        %v3140 = vrot.slane %v3095, 5
        %v3141 = vrot.slane %v3140, 4
        %v3142 = vrot.slane %v2477, 5
        %v3143 = vsel %vm3118, %v3141, %v3142
        %v3144 = vrot.slane %v3142, 4
        %v3145 = vrot.slane %v2505, 5
        %v3146 = vsel %vm3118, %v3144, %v3145
        %v3147 = vrot.slane %v3096, 5
        %v3148 = vrot.slane %v3147, 4
        %v3149 = vrot.slane %v2479, 5
        %v3150 = vsel %vm3118, %v3148, %v3149
        %v3151 = vrot.slane %v3149, 4
        %v3152 = vrot.slane %v2506, 5
        %v3153 = vsel %vm3118, %v3151, %v3152
        %v3154 = vrot.slane %v3097, 5
        %v3155 = vrot.slane %v3154, 4
        %v3156 = vrot.slane %v2481, 5
        %v3157 = vsel %vm3118, %v3155, %v3156
        %v3158 = vrot.slane %v3156, 4
        %v3159 = vrot.slane %v2507, 5
        %v3160 = vsel %vm3118, %v3158, %v3159
        %v3161 = vrot.slane %v3098, 5
        %v3162 = vrot.slane %v3161, 4
        %v3163 = vrot.slane %v2483, 5
        %v3164 = vsel %vm3118, %v3162, %v3163
        %v3165 = vrot.slane %v3163, 4
        %v3166 = vrot.slane %v2508, 5
        %v3167 = vsel %vm3118, %v3165, %v3166
        %v3168 = vrot.slane %v3099, 5
        %v3169 = vrot.slane %v3168, 4
        %v3170 = vrot.slane %v2485, 5
        %v3171 = vsel %vm3118, %v3169, %v3170
        %v3172 = vrot.slane %v3170, 4
        %v3173 = vrot.slane %v2509, 5
        %v3174 = vsel %vm3118, %v3172, %v3173
        %s3175 = scalar_lea.vmem %s3, 128
        %v3176 = vld [vmem:[%s3175] sm:$0xf]
        %v3177 = vld [vmem:[%s3175 + $0x4] sm:$0xf]
        %v3178 = vld [vmem:[%s3175 + $0x8] sm:$0xf]
        %v3179 = vld [vmem:[%s3175 + $0xc] sm:$0xf]
        %v3180 = vld [vmem:[%s3175 + $0x10] sm:$0xf]
        %v3181 = vld [vmem:[%s3175 + $0x14] sm:$0xf]
        %v3182 = vld [vmem:[%s3175 + $0x18] sm:$0xf]
        %v3183 = vld [vmem:[%s3175 + $0x1c] sm:$0xf]
        %v3184 = vld [vmem:[%s3175 + $0x20] sm:$0xf]
        %v3185 = vld [vmem:[%s3175 + $0x24] sm:$0xf]
        %v3186 = vld [vmem:[%s3175 + $0x28] sm:$0xf]
        %v3187 = vld [vmem:[%s3175 + $0x2c] sm:$0xf]
        %v3188 = vld [vmem:[%s3175 + $0x30] sm:$0xf]
        %v3189 = vld [vmem:[%s3175 + $0x34] sm:$0xf]
        %v3190 = vld [vmem:[%s3175 + $0x38] sm:$0xf]
        %v3191 = vld [vmem:[%s3175 + $0x3c] sm:$0xf]
        %v3192 = vunpack.c.l.b16 %v3122
        %v3193 = vunpack.c.l.b16 %v3125
        %v3194 = vunpack.c.l.b16 %v3129
        %v3195 = vunpack.c.l.b16 %v3132
        %v3196 = vunpack.c.l.b16 %v3136
        %v3197 = vunpack.c.l.b16 %v3139
        %v3198 = vunpack.c.l.b16 %v3143
        %v3199 = vunpack.c.l.b16 %v3146
        %v3200 = vunpack.c.l.b16 %v3150
        %v3201 = vunpack.c.l.b16 %v3153
        %v3202 = vunpack.c.l.b16 %v3157
        %v3203 = vunpack.c.l.b16 %v3160
        %v3204 = vunpack.c.l.b16 %v3164
        %v3205 = vunpack.c.l.b16 %v3167
        %v3206 = vunpack.c.l.b16 %v3171
        %v3207 = vunpack.c.l.b16 %v3174
        %v3208 = vpack.c.b16 %v3193, %v3192
        %v3209 = vpack.c.b16 %v3195, %v3194
        %v3210 = vpack.c.b16 %v3197, %v3196
        %v3211 = vpack.c.b16 %v3199, %v3198
        %v3212 = vpack.c.b16 %v3201, %v3200
        %v3213 = vpack.c.b16 %v3203, %v3202
        %v3214 = vpack.c.b16 %v3205, %v3204
        %v3215 = vpack.c.b16 %v3207, %v3206
        %v3240 = vunpack.c.l.b16 %v3176
        %v3241 = vunpack.c.l.b16 %v3177
        %v3242 = vunpack.c.l.b16 %v3178
        %v3243 = vunpack.c.l.b16 %v3179
        %v3244 = vunpack.c.l.b16 %v3180
        %v3245 = vunpack.c.l.b16 %v3181
        %v3246 = vunpack.c.l.b16 %v3182
        %v3247 = vunpack.c.l.b16 %v3183
        %v3248 = vunpack.c.l.b16 %v3184
        %v3249 = vunpack.c.l.b16 %v3185
        %v3250 = vunpack.c.l.b16 %v3186
        %v3251 = vunpack.c.l.b16 %v3187
        %v3252 = vunpack.c.l.b16 %v3188
        %v3253 = vunpack.c.l.b16 %v3189
        %v3254 = vunpack.c.l.b16 %v3190
        %v3255 = vunpack.c.l.b16 %v3191
        %v3256 = vpack.c.b16 %v3241, %v3240
        %v3257 = vpack.c.b16 %v3243, %v3242
        %v3258 = vpack.c.b16 %v3245, %v3244
        %v3259 = vpack.c.b16 %v3247, %v3246
        %v3260 = vpack.c.b16 %v3249, %v3248
        %v3261 = vpack.c.b16 %v3251, %v3250
        %v3262 = vpack.c.b16 %v3253, %v3252
        %v3263 = vpack.c.b16 %v3255, %v3254
        %3272 = vmatprep.subr.bf16.mxu0 0
        %3273 = vmatpush1.bf16.msra.mxu0 %v3256
        %3274 = vmatprep.subr.bf16.mxu0 0
        %3275 = vmatpush1.bf16.msra.mxu0 %v3257
        %3276 = vmatprep.subr.bf16.mxu0 0
        %3277 = vmatpush1.bf16.msra.mxu0 %v3258
        %3278 = vmatprep.subr.bf16.mxu0 0
        %3279 = vmatpush1.bf16.msra.mxu0 %v3259
        %3280 = vmatprep.subr.bf16.mxu0 0
        %3281 = vmatpush1.bf16.msra.mxu0 %v3260
        %3282 = vmatprep.subr.bf16.mxu0 0
        %3283 = vmatpush1.bf16.msra.mxu0 %v3261
        %3284 = vmatprep.subr.bf16.mxu0 0
        %3285 = vmatpush1.bf16.msra.mxu0 %v3262
        %3286 = vmatprep.subr.bf16.mxu0 0
        %3287 = vmatpush1.bf16.msra.mxu0 %v3263
        %3288 = vmatprep.subr.bf16.mxu0 0
        %3289 = vmatpush1.bf16.msra.mxu0 0
        %3290 = vmatprep.subr.bf16.mxu0 0
        %3291 = vmatpush1.bf16.msra.mxu0 0
        %3292 = vmatprep.subr.bf16.mxu0 0
        %3293 = vmatpush1.bf16.msra.mxu0 0
        %3294 = vmatprep.subr.bf16.mxu0 0
        %3295 = vmatpush1.bf16.msra.mxu0 0
        %3296 = vmatprep.subr.bf16.mxu0 0
        %3297 = vmatpush1.bf16.msra.mxu0 0
        %3298 = vmatprep.subr.bf16.mxu0 0
        %3299 = vmatpush1.bf16.msra.mxu0 0
        %3300 = vmatprep.subr.bf16.mxu0 0
        %3301 = vmatpush1.bf16.msra.mxu0 0
        %3302 = vmatprep.subr.bf16.mxu0 0
        %3303 = vmatpush1.bf16.msra.mxu0 0
        %3304 = vmatprep.mubr.bf16.mxu0 0
        %3305 = vmatmul.mubr.bf16.gmra.mrb[0].mxu0 %v3208
        %v3306 = vpop.f32.mrb[0].mxu0
        %v3307 = vadd.f32 0.0, %v3306
        %v3308 = vpop.f32.mrb[0].mxu0
        %v3309 = vpop.f32.mrb[0].mxu0
        %v3310 = vadd.f32 0.0, %v3309
        %v3311 = vpop.f32.mrb[0].mxu0
        %3312 = vmatprep.mubr.bf16.mxu0 0
        %3313 = vmatmul.mubr.bf16.gmra.mrb[0].mxu0 %v3209
        %v3314 = vpop.f32.mrb[0].mxu0
        %v3315 = vadd.f32 0.0, %v3314
        %v3316 = vpop.f32.mrb[0].mxu0
        %v3317 = vpop.f32.mrb[0].mxu0
        %v3318 = vadd.f32 0.0, %v3317
        %v3319 = vpop.f32.mrb[0].mxu0
        %3320 = vmatprep.mubr.bf16.mxu0 0
        %3321 = vmatmul.mubr.bf16.gmra.mrb[0].mxu0 %v3210
        %v3322 = vpop.f32.mrb[0].mxu0
        %v3323 = vadd.f32 0.0, %v3322
        %v3324 = vpop.f32.mrb[0].mxu0
        %v3325 = vpop.f32.mrb[0].mxu0
        %v3326 = vadd.f32 0.0, %v3325
        %v3327 = vpop.f32.mrb[0].mxu0
        %3328 = vmatprep.mubr.bf16.mxu0 0
        %3329 = vmatmul.mubr.bf16.gmra.mrb[0].mxu0 %v3211
        %v3330 = vpop.f32.mrb[0].mxu0
        %v3331 = vadd.f32 0.0, %v3330
        %v3332 = vpop.f32.mrb[0].mxu0
        %v3333 = vpop.f32.mrb[0].mxu0
        %v3334 = vadd.f32 0.0, %v3333
        %v3335 = vpop.f32.mrb[0].mxu0
        %3336 = vmatprep.mubr.bf16.mxu0 0
        %3337 = vmatmul.mubr.bf16.gmra.mrb[0].mxu0 %v3212
        %v3338 = vpop.f32.mrb[0].mxu0
        %v3339 = vadd.f32 0.0, %v3338
        %v3340 = vpop.f32.mrb[0].mxu0
        %v3341 = vpop.f32.mrb[0].mxu0
        %v3342 = vadd.f32 0.0, %v3341
        %v3343 = vpop.f32.mrb[0].mxu0
        %3344 = vmatprep.mubr.bf16.mxu0 0
        %3345 = vmatmul.mubr.bf16.gmra.mrb[0].mxu0 %v3213
        %v3346 = vpop.f32.mrb[0].mxu0
        %v3347 = vadd.f32 0.0, %v3346
        %v3348 = vpop.f32.mrb[0].mxu0
        %v3349 = vpop.f32.mrb[0].mxu0
        %v3350 = vadd.f32 0.0, %v3349
        %v3351 = vpop.f32.mrb[0].mxu0
        %3352 = vmatprep.mubr.bf16.mxu0 0
        %3353 = vmatmul.mubr.bf16.gmra.mrb[0].mxu0 %v3214
        %v3354 = vpop.f32.mrb[0].mxu0
        %v3355 = vadd.f32 0.0, %v3354
        %v3356 = vpop.f32.mrb[0].mxu0
        %v3357 = vpop.f32.mrb[0].mxu0
        %v3358 = vadd.f32 0.0, %v3357
        %v3359 = vpop.f32.mrb[0].mxu0
        %3360 = vmatprep.mubr.bf16.mxu0 0
        %3361 = vmatmul.mubr.bf16.gmra.mrb[0].mxu0 %v3215
        %v3362 = vpop.f32.mrb[0].mxu0
        %v3363 = vadd.f32 0.0, %v3362
        %v3364 = vpop.f32.mrb[0].mxu0
        %v3365 = vpop.f32.mrb[0].mxu0
        %v3366 = vadd.f32 0.0, %v3365
        %v3367 = vpop.f32.mrb[0].mxu0
        %3368 = vdwg.mxu0
        %v3369 = vadd.f32 %v3030, %v3307
        %v3370 = vadd.f32 %v3033, %v3310
        %v3371 = vadd.f32 %v3038, %v3315
        %v3372 = vadd.f32 %v3041, %v3318
        %v3373 = vadd.f32 %v3046, %v3323
        %v3374 = vadd.f32 %v3049, %v3326
        %v3375 = vadd.f32 %v3054, %v3331
        %v3376 = vadd.f32 %v3057, %v3334
        %v3377 = vadd.f32 %v3062, %v3339
        %v3378 = vadd.f32 %v3065, %v3342
        %v3379 = vadd.f32 %v3070, %v3347
        %v3380 = vadd.f32 %v3073, %v3350
        %v3381 = vadd.f32 %v3078, %v3355
        %v3382 = vadd.f32 %v3081, %v3358
        %v3383 = vadd.f32 %v3086, %v3363
        %v3384 = vadd.f32 %v3089, %v3366
        %s3385 = sadd.s32 %s2466, 1
        %s3386 = smul.u32 %s3385, 3
        %s3387 = smul.addr %s3386, 4
        %s3388 = scalar_lea.vmem [#allocation2], %s3387
        %v3389 = vld [vmem:[%s3388] sm:$0xf]
        %v3390 = vld [vmem:[%s3388 + $0x4] sm:$0xf]
        %v3391 = vld [vmem:[%s3388 + $0xc] sm:$0xf]
        %v3392 = vld [vmem:[%s3388 + $0x10] sm:$0xf]
        %v3393 = vld [vmem:[%s3388 + $0x18] sm:$0xf]
        %v3394 = vld [vmem:[%s3388 + $0x1c] sm:$0xf]
        %v3395 = vld [vmem:[%s3388 + $0x24] sm:$0xf]
        %v3396 = vld [vmem:[%s3388 + $0x28] sm:$0xf]
        %v3397 = vld [vmem:[%s3388 + $0x30] sm:$0xf]
        %v3398 = vld [vmem:[%s3388 + $0x34] sm:$0xf]
        %v3399 = vld [vmem:[%s3388 + $0x3c] sm:$0xf]
        %v3400 = vld [vmem:[%s3388 + $0x40] sm:$0xf]
        %v3401 = vld [vmem:[%s3388 + $0x48] sm:$0xf]
        %v3402 = vld [vmem:[%s3388 + $0x4c] sm:$0xf]
        %v3403 = vld [vmem:[%s3388 + $0x54] sm:$0xf]
        %v3404 = vld [vmem:[%s3388 + $0x58] sm:$0xf]
        %s3405 = scalar_lea.vmem %s3, 192
        %v3406 = vld [vmem:[%s3405] sm:$0xf]
        %v3407 = vld [vmem:[%s3405 + $0x4] sm:$0xf]
        %v3408 = vld [vmem:[%s3405 + $0x8] sm:$0xf]
        %v3409 = vld [vmem:[%s3405 + $0xc] sm:$0xf]
        %v3410 = vld [vmem:[%s3405 + $0x10] sm:$0xf]
        %v3411 = vld [vmem:[%s3405 + $0x14] sm:$0xf]
        %v3412 = vld [vmem:[%s3405 + $0x18] sm:$0xf]
        %v3413 = vld [vmem:[%s3405 + $0x1c] sm:$0xf]
        %v3414 = vld [vmem:[%s3405 + $0x20] sm:$0xf]
        %v3415 = vld [vmem:[%s3405 + $0x24] sm:$0xf]
        %v3416 = vld [vmem:[%s3405 + $0x28] sm:$0xf]
        %v3417 = vld [vmem:[%s3405 + $0x2c] sm:$0xf]
        %v3418 = vld [vmem:[%s3405 + $0x30] sm:$0xf]
        %v3419 = vld [vmem:[%s3405 + $0x34] sm:$0xf]
        %v3420 = vld [vmem:[%s3405 + $0x38] sm:$0xf]
        %v3421 = vld [vmem:[%s3405 + $0x3c] sm:$0xf]
        %v3438 = vunpack.c.l.b16 %v3389
        %v3439 = vunpack.c.l.b16 %v3390
        %v3440 = vunpack.c.l.b16 %v3391
        %v3441 = vunpack.c.l.b16 %v3392
        %v3442 = vunpack.c.l.b16 %v3393
        %v3443 = vunpack.c.l.b16 %v3394
        %v3444 = vunpack.c.l.b16 %v3395
        %v3445 = vunpack.c.l.b16 %v3396
        %v3446 = vunpack.c.l.b16 %v3397
        %v3447 = vunpack.c.l.b16 %v3398
        %v3448 = vunpack.c.l.b16 %v3399
        %v3449 = vunpack.c.l.b16 %v3400
        %v3450 = vunpack.c.l.b16 %v3401
        %v3451 = vunpack.c.l.b16 %v3402
        %v3452 = vunpack.c.l.b16 %v3403
        %v3453 = vunpack.c.l.b16 %v3404
        %v3454 = vpack.c.b16 %v3439, %v3438
        %v3455 = vpack.c.b16 %v3441, %v3440
        %v3456 = vpack.c.b16 %v3443, %v3442
        %v3457 = vpack.c.b16 %v3445, %v3444
        %v3458 = vpack.c.b16 %v3447, %v3446
        %v3459 = vpack.c.b16 %v3449, %v3448
        %v3460 = vpack.c.b16 %v3451, %v3450
        %v3461 = vpack.c.b16 %v3453, %v3452
        %v3486 = vunpack.c.l.b16 %v3406
        %v3487 = vunpack.c.l.b16 %v3407
        %v3488 = vunpack.c.l.b16 %v3408
        %v3489 = vunpack.c.l.b16 %v3409
        %v3490 = vunpack.c.l.b16 %v3410
        %v3491 = vunpack.c.l.b16 %v3411
        %v3492 = vunpack.c.l.b16 %v3412
        %v3493 = vunpack.c.l.b16 %v3413
        %v3494 = vunpack.c.l.b16 %v3414
        %v3495 = vunpack.c.l.b16 %v3415
        %v3496 = vunpack.c.l.b16 %v3416
        %v3497 = vunpack.c.l.b16 %v3417
        %v3498 = vunpack.c.l.b16 %v3418
        %v3499 = vunpack.c.l.b16 %v3419
        %v3500 = vunpack.c.l.b16 %v3420
        %v3501 = vunpack.c.l.b16 %v3421
        %v3502 = vpack.c.b16 %v3487, %v3486
        %v3503 = vpack.c.b16 %v3489, %v3488
        %v3504 = vpack.c.b16 %v3491, %v3490
        %v3505 = vpack.c.b16 %v3493, %v3492
        %v3506 = vpack.c.b16 %v3495, %v3494
        %v3507 = vpack.c.b16 %v3497, %v3496
        %v3508 = vpack.c.b16 %v3499, %v3498
        %v3509 = vpack.c.b16 %v3501, %v3500
        %3518 = vmatprep.subr.bf16.mxu0 0
        %3519 = vmatpush1.bf16.msra.mxu0 %v3502
        %3520 = vmatprep.subr.bf16.mxu0 0
        %3521 = vmatpush1.bf16.msra.mxu0 %v3503
        %3522 = vmatprep.subr.bf16.mxu0 0
        %3523 = vmatpush1.bf16.msra.mxu0 %v3504
        %3524 = vmatprep.subr.bf16.mxu0 0
        %3525 = vmatpush1.bf16.msra.mxu0 %v3505
        %3526 = vmatprep.subr.bf16.mxu0 0
        %3527 = vmatpush1.bf16.msra.mxu0 %v3506
        %3528 = vmatprep.subr.bf16.mxu0 0
        %3529 = vmatpush1.bf16.msra.mxu0 %v3507
        %3530 = vmatprep.subr.bf16.mxu0 0
        %3531 = vmatpush1.bf16.msra.mxu0 %v3508
        %3532 = vmatprep.subr.bf16.mxu0 0
        %3533 = vmatpush1.bf16.msra.mxu0 %v3509
        %3534 = vmatprep.subr.bf16.mxu0 0
        %3535 = vmatpush1.bf16.msra.mxu0 0
        %3536 = vmatprep.subr.bf16.mxu0 0
        %3537 = vmatpush1.bf16.msra.mxu0 0
        %3538 = vmatprep.subr.bf16.mxu0 0
        %3539 = vmatpush1.bf16.msra.mxu0 0
        %3540 = vmatprep.subr.bf16.mxu0 0
        %3541 = vmatpush1.bf16.msra.mxu0 0
        %3542 = vmatprep.subr.bf16.mxu0 0
        %3543 = vmatpush1.bf16.msra.mxu0 0
        %3544 = vmatprep.subr.bf16.mxu0 0
        %3545 = vmatpush1.bf16.msra.mxu0 0
        %3546 = vmatprep.subr.bf16.mxu0 0
        %3547 = vmatpush1.bf16.msra.mxu0 0
        %3548 = vmatprep.subr.bf16.mxu0 0
        %3549 = vmatpush1.bf16.msra.mxu0 0
        %3550 = vmatprep.mubr.bf16.mxu0 0
        %3551 = vmatmul.mubr.bf16.gmra.mrb[0].mxu0 %v3454
        %v3552 = vpop.f32.mrb[0].mxu0
        %v3553 = vadd.f32 0.0, %v3552
        %v3554 = vpop.f32.mrb[0].mxu0
        %v3555 = vpop.f32.mrb[0].mxu0
        %v3556 = vadd.f32 0.0, %v3555
        %v3557 = vpop.f32.mrb[0].mxu0
        %3558 = vmatprep.mubr.bf16.mxu0 0
        %3559 = vmatmul.mubr.bf16.gmra.mrb[0].mxu0 %v3455
        %v3560 = vpop.f32.mrb[0].mxu0
        %v3561 = vadd.f32 0.0, %v3560
        %v3562 = vpop.f32.mrb[0].mxu0
        %v3563 = vpop.f32.mrb[0].mxu0
        %v3564 = vadd.f32 0.0, %v3563
        %v3565 = vpop.f32.mrb[0].mxu0
        %3566 = vmatprep.mubr.bf16.mxu0 0
        %3567 = vmatmul.mubr.bf16.gmra.mrb[0].mxu0 %v3456
        %v3568 = vpop.f32.mrb[0].mxu0
        %v3569 = vadd.f32 0.0, %v3568
        %v3570 = vpop.f32.mrb[0].mxu0
        %v3571 = vpop.f32.mrb[0].mxu0
        %v3572 = vadd.f32 0.0, %v3571
        %v3573 = vpop.f32.mrb[0].mxu0
        %3574 = vmatprep.mubr.bf16.mxu0 0
        %3575 = vmatmul.mubr.bf16.gmra.mrb[0].mxu0 %v3457
        %v3576 = vpop.f32.mrb[0].mxu0
        %v3577 = vadd.f32 0.0, %v3576
        %v3578 = vpop.f32.mrb[0].mxu0
        %v3579 = vpop.f32.mrb[0].mxu0
        %v3580 = vadd.f32 0.0, %v3579
        %v3581 = vpop.f32.mrb[0].mxu0
        %3582 = vmatprep.mubr.bf16.mxu0 0
        %3583 = vmatmul.mubr.bf16.gmra.mrb[0].mxu0 %v3458
        %v3584 = vpop.f32.mrb[0].mxu0
        %v3585 = vadd.f32 0.0, %v3584
        %v3586 = vpop.f32.mrb[0].mxu0
        %v3587 = vpop.f32.mrb[0].mxu0
        %v3588 = vadd.f32 0.0, %v3587
        %v3589 = vpop.f32.mrb[0].mxu0
        %3590 = vmatprep.mubr.bf16.mxu0 0
        %3591 = vmatmul.mubr.bf16.gmra.mrb[0].mxu0 %v3459
        %v3592 = vpop.f32.mrb[0].mxu0
        %v3593 = vadd.f32 0.0, %v3592
        %v3594 = vpop.f32.mrb[0].mxu0
        %v3595 = vpop.f32.mrb[0].mxu0
        %v3596 = vadd.f32 0.0, %v3595
        %v3597 = vpop.f32.mrb[0].mxu0
        %3598 = vmatprep.mubr.bf16.mxu0 0
        %3599 = vmatmul.mubr.bf16.gmra.mrb[0].mxu0 %v3460
        %v3600 = vpop.f32.mrb[0].mxu0
        %v3601 = vadd.f32 0.0, %v3600
        %v3602 = vpop.f32.mrb[0].mxu0
        %v3603 = vpop.f32.mrb[0].mxu0
        %v3604 = vadd.f32 0.0, %v3603
        %v3605 = vpop.f32.mrb[0].mxu0
        %3606 = vmatprep.mubr.bf16.mxu0 0
        %3607 = vmatmul.mubr.bf16.gmra.mrb[0].mxu0 %v3461
        %v3608 = vpop.f32.mrb[0].mxu0
        %v3609 = vadd.f32 0.0, %v3608
        %v3610 = vpop.f32.mrb[0].mxu0
        %v3611 = vpop.f32.mrb[0].mxu0
        %v3612 = vadd.f32 0.0, %v3611
        %v3613 = vpop.f32.mrb[0].mxu0
        %3614 = vdwg.mxu0
        %v3615 = vadd.f32 %v3369, %v3553
        %v3616 = vadd.f32 %v3370, %v3556
        %v3617 = vadd.f32 %v3371, %v3561
        %v3618 = vadd.f32 %v3372, %v3564
        %v3619 = vadd.f32 %v3373, %v3569
        %v3620 = vadd.f32 %v3374, %v3572
        %v3621 = vadd.f32 %v3375, %v3577
        %v3622 = vadd.f32 %v3376, %v3580
        %v3623 = vadd.f32 %v3377, %v3585
        %v3624 = vadd.f32 %v3378, %v3588
        %v3625 = vadd.f32 %v3379, %v3593
        %v3626 = vadd.f32 %v3380, %v3596
        %v3627 = vadd.f32 %v3381, %v3601
        %v3628 = vadd.f32 %v3382, %v3604
        %v3629 = vadd.f32 %v3383, %v3609
        %v3630 = vadd.f32 %v3384, %v3612
        %v3631 = vld [vmem:[%s3388] sm:$0xf]
        %v3632 = vld [vmem:[%s3388 + $0x4] sm:$0xf]
        %v3633 = vld [vmem:[%s3388 + $0x8] sm:$0x1]
        %v3634 = vld [vmem:[%s3388 + $0xc] sm:$0xf]
        %v3635 = vld [vmem:[%s3388 + $0x10] sm:$0xf]
        %v3636 = vld [vmem:[%s3388 + $0x14] sm:$0x1]
        %v3637 = vld [vmem:[%s3388 + $0x18] sm:$0xf]
        %v3638 = vld [vmem:[%s3388 + $0x1c] sm:$0xf]
        %v3639 = vld [vmem:[%s3388 + $0x20] sm:$0x1]
        %v3640 = vld [vmem:[%s3388 + $0x24] sm:$0xf]
        %v3641 = vld [vmem:[%s3388 + $0x28] sm:$0xf]
        %v3642 = vld [vmem:[%s3388 + $0x2c] sm:$0x1]
        %v3643 = vld [vmem:[%s3388 + $0x30] sm:$0xf]
        %v3644 = vld [vmem:[%s3388 + $0x34] sm:$0xf]
        %v3645 = vld [vmem:[%s3388 + $0x38] sm:$0x1]
        %v3646 = vld [vmem:[%s3388 + $0x3c] sm:$0xf]
        %v3647 = vld [vmem:[%s3388 + $0x40] sm:$0xf]
        %v3648 = vld [vmem:[%s3388 + $0x44] sm:$0x1]
        %v3649 = vld [vmem:[%s3388 + $0x48] sm:$0xf]
        %v3650 = vld [vmem:[%s3388 + $0x4c] sm:$0xf]
        %v3651 = vld [vmem:[%s3388 + $0x50] sm:$0x1]
        %v3652 = vld [vmem:[%s3388 + $0x54] sm:$0xf]
        %v3653 = vld [vmem:[%s3388 + $0x58] sm:$0xf]
        %v3654 = vld [vmem:[%s3388 + $0x5c] sm:$0x1]
        %v3656 = vshrl.u32 %v3631, 16
        %v3658 = vrot.slane %v3656, 4
        %v3659 = vshll.u32 %v3631, 16
        %v3661 = vrot.slane %v3659, 5
        %v3662 = vor.u32 %v3658, %v3661
        %v3663 = vrot.slane %v3662, 4
        %v3665 = vshll.u32 %v3632, 16
        %v3667 = vrot.slane %v3665, 5
        %v3668 = vsel %vm2512, %v3663, %v3667
        %v3669 = vshrl.u32 %v3632, 16
        %v3671 = vrot.slane %v3669, 4
        %v3672 = vor.u32 %v3671, %v3667
        %v3673 = vrot.slane %v3672, 4
        %v3675 = vshll.u32 %v3633, 16
        %v3677 = vrot.slane %v3675, 5
        %v3678 = vsel %vm2512, %v3673, %v3677
        %v3680 = vshrl.u32 %v3634, 16
        %v3682 = vrot.slane %v3680, 4
        %v3683 = vshll.u32 %v3634, 16
        %v3685 = vrot.slane %v3683, 5
        %v3686 = vor.u32 %v3682, %v3685
        %v3687 = vrot.slane %v3686, 4
        %v3689 = vshll.u32 %v3635, 16
        %v3691 = vrot.slane %v3689, 5
        %v3692 = vsel %vm2512, %v3687, %v3691
        %v3693 = vshrl.u32 %v3635, 16
        %v3695 = vrot.slane %v3693, 4
        %v3696 = vor.u32 %v3695, %v3691
        %v3697 = vrot.slane %v3696, 4
        %v3699 = vshll.u32 %v3636, 16
        %v3701 = vrot.slane %v3699, 5
        %v3702 = vsel %vm2512, %v3697, %v3701
        %v3704 = vshrl.u32 %v3637, 16
        %v3706 = vrot.slane %v3704, 4
        %v3707 = vshll.u32 %v3637, 16
        %v3709 = vrot.slane %v3707, 5
        %v3710 = vor.u32 %v3706, %v3709
        %v3711 = vrot.slane %v3710, 4
        %v3713 = vshll.u32 %v3638, 16
        %v3715 = vrot.slane %v3713, 5
        %v3716 = vsel %vm2512, %v3711, %v3715
        %v3717 = vshrl.u32 %v3638, 16
        %v3719 = vrot.slane %v3717, 4
        %v3720 = vor.u32 %v3719, %v3715
        %v3721 = vrot.slane %v3720, 4
        %v3723 = vshll.u32 %v3639, 16
        %v3725 = vrot.slane %v3723, 5
        %v3726 = vsel %vm2512, %v3721, %v3725
        %v3728 = vshrl.u32 %v3640, 16
        %v3730 = vrot.slane %v3728, 4
        %v3731 = vshll.u32 %v3640, 16
        %v3733 = vrot.slane %v3731, 5
        %v3734 = vor.u32 %v3730, %v3733
        %v3735 = vrot.slane %v3734, 4
        %v3737 = vshll.u32 %v3641, 16
        %v3739 = vrot.slane %v3737, 5
        %v3740 = vsel %vm2512, %v3735, %v3739
        %v3741 = vshrl.u32 %v3641, 16
        %v3743 = vrot.slane %v3741, 4
        %v3744 = vor.u32 %v3743, %v3739
        %v3745 = vrot.slane %v3744, 4
        %v3747 = vshll.u32 %v3642, 16
        %v3749 = vrot.slane %v3747, 5
        %v3750 = vsel %vm2512, %v3745, %v3749
        %v3752 = vshrl.u32 %v3643, 16
        %v3754 = vrot.slane %v3752, 4
        %v3755 = vshll.u32 %v3643, 16
        %v3757 = vrot.slane %v3755, 5
        %v3758 = vor.u32 %v3754, %v3757
        %v3759 = vrot.slane %v3758, 4
        %v3761 = vshll.u32 %v3644, 16
        %v3763 = vrot.slane %v3761, 5
        %v3764 = vsel %vm2512, %v3759, %v3763
        %v3765 = vshrl.u32 %v3644, 16
        %v3767 = vrot.slane %v3765, 4
        %v3768 = vor.u32 %v3767, %v3763
        %v3769 = vrot.slane %v3768, 4
        %v3771 = vshll.u32 %v3645, 16
        %v3773 = vrot.slane %v3771, 5
        %v3774 = vsel %vm2512, %v3769, %v3773
        %v3776 = vshrl.u32 %v3646, 16
        %v3778 = vrot.slane %v3776, 4
        %v3779 = vshll.u32 %v3646, 16
        %v3781 = vrot.slane %v3779, 5
        %v3782 = vor.u32 %v3778, %v3781
        %v3783 = vrot.slane %v3782, 4
        %v3785 = vshll.u32 %v3647, 16
        %v3787 = vrot.slane %v3785, 5
        %v3788 = vsel %vm2512, %v3783, %v3787
        %v3789 = vshrl.u32 %v3647, 16
        %v3791 = vrot.slane %v3789, 4
        %v3792 = vor.u32 %v3791, %v3787
        %v3793 = vrot.slane %v3792, 4
        %v3795 = vshll.u32 %v3648, 16
        %v3797 = vrot.slane %v3795, 5
        %v3798 = vsel %vm2512, %v3793, %v3797
        %v3800 = vshrl.u32 %v3649, 16
        %v3802 = vrot.slane %v3800, 4
        %v3803 = vshll.u32 %v3649, 16
        %v3805 = vrot.slane %v3803, 5
        %v3806 = vor.u32 %v3802, %v3805
        %v3807 = vrot.slane %v3806, 4
        %v3809 = vshll.u32 %v3650, 16
        %v3811 = vrot.slane %v3809, 5
        %v3812 = vsel %vm2512, %v3807, %v3811
        %v3813 = vshrl.u32 %v3650, 16
        %v3815 = vrot.slane %v3813, 4
        %v3816 = vor.u32 %v3815, %v3811
        %v3817 = vrot.slane %v3816, 4
        %v3819 = vshll.u32 %v3651, 16
        %v3821 = vrot.slane %v3819, 5
        %v3822 = vsel %vm2512, %v3817, %v3821
        %v3824 = vshrl.u32 %v3652, 16
        %v3826 = vrot.slane %v3824, 4
        %v3827 = vshll.u32 %v3652, 16
        %v3829 = vrot.slane %v3827, 5
        %v3830 = vor.u32 %v3826, %v3829
        %v3831 = vrot.slane %v3830, 4
        %v3833 = vshll.u32 %v3653, 16
        %v3835 = vrot.slane %v3833, 5
        %v3836 = vsel %vm2512, %v3831, %v3835
        %v3837 = vshrl.u32 %v3653, 16
        %v3839 = vrot.slane %v3837, 4
        %v3840 = vor.u32 %v3839, %v3835
        %v3841 = vrot.slane %v3840, 4
        %v3843 = vshll.u32 %v3654, 16
        %v3845 = vrot.slane %v3843, 5
        %v3846 = vsel %vm2512, %v3841, %v3845
        %s3847 = scalar_lea.vmem %s3, 256
        %v3848 = vld [vmem:[%s3847] sm:$0xf]
        %v3849 = vld [vmem:[%s3847 + $0x4] sm:$0xf]
        %v3850 = vld [vmem:[%s3847 + $0x8] sm:$0xf]
        %v3851 = vld [vmem:[%s3847 + $0xc] sm:$0xf]
        %v3852 = vld [vmem:[%s3847 + $0x10] sm:$0xf]
        %v3853 = vld [vmem:[%s3847 + $0x14] sm:$0xf]
        %v3854 = vld [vmem:[%s3847 + $0x18] sm:$0xf]
        %v3855 = vld [vmem:[%s3847 + $0x1c] sm:$0xf]
        %v3856 = vld [vmem:[%s3847 + $0x20] sm:$0xf]
        %v3857 = vld [vmem:[%s3847 + $0x24] sm:$0xf]
        %v3858 = vld [vmem:[%s3847 + $0x28] sm:$0xf]
        %v3859 = vld [vmem:[%s3847 + $0x2c] sm:$0xf]
        %v3860 = vld [vmem:[%s3847 + $0x30] sm:$0xf]
        %v3861 = vld [vmem:[%s3847 + $0x34] sm:$0xf]
        %v3862 = vld [vmem:[%s3847 + $0x38] sm:$0xf]
        %v3863 = vld [vmem:[%s3847 + $0x3c] sm:$0xf]
        %v3864 = vunpack.c.l.b16 %v3668
        %v3865 = vunpack.c.l.b16 %v3678
        %v3866 = vunpack.c.l.b16 %v3692
        %v3867 = vunpack.c.l.b16 %v3702
        %v3868 = vunpack.c.l.b16 %v3716
        %v3869 = vunpack.c.l.b16 %v3726
        %v3870 = vunpack.c.l.b16 %v3740
        %v3871 = vunpack.c.l.b16 %v3750
        %v3872 = vunpack.c.l.b16 %v3764
        %v3873 = vunpack.c.l.b16 %v3774
        %v3874 = vunpack.c.l.b16 %v3788
        %v3875 = vunpack.c.l.b16 %v3798
        %v3876 = vunpack.c.l.b16 %v3812
        %v3877 = vunpack.c.l.b16 %v3822
        %v3878 = vunpack.c.l.b16 %v3836
        %v3879 = vunpack.c.l.b16 %v3846
        %v3880 = vpack.c.b16 %v3865, %v3864
        %v3881 = vpack.c.b16 %v3867, %v3866
        %v3882 = vpack.c.b16 %v3869, %v3868
        %v3883 = vpack.c.b16 %v3871, %v3870
        %v3884 = vpack.c.b16 %v3873, %v3872
        %v3885 = vpack.c.b16 %v3875, %v3874
        %v3886 = vpack.c.b16 %v3877, %v3876
        %v3887 = vpack.c.b16 %v3879, %v3878
        %v3912 = vunpack.c.l.b16 %v3848
        %v3913 = vunpack.c.l.b16 %v3849
        %v3914 = vunpack.c.l.b16 %v3850
        %v3915 = vunpack.c.l.b16 %v3851
        %v3916 = vunpack.c.l.b16 %v3852
        %v3917 = vunpack.c.l.b16 %v3853
        %v3918 = vunpack.c.l.b16 %v3854
        %v3919 = vunpack.c.l.b16 %v3855
        %v3920 = vunpack.c.l.b16 %v3856
        %v3921 = vunpack.c.l.b16 %v3857
        %v3922 = vunpack.c.l.b16 %v3858
        %v3923 = vunpack.c.l.b16 %v3859
        %v3924 = vunpack.c.l.b16 %v3860
        %v3925 = vunpack.c.l.b16 %v3861
        %v3926 = vunpack.c.l.b16 %v3862
        %v3927 = vunpack.c.l.b16 %v3863
        %v3928 = vpack.c.b16 %v3913, %v3912
        %v3929 = vpack.c.b16 %v3915, %v3914
        %v3930 = vpack.c.b16 %v3917, %v3916
        %v3931 = vpack.c.b16 %v3919, %v3918
        %v3932 = vpack.c.b16 %v3921, %v3920
        %v3933 = vpack.c.b16 %v3923, %v3922
        %v3934 = vpack.c.b16 %v3925, %v3924
        %v3935 = vpack.c.b16 %v3927, %v3926
        %3944 = vmatprep.subr.bf16.mxu0 0
        %3945 = vmatpush1.bf16.msra.mxu0 %v3928
        %3946 = vmatprep.subr.bf16.mxu0 0
        %3947 = vmatpush1.bf16.msra.mxu0 %v3929
        %3948 = vmatprep.subr.bf16.mxu0 0
        %3949 = vmatpush1.bf16.msra.mxu0 %v3930
        %3950 = vmatprep.subr.bf16.mxu0 0
        %3951 = vmatpush1.bf16.msra.mxu0 %v3931
        %3952 = vmatprep.subr.bf16.mxu0 0
        %3953 = vmatpush1.bf16.msra.mxu0 %v3932
        %3954 = vmatprep.subr.bf16.mxu0 0
        %3955 = vmatpush1.bf16.msra.mxu0 %v3933
        %3956 = vmatprep.subr.bf16.mxu0 0
        %3957 = vmatpush1.bf16.msra.mxu0 %v3934
        %3958 = vmatprep.subr.bf16.mxu0 0
        %3959 = vmatpush1.bf16.msra.mxu0 %v3935
        %3960 = vmatprep.subr.bf16.mxu0 0
        %3961 = vmatpush1.bf16.msra.mxu0 0
        %3962 = vmatprep.subr.bf16.mxu0 0
        %3963 = vmatpush1.bf16.msra.mxu0 0
        %3964 = vmatprep.subr.bf16.mxu0 0
        %3965 = vmatpush1.bf16.msra.mxu0 0
        %3966 = vmatprep.subr.bf16.mxu0 0
        %3967 = vmatpush1.bf16.msra.mxu0 0
        %3968 = vmatprep.subr.bf16.mxu0 0
        %3969 = vmatpush1.bf16.msra.mxu0 0
        %3970 = vmatprep.subr.bf16.mxu0 0
        %3971 = vmatpush1.bf16.msra.mxu0 0
        %3972 = vmatprep.subr.bf16.mxu0 0
        %3973 = vmatpush1.bf16.msra.mxu0 0
        %3974 = vmatprep.subr.bf16.mxu0 0
        %3975 = vmatpush1.bf16.msra.mxu0 0
        %3976 = vmatprep.mubr.bf16.mxu0 0
        %3977 = vmatmul.mubr.bf16.gmra.mrb[0].mxu0 %v3880
        %v3978 = vpop.f32.mrb[0].mxu0
        %v3979 = vadd.f32 0.0, %v3978
        %v3980 = vpop.f32.mrb[0].mxu0
        %v3981 = vpop.f32.mrb[0].mxu0
        %v3982 = vadd.f32 0.0, %v3981
        %v3983 = vpop.f32.mrb[0].mxu0
        %3984 = vmatprep.mubr.bf16.mxu0 0
        %3985 = vmatmul.mubr.bf16.gmra.mrb[0].mxu0 %v3881
        %v3986 = vpop.f32.mrb[0].mxu0
        %v3987 = vadd.f32 0.0, %v3986
        %v3988 = vpop.f32.mrb[0].mxu0
        %v3989 = vpop.f32.mrb[0].mxu0
        %v3990 = vadd.f32 0.0, %v3989
        %v3991 = vpop.f32.mrb[0].mxu0
        %3992 = vmatprep.mubr.bf16.mxu0 0
        %3993 = vmatmul.mubr.bf16.gmra.mrb[0].mxu0 %v3882
        %v3994 = vpop.f32.mrb[0].mxu0
        %v3995 = vadd.f32 0.0, %v3994
        %v3996 = vpop.f32.mrb[0].mxu0
        %v3997 = vpop.f32.mrb[0].mxu0
        %v3998 = vadd.f32 0.0, %v3997
        %v3999 = vpop.f32.mrb[0].mxu0
        %4000 = vmatprep.mubr.bf16.mxu0 0
        %4001 = vmatmul.mubr.bf16.gmra.mrb[0].mxu0 %v3883
        %v4002 = vpop.f32.mrb[0].mxu0
        %v4003 = vadd.f32 0.0, %v4002
        %v4004 = vpop.f32.mrb[0].mxu0
        %v4005 = vpop.f32.mrb[0].mxu0
        %v4006 = vadd.f32 0.0, %v4005
        %v4007 = vpop.f32.mrb[0].mxu0
        %4008 = vmatprep.mubr.bf16.mxu0 0
        %4009 = vmatmul.mubr.bf16.gmra.mrb[0].mxu0 %v3884
        %v4010 = vpop.f32.mrb[0].mxu0
        %v4011 = vadd.f32 0.0, %v4010
        %v4012 = vpop.f32.mrb[0].mxu0
        %v4013 = vpop.f32.mrb[0].mxu0
        %v4014 = vadd.f32 0.0, %v4013
        %v4015 = vpop.f32.mrb[0].mxu0
        %4016 = vmatprep.mubr.bf16.mxu0 0
        %4017 = vmatmul.mubr.bf16.gmra.mrb[0].mxu0 %v3885
        %v4018 = vpop.f32.mrb[0].mxu0
        %v4019 = vadd.f32 0.0, %v4018
        %v4020 = vpop.f32.mrb[0].mxu0
        %v4021 = vpop.f32.mrb[0].mxu0
        %v4022 = vadd.f32 0.0, %v4021
        %v4023 = vpop.f32.mrb[0].mxu0
        %4024 = vmatprep.mubr.bf16.mxu0 0
        %4025 = vmatmul.mubr.bf16.gmra.mrb[0].mxu0 %v3886
        %v4026 = vpop.f32.mrb[0].mxu0
        %v4027 = vadd.f32 0.0, %v4026
        %v4028 = vpop.f32.mrb[0].mxu0
        %v4029 = vpop.f32.mrb[0].mxu0
        %v4030 = vadd.f32 0.0, %v4029
        %v4031 = vpop.f32.mrb[0].mxu0
        %4032 = vmatprep.mubr.bf16.mxu0 0
        %4033 = vmatmul.mubr.bf16.gmra.mrb[0].mxu0 %v3887
        %v4034 = vpop.f32.mrb[0].mxu0
        %v4035 = vadd.f32 0.0, %v4034
        %v4036 = vpop.f32.mrb[0].mxu0
        %v4037 = vpop.f32.mrb[0].mxu0
        %v4038 = vadd.f32 0.0, %v4037
        %v4039 = vpop.f32.mrb[0].mxu0
        %4040 = vdwg.mxu0
        %v4041 = vadd.f32 %v3615, %v3979
        %v4042 = vadd.f32 %v3616, %v3982
        %v4043 = vadd.f32 %v3617, %v3987
        %v4044 = vadd.f32 %v3618, %v3990
        %v4045 = vadd.f32 %v3619, %v3995
        %v4046 = vadd.f32 %v3620, %v3998
        %v4047 = vadd.f32 %v3621, %v4003
        %v4048 = vadd.f32 %v3622, %v4006
        %v4049 = vadd.f32 %v3623, %v4011
        %v4050 = vadd.f32 %v3624, %v4014
        %v4051 = vadd.f32 %v3625, %v4019
        %v4052 = vadd.f32 %v3626, %v4022
        %v4053 = vadd.f32 %v3627, %v4027
        %v4054 = vadd.f32 %v3628, %v4030
        %v4055 = vadd.f32 %v3629, %v4035
        %v4056 = vadd.f32 %v3630, %v4038
        %v4057 = vld [vmem:[%s3388] sm:$0xe]
        %v4058 = vld [vmem:[%s3388 + $0xc] sm:$0xe]
        %v4059 = vld [vmem:[%s3388 + $0x18] sm:$0xe]
        %v4060 = vld [vmem:[%s3388 + $0x24] sm:$0xe]
        %v4061 = vld [vmem:[%s3388 + $0x30] sm:$0xe]
        %v4062 = vld [vmem:[%s3388 + $0x3c] sm:$0xe]
        %v4063 = vld [vmem:[%s3388 + $0x48] sm:$0xe]
        %v4064 = vld [vmem:[%s3388 + $0x54] sm:$0xe]
        %v4089 = vrot.slane %v4057, 5
        %v4090 = vrot.slane %v4089, 4
        %v4091 = vrot.slane %v3632, 5
        %v4092 = vsel %vm3118, %v4090, %v4091
        %v4093 = vrot.slane %v4091, 4
        %v4094 = vrot.slane %v3633, 5
        %v4095 = vsel %vm3118, %v4093, %v4094
        %v4096 = vrot.slane %v4058, 5
        %v4097 = vrot.slane %v4096, 4
        %v4098 = vrot.slane %v3635, 5
        %v4099 = vsel %vm3118, %v4097, %v4098
        %v4100 = vrot.slane %v4098, 4
        %v4101 = vrot.slane %v3636, 5
        %v4102 = vsel %vm3118, %v4100, %v4101
        %v4103 = vrot.slane %v4059, 5
        %v4104 = vrot.slane %v4103, 4
        %v4105 = vrot.slane %v3638, 5
        %v4106 = vsel %vm3118, %v4104, %v4105
        %v4107 = vrot.slane %v4105, 4
        %v4108 = vrot.slane %v3639, 5
        %v4109 = vsel %vm3118, %v4107, %v4108
        %v4110 = vrot.slane %v4060, 5
        %v4111 = vrot.slane %v4110, 4
        %v4112 = vrot.slane %v3641, 5
        %v4113 = vsel %vm3118, %v4111, %v4112
        %v4114 = vrot.slane %v4112, 4
        %v4115 = vrot.slane %v3642, 5
        %v4116 = vsel %vm3118, %v4114, %v4115
        %v4117 = vrot.slane %v4061, 5
        %v4118 = vrot.slane %v4117, 4
        %v4119 = vrot.slane %v3644, 5
        %v4120 = vsel %vm3118, %v4118, %v4119
        %v4121 = vrot.slane %v4119, 4
        %v4122 = vrot.slane %v3645, 5
        %v4123 = vsel %vm3118, %v4121, %v4122
        %v4124 = vrot.slane %v4062, 5
        %v4125 = vrot.slane %v4124, 4
        %v4126 = vrot.slane %v3647, 5
        %v4127 = vsel %vm3118, %v4125, %v4126
        %v4128 = vrot.slane %v4126, 4
        %v4129 = vrot.slane %v3648, 5
        %v4130 = vsel %vm3118, %v4128, %v4129
        %v4131 = vrot.slane %v4063, 5
        %v4132 = vrot.slane %v4131, 4
        %v4133 = vrot.slane %v3650, 5
        %v4134 = vsel %vm3118, %v4132, %v4133
        %v4135 = vrot.slane %v4133, 4
        %v4136 = vrot.slane %v3651, 5
        %v4137 = vsel %vm3118, %v4135, %v4136
        %v4138 = vrot.slane %v4064, 5
        %v4139 = vrot.slane %v4138, 4
        %v4140 = vrot.slane %v3653, 5
        %v4141 = vsel %vm3118, %v4139, %v4140
        %v4142 = vrot.slane %v4140, 4
        %v4143 = vrot.slane %v3654, 5
        %v4144 = vsel %vm3118, %v4142, %v4143
        %s4145 = scalar_lea.vmem %s3, 320
        %v4146 = vld [vmem:[%s4145] sm:$0xf]
        %v4147 = vld [vmem:[%s4145 + $0x4] sm:$0xf]
        %v4148 = vld [vmem:[%s4145 + $0x8] sm:$0xf]
        %v4149 = vld [vmem:[%s4145 + $0xc] sm:$0xf]
        %v4150 = vld [vmem:[%s4145 + $0x10] sm:$0xf]
        %v4151 = vld [vmem:[%s4145 + $0x14] sm:$0xf]
        %v4152 = vld [vmem:[%s4145 + $0x18] sm:$0xf]
        %v4153 = vld [vmem:[%s4145 + $0x1c] sm:$0xf]
        %v4154 = vld [vmem:[%s4145 + $0x20] sm:$0xf]
        %v4155 = vld [vmem:[%s4145 + $0x24] sm:$0xf]
        %v4156 = vld [vmem:[%s4145 + $0x28] sm:$0xf]
        %v4157 = vld [vmem:[%s4145 + $0x2c] sm:$0xf]
        %v4158 = vld [vmem:[%s4145 + $0x30] sm:$0xf]
        %v4159 = vld [vmem:[%s4145 + $0x34] sm:$0xf]
        %v4160 = vld [vmem:[%s4145 + $0x38] sm:$0xf]
        %v4161 = vld [vmem:[%s4145 + $0x3c] sm:$0xf]
        %v4162 = vunpack.c.l.b16 %v4092
        %v4163 = vunpack.c.l.b16 %v4095
        %v4164 = vunpack.c.l.b16 %v4099
        %v4165 = vunpack.c.l.b16 %v4102
        %v4166 = vunpack.c.l.b16 %v4106
        %v4167 = vunpack.c.l.b16 %v4109
        %v4168 = vunpack.c.l.b16 %v4113
        %v4169 = vunpack.c.l.b16 %v4116
        %v4170 = vunpack.c.l.b16 %v4120
        %v4171 = vunpack.c.l.b16 %v4123
        %v4172 = vunpack.c.l.b16 %v4127
        %v4173 = vunpack.c.l.b16 %v4130
        %v4174 = vunpack.c.l.b16 %v4134
        %v4175 = vunpack.c.l.b16 %v4137
        %v4176 = vunpack.c.l.b16 %v4141
        %v4177 = vunpack.c.l.b16 %v4144
        %v4178 = vpack.c.b16 %v4163, %v4162
        %v4179 = vpack.c.b16 %v4165, %v4164
        %v4180 = vpack.c.b16 %v4167, %v4166
        %v4181 = vpack.c.b16 %v4169, %v4168
        %v4182 = vpack.c.b16 %v4171, %v4170
        %v4183 = vpack.c.b16 %v4173, %v4172
        %v4184 = vpack.c.b16 %v4175, %v4174
        %v4185 = vpack.c.b16 %v4177, %v4176
        %v4210 = vunpack.c.l.b16 %v4146
        %v4211 = vunpack.c.l.b16 %v4147
        %v4212 = vunpack.c.l.b16 %v4148
        %v4213 = vunpack.c.l.b16 %v4149
        %v4214 = vunpack.c.l.b16 %v4150
        %v4215 = vunpack.c.l.b16 %v4151
        %v4216 = vunpack.c.l.b16 %v4152
        %v4217 = vunpack.c.l.b16 %v4153
        %v4218 = vunpack.c.l.b16 %v4154
        %v4219 = vunpack.c.l.b16 %v4155
        %v4220 = vunpack.c.l.b16 %v4156
        %v4221 = vunpack.c.l.b16 %v4157
        %v4222 = vunpack.c.l.b16 %v4158
        %v4223 = vunpack.c.l.b16 %v4159
        %v4224 = vunpack.c.l.b16 %v4160
        %v4225 = vunpack.c.l.b16 %v4161
        %v4226 = vpack.c.b16 %v4211, %v4210
        %v4227 = vpack.c.b16 %v4213, %v4212
        %v4228 = vpack.c.b16 %v4215, %v4214
        %v4229 = vpack.c.b16 %v4217, %v4216
        %v4230 = vpack.c.b16 %v4219, %v4218
        %v4231 = vpack.c.b16 %v4221, %v4220
        %v4232 = vpack.c.b16 %v4223, %v4222
        %v4233 = vpack.c.b16 %v4225, %v4224
        %4242 = vmatprep.subr.bf16.mxu0 0
        %4243 = vmatpush1.bf16.msra.mxu0 %v4226
        %4244 = vmatprep.subr.bf16.mxu0 0
        %4245 = vmatpush1.bf16.msra.mxu0 %v4227
        %4246 = vmatprep.subr.bf16.mxu0 0
        %4247 = vmatpush1.bf16.msra.mxu0 %v4228
        %4248 = vmatprep.subr.bf16.mxu0 0
        %4249 = vmatpush1.bf16.msra.mxu0 %v4229
        %4250 = vmatprep.subr.bf16.mxu0 0
        %4251 = vmatpush1.bf16.msra.mxu0 %v4230
        %4252 = vmatprep.subr.bf16.mxu0 0
        %4253 = vmatpush1.bf16.msra.mxu0 %v4231
        %4254 = vmatprep.subr.bf16.mxu0 0
        %4255 = vmatpush1.bf16.msra.mxu0 %v4232
        %4256 = vmatprep.subr.bf16.mxu0 0
        %4257 = vmatpush1.bf16.msra.mxu0 %v4233
        %4258 = vmatprep.subr.bf16.mxu0 0
        %4259 = vmatpush1.bf16.msra.mxu0 0
        %4260 = vmatprep.subr.bf16.mxu0 0
        %4261 = vmatpush1.bf16.msra.mxu0 0
        %4262 = vmatprep.subr.bf16.mxu0 0
        %4263 = vmatpush1.bf16.msra.mxu0 0
        %4264 = vmatprep.subr.bf16.mxu0 0
        %4265 = vmatpush1.bf16.msra.mxu0 0
        %4266 = vmatprep.subr.bf16.mxu0 0
        %4267 = vmatpush1.bf16.msra.mxu0 0
        %4268 = vmatprep.subr.bf16.mxu0 0
        %4269 = vmatpush1.bf16.msra.mxu0 0
        %4270 = vmatprep.subr.bf16.mxu0 0
        %4271 = vmatpush1.bf16.msra.mxu0 0
        %4272 = vmatprep.subr.bf16.mxu0 0
        %4273 = vmatpush1.bf16.msra.mxu0 0
        %4274 = vmatprep.mubr.bf16.mxu0 0
        %4275 = vmatmul.mubr.bf16.gmra.mrb[0].mxu0 %v4178
        %v4276 = vpop.f32.mrb[0].mxu0
        %v4277 = vadd.f32 0.0, %v4276
        %v4278 = vpop.f32.mrb[0].mxu0
        %v4279 = vpop.f32.mrb[0].mxu0
        %v4280 = vadd.f32 0.0, %v4279
        %v4281 = vpop.f32.mrb[0].mxu0
        %4282 = vmatprep.mubr.bf16.mxu0 0
        %4283 = vmatmul.mubr.bf16.gmra.mrb[0].mxu0 %v4179
        %v4284 = vpop.f32.mrb[0].mxu0
        %v4285 = vadd.f32 0.0, %v4284
        %v4286 = vpop.f32.mrb[0].mxu0
        %v4287 = vpop.f32.mrb[0].mxu0
        %v4288 = vadd.f32 0.0, %v4287
        %v4289 = vpop.f32.mrb[0].mxu0
        %4290 = vmatprep.mubr.bf16.mxu0 0
        %4291 = vmatmul.mubr.bf16.gmra.mrb[0].mxu0 %v4180
        %v4292 = vpop.f32.mrb[0].mxu0
        %v4293 = vadd.f32 0.0, %v4292
        %v4294 = vpop.f32.mrb[0].mxu0
        %v4295 = vpop.f32.mrb[0].mxu0
        %v4296 = vadd.f32 0.0, %v4295
        %v4297 = vpop.f32.mrb[0].mxu0
        %4298 = vmatprep.mubr.bf16.mxu0 0
        %4299 = vmatmul.mubr.bf16.gmra.mrb[0].mxu0 %v4181
        %v4300 = vpop.f32.mrb[0].mxu0
        %v4301 = vadd.f32 0.0, %v4300
        %v4302 = vpop.f32.mrb[0].mxu0
        %v4303 = vpop.f32.mrb[0].mxu0
        %v4304 = vadd.f32 0.0, %v4303
        %v4305 = vpop.f32.mrb[0].mxu0
        %4306 = vmatprep.mubr.bf16.mxu0 0
        %4307 = vmatmul.mubr.bf16.gmra.mrb[0].mxu0 %v4182
        %v4308 = vpop.f32.mrb[0].mxu0
        %v4309 = vadd.f32 0.0, %v4308
        %v4310 = vpop.f32.mrb[0].mxu0
        %v4311 = vpop.f32.mrb[0].mxu0
        %v4312 = vadd.f32 0.0, %v4311
        %v4313 = vpop.f32.mrb[0].mxu0
        %4314 = vmatprep.mubr.bf16.mxu0 0
        %4315 = vmatmul.mubr.bf16.gmra.mrb[0].mxu0 %v4183
        %v4316 = vpop.f32.mrb[0].mxu0
        %v4317 = vadd.f32 0.0, %v4316
        %v4318 = vpop.f32.mrb[0].mxu0
        %v4319 = vpop.f32.mrb[0].mxu0
        %v4320 = vadd.f32 0.0, %v4319
        %v4321 = vpop.f32.mrb[0].mxu0
        %4322 = vmatprep.mubr.bf16.mxu0 0
        %4323 = vmatmul.mubr.bf16.gmra.mrb[0].mxu0 %v4184
        %v4324 = vpop.f32.mrb[0].mxu0
        %v4325 = vadd.f32 0.0, %v4324
        %v4326 = vpop.f32.mrb[0].mxu0
        %v4327 = vpop.f32.mrb[0].mxu0
        %v4328 = vadd.f32 0.0, %v4327
        %v4329 = vpop.f32.mrb[0].mxu0
        %4330 = vmatprep.mubr.bf16.mxu0 0
        %4331 = vmatmul.mubr.bf16.gmra.mrb[0].mxu0 %v4185
        %v4332 = vpop.f32.mrb[0].mxu0
        %v4333 = vadd.f32 0.0, %v4332
        %v4334 = vpop.f32.mrb[0].mxu0
        %v4335 = vpop.f32.mrb[0].mxu0
        %v4336 = vadd.f32 0.0, %v4335
        %v4337 = vpop.f32.mrb[0].mxu0
        %4338 = vdwg.mxu0
        %v4339 = vadd.f32 %v4041, %v4277
        %v4340 = vadd.f32 %v4042, %v4280
        %v4341 = vadd.f32 %v4043, %v4285
        %v4342 = vadd.f32 %v4044, %v4288
        %v4343 = vadd.f32 %v4045, %v4293
        %v4344 = vadd.f32 %v4046, %v4296
        %v4345 = vadd.f32 %v4047, %v4301
        %v4346 = vadd.f32 %v4048, %v4304
        %v4347 = vadd.f32 %v4049, %v4309
        %v4348 = vadd.f32 %v4050, %v4312
        %v4349 = vadd.f32 %v4051, %v4317
        %v4350 = vadd.f32 %v4052, %v4320
        %v4351 = vadd.f32 %v4053, %v4325
        %v4352 = vadd.f32 %v4054, %v4328
        %v4353 = vadd.f32 %v4055, %v4333
        %v4354 = vadd.f32 %v4056, %v4336
        %s4355 = sadd.s32 %s2466, 2
        %s4356 = smul.u32 %s4355, 3
        %s4357 = smul.addr %s4356, 4
        %s4358 = scalar_lea.vmem [#allocation2], %s4357
        %v4359 = vld [vmem:[%s4358] sm:$0xf]
        %v4360 = vld [vmem:[%s4358 + $0x4] sm:$0xf]
        %v4361 = vld [vmem:[%s4358 + $0xc] sm:$0xf]
        %v4362 = vld [vmem:[%s4358 + $0x10] sm:$0xf]
        %v4363 = vld [vmem:[%s4358 + $0x18] sm:$0xf]
        %v4364 = vld [vmem:[%s4358 + $0x1c] sm:$0xf]
        %v4365 = vld [vmem:[%s4358 + $0x24] sm:$0xf]
        %v4366 = vld [vmem:[%s4358 + $0x28] sm:$0xf]
        %v4367 = vld [vmem:[%s4358 + $0x30] sm:$0xf]
        %v4368 = vld [vmem:[%s4358 + $0x34] sm:$0xf]
        %v4369 = vld [vmem:[%s4358 + $0x3c] sm:$0xf]
        %v4370 = vld [vmem:[%s4358 + $0x40] sm:$0xf]
        %v4371 = vld [vmem:[%s4358 + $0x48] sm:$0xf]
        %v4372 = vld [vmem:[%s4358 + $0x4c] sm:$0xf]
        %v4373 = vld [vmem:[%s4358 + $0x54] sm:$0xf]
        %v4374 = vld [vmem:[%s4358 + $0x58] sm:$0xf]
        %s4375 = scalar_lea.vmem %s3, 384
        %v4376 = vld [vmem:[%s4375] sm:$0xf]
        %v4377 = vld [vmem:[%s4375 + $0x4] sm:$0xf]
        %v4378 = vld [vmem:[%s4375 + $0x8] sm:$0xf]
        %v4379 = vld [vmem:[%s4375 + $0xc] sm:$0xf]
        %v4380 = vld [vmem:[%s4375 + $0x10] sm:$0xf]
        %v4381 = vld [vmem:[%s4375 + $0x14] sm:$0xf]
        %v4382 = vld [vmem:[%s4375 + $0x18] sm:$0xf]
        %v4383 = vld [vmem:[%s4375 + $0x1c] sm:$0xf]
        %v4384 = vld [vmem:[%s4375 + $0x20] sm:$0xf]
        %v4385 = vld [vmem:[%s4375 + $0x24] sm:$0xf]
        %v4386 = vld [vmem:[%s4375 + $0x28] sm:$0xf]
        %v4387 = vld [vmem:[%s4375 + $0x2c] sm:$0xf]
        %v4388 = vld [vmem:[%s4375 + $0x30] sm:$0xf]
        %v4389 = vld [vmem:[%s4375 + $0x34] sm:$0xf]
        %v4390 = vld [vmem:[%s4375 + $0x38] sm:$0xf]
        %v4391 = vld [vmem:[%s4375 + $0x3c] sm:$0xf]
        %v4408 = vunpack.c.l.b16 %v4359
        %v4409 = vunpack.c.l.b16 %v4360
        %v4410 = vunpack.c.l.b16 %v4361
        %v4411 = vunpack.c.l.b16 %v4362
        %v4412 = vunpack.c.l.b16 %v4363
        %v4413 = vunpack.c.l.b16 %v4364
        %v4414 = vunpack.c.l.b16 %v4365
        %v4415 = vunpack.c.l.b16 %v4366
        %v4416 = vunpack.c.l.b16 %v4367
        %v4417 = vunpack.c.l.b16 %v4368
        %v4418 = vunpack.c.l.b16 %v4369
        %v4419 = vunpack.c.l.b16 %v4370
        %v4420 = vunpack.c.l.b16 %v4371
        %v4421 = vunpack.c.l.b16 %v4372
        %v4422 = vunpack.c.l.b16 %v4373
        %v4423 = vunpack.c.l.b16 %v4374
        %v4424 = vpack.c.b16 %v4409, %v4408
        %v4425 = vpack.c.b16 %v4411, %v4410
        %v4426 = vpack.c.b16 %v4413, %v4412
        %v4427 = vpack.c.b16 %v4415, %v4414
        %v4428 = vpack.c.b16 %v4417, %v4416
        %v4429 = vpack.c.b16 %v4419, %v4418
        %v4430 = vpack.c.b16 %v4421, %v4420
        %v4431 = vpack.c.b16 %v4423, %v4422
        %v4456 = vunpack.c.l.b16 %v4376
        %v4457 = vunpack.c.l.b16 %v4377
        %v4458 = vunpack.c.l.b16 %v4378
        %v4459 = vunpack.c.l.b16 %v4379
        %v4460 = vunpack.c.l.b16 %v4380
        %v4461 = vunpack.c.l.b16 %v4381
        %v4462 = vunpack.c.l.b16 %v4382
        %v4463 = vunpack.c.l.b16 %v4383
        %v4464 = vunpack.c.l.b16 %v4384
        %v4465 = vunpack.c.l.b16 %v4385
        %v4466 = vunpack.c.l.b16 %v4386
        %v4467 = vunpack.c.l.b16 %v4387
        %v4468 = vunpack.c.l.b16 %v4388
        %v4469 = vunpack.c.l.b16 %v4389
        %v4470 = vunpack.c.l.b16 %v4390
        %v4471 = vunpack.c.l.b16 %v4391
        %v4472 = vpack.c.b16 %v4457, %v4456
        %v4473 = vpack.c.b16 %v4459, %v4458
        %v4474 = vpack.c.b16 %v4461, %v4460
        %v4475 = vpack.c.b16 %v4463, %v4462
        %v4476 = vpack.c.b16 %v4465, %v4464
        %v4477 = vpack.c.b16 %v4467, %v4466
        %v4478 = vpack.c.b16 %v4469, %v4468
        %v4479 = vpack.c.b16 %v4471, %v4470
        %4488 = vmatprep.subr.bf16.mxu0 0
        %4489 = vmatpush1.bf16.msra.mxu0 %v4472
        %4490 = vmatprep.subr.bf16.mxu0 0
        %4491 = vmatpush1.bf16.msra.mxu0 %v4473
        %4492 = vmatprep.subr.bf16.mxu0 0
        %4493 = vmatpush1.bf16.msra.mxu0 %v4474
        %4494 = vmatprep.subr.bf16.mxu0 0
        %4495 = vmatpush1.bf16.msra.mxu0 %v4475
        %4496 = vmatprep.subr.bf16.mxu0 0
        %4497 = vmatpush1.bf16.msra.mxu0 %v4476
        %4498 = vmatprep.subr.bf16.mxu0 0
        %4499 = vmatpush1.bf16.msra.mxu0 %v4477
        %4500 = vmatprep.subr.bf16.mxu0 0
        %4501 = vmatpush1.bf16.msra.mxu0 %v4478
        %4502 = vmatprep.subr.bf16.mxu0 0
        %4503 = vmatpush1.bf16.msra.mxu0 %v4479
        %4504 = vmatprep.subr.bf16.mxu0 0
        %4505 = vmatpush1.bf16.msra.mxu0 0
        %4506 = vmatprep.subr.bf16.mxu0 0
        %4507 = vmatpush1.bf16.msra.mxu0 0
        %4508 = vmatprep.subr.bf16.mxu0 0
        %4509 = vmatpush1.bf16.msra.mxu0 0
        %4510 = vmatprep.subr.bf16.mxu0 0
        %4511 = vmatpush1.bf16.msra.mxu0 0
        %4512 = vmatprep.subr.bf16.mxu0 0
        %4513 = vmatpush1.bf16.msra.mxu0 0
        %4514 = vmatprep.subr.bf16.mxu0 0
        %4515 = vmatpush1.bf16.msra.mxu0 0
        %4516 = vmatprep.subr.bf16.mxu0 0
        %4517 = vmatpush1.bf16.msra.mxu0 0
        %4518 = vmatprep.subr.bf16.mxu0 0
        %4519 = vmatpush1.bf16.msra.mxu0 0
        %4520 = vmatprep.mubr.bf16.mxu0 0
        %4521 = vmatmul.mubr.bf16.gmra.mrb[0].mxu0 %v4424
        %v4522 = vpop.f32.mrb[0].mxu0
        %v4523 = vadd.f32 0.0, %v4522
        %v4524 = vpop.f32.mrb[0].mxu0
        %v4525 = vpop.f32.mrb[0].mxu0
        %v4526 = vadd.f32 0.0, %v4525
        %v4527 = vpop.f32.mrb[0].mxu0
        %4528 = vmatprep.mubr.bf16.mxu0 0
        %4529 = vmatmul.mubr.bf16.gmra.mrb[0].mxu0 %v4425
        %v4530 = vpop.f32.mrb[0].mxu0
        %v4531 = vadd.f32 0.0, %v4530
        %v4532 = vpop.f32.mrb[0].mxu0
        %v4533 = vpop.f32.mrb[0].mxu0
        %v4534 = vadd.f32 0.0, %v4533
        %v4535 = vpop.f32.mrb[0].mxu0
        %4536 = vmatprep.mubr.bf16.mxu0 0
        %4537 = vmatmul.mubr.bf16.gmra.mrb[0].mxu0 %v4426
        %v4538 = vpop.f32.mrb[0].mxu0
        %v4539 = vadd.f32 0.0, %v4538
        %v4540 = vpop.f32.mrb[0].mxu0
        %v4541 = vpop.f32.mrb[0].mxu0
        %v4542 = vadd.f32 0.0, %v4541
        %v4543 = vpop.f32.mrb[0].mxu0
        %4544 = vmatprep.mubr.bf16.mxu0 0
        %4545 = vmatmul.mubr.bf16.gmra.mrb[0].mxu0 %v4427
        %v4546 = vpop.f32.mrb[0].mxu0
        %v4547 = vadd.f32 0.0, %v4546
        %v4548 = vpop.f32.mrb[0].mxu0
        %v4549 = vpop.f32.mrb[0].mxu0
        %v4550 = vadd.f32 0.0, %v4549
        %v4551 = vpop.f32.mrb[0].mxu0
        %4552 = vmatprep.mubr.bf16.mxu0 0
        %4553 = vmatmul.mubr.bf16.gmra.mrb[0].mxu0 %v4428
        %v4554 = vpop.f32.mrb[0].mxu0
        %v4555 = vadd.f32 0.0, %v4554
        %v4556 = vpop.f32.mrb[0].mxu0
        %v4557 = vpop.f32.mrb[0].mxu0
        %v4558 = vadd.f32 0.0, %v4557
        %v4559 = vpop.f32.mrb[0].mxu0
        %4560 = vmatprep.mubr.bf16.mxu0 0
        %4561 = vmatmul.mubr.bf16.gmra.mrb[0].mxu0 %v4429
        %v4562 = vpop.f32.mrb[0].mxu0
        %v4563 = vadd.f32 0.0, %v4562
        %v4564 = vpop.f32.mrb[0].mxu0
        %v4565 = vpop.f32.mrb[0].mxu0
        %v4566 = vadd.f32 0.0, %v4565
        %v4567 = vpop.f32.mrb[0].mxu0
        %4568 = vmatprep.mubr.bf16.mxu0 0
        %4569 = vmatmul.mubr.bf16.gmra.mrb[0].mxu0 %v4430
        %v4570 = vpop.f32.mrb[0].mxu0
        %v4571 = vadd.f32 0.0, %v4570
        %v4572 = vpop.f32.mrb[0].mxu0
        %v4573 = vpop.f32.mrb[0].mxu0
        %v4574 = vadd.f32 0.0, %v4573
        %v4575 = vpop.f32.mrb[0].mxu0
        %4576 = vmatprep.mubr.bf16.mxu0 0
        %4577 = vmatmul.mubr.bf16.gmra.mrb[0].mxu0 %v4431
        %v4578 = vpop.f32.mrb[0].mxu0
        %v4579 = vadd.f32 0.0, %v4578
        %v4580 = vpop.f32.mrb[0].mxu0
        %v4581 = vpop.f32.mrb[0].mxu0
        %v4582 = vadd.f32 0.0, %v4581
        %v4583 = vpop.f32.mrb[0].mxu0
        %4584 = vdwg.mxu0
        %v4585 = vadd.f32 %v4339, %v4523
        %v4586 = vadd.f32 %v4340, %v4526
        %v4587 = vadd.f32 %v4341, %v4531
        %v4588 = vadd.f32 %v4342, %v4534
        %v4589 = vadd.f32 %v4343, %v4539
        %v4590 = vadd.f32 %v4344, %v4542
        %v4591 = vadd.f32 %v4345, %v4547
        %v4592 = vadd.f32 %v4346, %v4550
        %v4593 = vadd.f32 %v4347, %v4555
        %v4594 = vadd.f32 %v4348, %v4558
        %v4595 = vadd.f32 %v4349, %v4563
        %v4596 = vadd.f32 %v4350, %v4566
        %v4597 = vadd.f32 %v4351, %v4571
        %v4598 = vadd.f32 %v4352, %v4574
        %v4599 = vadd.f32 %v4353, %v4579
        %v4600 = vadd.f32 %v4354, %v4582
        %v4601 = vld [vmem:[%s4358] sm:$0xf]
        %v4602 = vld [vmem:[%s4358 + $0x4] sm:$0xf]
        %v4603 = vld [vmem:[%s4358 + $0x8] sm:$0x1]
        %v4604 = vld [vmem:[%s4358 + $0xc] sm:$0xf]
        %v4605 = vld [vmem:[%s4358 + $0x10] sm:$0xf]
        %v4606 = vld [vmem:[%s4358 + $0x14] sm:$0x1]
        %v4607 = vld [vmem:[%s4358 + $0x18] sm:$0xf]
        %v4608 = vld [vmem:[%s4358 + $0x1c] sm:$0xf]
        %v4609 = vld [vmem:[%s4358 + $0x20] sm:$0x1]
        %v4610 = vld [vmem:[%s4358 + $0x24] sm:$0xf]
        %v4611 = vld [vmem:[%s4358 + $0x28] sm:$0xf]
        %v4612 = vld [vmem:[%s4358 + $0x2c] sm:$0x1]
        %v4613 = vld [vmem:[%s4358 + $0x30] sm:$0xf]
        %v4614 = vld [vmem:[%s4358 + $0x34] sm:$0xf]
        %v4615 = vld [vmem:[%s4358 + $0x38] sm:$0x1]
        %v4616 = vld [vmem:[%s4358 + $0x3c] sm:$0xf]
        %v4617 = vld [vmem:[%s4358 + $0x40] sm:$0xf]
        %v4618 = vld [vmem:[%s4358 + $0x44] sm:$0x1]
        %v4619 = vld [vmem:[%s4358 + $0x48] sm:$0xf]
        %v4620 = vld [vmem:[%s4358 + $0x4c] sm:$0xf]
        %v4621 = vld [vmem:[%s4358 + $0x50] sm:$0x1]
        %v4622 = vld [vmem:[%s4358 + $0x54] sm:$0xf]
        %v4623 = vld [vmem:[%s4358 + $0x58] sm:$0xf]
        %v4624 = vld [vmem:[%s4358 + $0x5c] sm:$0x1]
        %v4626 = vshrl.u32 %v4601, 16
        %v4628 = vrot.slane %v4626, 4
        %v4629 = vshll.u32 %v4601, 16
        %v4631 = vrot.slane %v4629, 5
        %v4632 = vor.u32 %v4628, %v4631
        %v4633 = vrot.slane %v4632, 4
        %v4635 = vshll.u32 %v4602, 16
        %v4637 = vrot.slane %v4635, 5
        %v4638 = vsel %vm2512, %v4633, %v4637
        %v4639 = vshrl.u32 %v4602, 16
        %v4641 = vrot.slane %v4639, 4
        %v4642 = vor.u32 %v4641, %v4637
        %v4643 = vrot.slane %v4642, 4
        %v4645 = vshll.u32 %v4603, 16
        %v4647 = vrot.slane %v4645, 5
        %v4648 = vsel %vm2512, %v4643, %v4647
        %v4650 = vshrl.u32 %v4604, 16
        %v4652 = vrot.slane %v4650, 4
        %v4653 = vshll.u32 %v4604, 16
        %v4655 = vrot.slane %v4653, 5
        %v4656 = vor.u32 %v4652, %v4655
        %v4657 = vrot.slane %v4656, 4
        %v4659 = vshll.u32 %v4605, 16
        %v4661 = vrot.slane %v4659, 5
        %v4662 = vsel %vm2512, %v4657, %v4661
        %v4663 = vshrl.u32 %v4605, 16
        %v4665 = vrot.slane %v4663, 4
        %v4666 = vor.u32 %v4665, %v4661
        %v4667 = vrot.slane %v4666, 4
        %v4669 = vshll.u32 %v4606, 16
        %v4671 = vrot.slane %v4669, 5
        %v4672 = vsel %vm2512, %v4667, %v4671
        %v4674 = vshrl.u32 %v4607, 16
        %v4676 = vrot.slane %v4674, 4
        %v4677 = vshll.u32 %v4607, 16
        %v4679 = vrot.slane %v4677, 5
        %v4680 = vor.u32 %v4676, %v4679
        %v4681 = vrot.slane %v4680, 4
        %v4683 = vshll.u32 %v4608, 16
        %v4685 = vrot.slane %v4683, 5
        %v4686 = vsel %vm2512, %v4681, %v4685
        %v4687 = vshrl.u32 %v4608, 16
        %v4689 = vrot.slane %v4687, 4
        %v4690 = vor.u32 %v4689, %v4685
        %v4691 = vrot.slane %v4690, 4
        %v4693 = vshll.u32 %v4609, 16
        %v4695 = vrot.slane %v4693, 5
        %v4696 = vsel %vm2512, %v4691, %v4695
        %v4698 = vshrl.u32 %v4610, 16
        %v4700 = vrot.slane %v4698, 4
        %v4701 = vshll.u32 %v4610, 16
        %v4703 = vrot.slane %v4701, 5
        %v4704 = vor.u32 %v4700, %v4703
        %v4705 = vrot.slane %v4704, 4
        %v4707 = vshll.u32 %v4611, 16
        %v4709 = vrot.slane %v4707, 5
        %v4710 = vsel %vm2512, %v4705, %v4709
        %v4711 = vshrl.u32 %v4611, 16
        %v4713 = vrot.slane %v4711, 4
        %v4714 = vor.u32 %v4713, %v4709
        %v4715 = vrot.slane %v4714, 4
        %v4717 = vshll.u32 %v4612, 16
        %v4719 = vrot.slane %v4717, 5
        %v4720 = vsel %vm2512, %v4715, %v4719
        %v4722 = vshrl.u32 %v4613, 16
        %v4724 = vrot.slane %v4722, 4
        %v4725 = vshll.u32 %v4613, 16
        %v4727 = vrot.slane %v4725, 5
        %v4728 = vor.u32 %v4724, %v4727
        %v4729 = vrot.slane %v4728, 4
        %v4731 = vshll.u32 %v4614, 16
        %v4733 = vrot.slane %v4731, 5
        %v4734 = vsel %vm2512, %v4729, %v4733
        %v4735 = vshrl.u32 %v4614, 16
        %v4737 = vrot.slane %v4735, 4
        %v4738 = vor.u32 %v4737, %v4733
        %v4739 = vrot.slane %v4738, 4
        %v4741 = vshll.u32 %v4615, 16
        %v4743 = vrot.slane %v4741, 5
        %v4744 = vsel %vm2512, %v4739, %v4743
        %v4746 = vshrl.u32 %v4616, 16
        %v4748 = vrot.slane %v4746, 4
        %v4749 = vshll.u32 %v4616, 16
        %v4751 = vrot.slane %v4749, 5
        %v4752 = vor.u32 %v4748, %v4751
        %v4753 = vrot.slane %v4752, 4
        %v4755 = vshll.u32 %v4617, 16
        %v4757 = vrot.slane %v4755, 5
        %v4758 = vsel %vm2512, %v4753, %v4757
        %v4759 = vshrl.u32 %v4617, 16
        %v4761 = vrot.slane %v4759, 4
        %v4762 = vor.u32 %v4761, %v4757
        %v4763 = vrot.slane %v4762, 4
        %v4765 = vshll.u32 %v4618, 16
        %v4767 = vrot.slane %v4765, 5
        %v4768 = vsel %vm2512, %v4763, %v4767
        %v4770 = vshrl.u32 %v4619, 16
        %v4772 = vrot.slane %v4770, 4
        %v4773 = vshll.u32 %v4619, 16
        %v4775 = vrot.slane %v4773, 5
        %v4776 = vor.u32 %v4772, %v4775
        %v4777 = vrot.slane %v4776, 4
        %v4779 = vshll.u32 %v4620, 16
        %v4781 = vrot.slane %v4779, 5
        %v4782 = vsel %vm2512, %v4777, %v4781
        %v4783 = vshrl.u32 %v4620, 16
        %v4785 = vrot.slane %v4783, 4
        %v4786 = vor.u32 %v4785, %v4781
        %v4787 = vrot.slane %v4786, 4
        %v4789 = vshll.u32 %v4621, 16
        %v4791 = vrot.slane %v4789, 5
        %v4792 = vsel %vm2512, %v4787, %v4791
        %v4794 = vshrl.u32 %v4622, 16
        %v4796 = vrot.slane %v4794, 4
        %v4797 = vshll.u32 %v4622, 16
        %v4799 = vrot.slane %v4797, 5
        %v4800 = vor.u32 %v4796, %v4799
        %v4801 = vrot.slane %v4800, 4
        %v4803 = vshll.u32 %v4623, 16
        %v4805 = vrot.slane %v4803, 5
        %v4806 = vsel %vm2512, %v4801, %v4805
        %v4807 = vshrl.u32 %v4623, 16
        %v4809 = vrot.slane %v4807, 4
        %v4810 = vor.u32 %v4809, %v4805
        %v4811 = vrot.slane %v4810, 4
        %v4813 = vshll.u32 %v4624, 16
        %v4815 = vrot.slane %v4813, 5
        %v4816 = vsel %vm2512, %v4811, %v4815
        %s4817 = scalar_lea.vmem %s3, 448
        %v4818 = vld [vmem:[%s4817] sm:$0xf]
        %v4819 = vld [vmem:[%s4817 + $0x4] sm:$0xf]
        %v4820 = vld [vmem:[%s4817 + $0x8] sm:$0xf]
        %v4821 = vld [vmem:[%s4817 + $0xc] sm:$0xf]
        %v4822 = vld [vmem:[%s4817 + $0x10] sm:$0xf]
        %v4823 = vld [vmem:[%s4817 + $0x14] sm:$0xf]
        %v4824 = vld [vmem:[%s4817 + $0x18] sm:$0xf]
        %v4825 = vld [vmem:[%s4817 + $0x1c] sm:$0xf]
        %v4826 = vld [vmem:[%s4817 + $0x20] sm:$0xf]
        %v4827 = vld [vmem:[%s4817 + $0x24] sm:$0xf]
        %v4828 = vld [vmem:[%s4817 + $0x28] sm:$0xf]
        %v4829 = vld [vmem:[%s4817 + $0x2c] sm:$0xf]
        %v4830 = vld [vmem:[%s4817 + $0x30] sm:$0xf]
        %v4831 = vld [vmem:[%s4817 + $0x34] sm:$0xf]
        %v4832 = vld [vmem:[%s4817 + $0x38] sm:$0xf]
        %v4833 = vld [vmem:[%s4817 + $0x3c] sm:$0xf]
        %v4834 = vunpack.c.l.b16 %v4638
        %v4835 = vunpack.c.l.b16 %v4648
        %v4836 = vunpack.c.l.b16 %v4662
        %v4837 = vunpack.c.l.b16 %v4672
        %v4838 = vunpack.c.l.b16 %v4686
        %v4839 = vunpack.c.l.b16 %v4696
        %v4840 = vunpack.c.l.b16 %v4710
        %v4841 = vunpack.c.l.b16 %v4720
        %v4842 = vunpack.c.l.b16 %v4734
        %v4843 = vunpack.c.l.b16 %v4744
        %v4844 = vunpack.c.l.b16 %v4758
        %v4845 = vunpack.c.l.b16 %v4768
        %v4846 = vunpack.c.l.b16 %v4782
        %v4847 = vunpack.c.l.b16 %v4792
        %v4848 = vunpack.c.l.b16 %v4806
        %v4849 = vunpack.c.l.b16 %v4816
        %v4850 = vpack.c.b16 %v4835, %v4834
        %v4851 = vpack.c.b16 %v4837, %v4836
        %v4852 = vpack.c.b16 %v4839, %v4838
        %v4853 = vpack.c.b16 %v4841, %v4840
        %v4854 = vpack.c.b16 %v4843, %v4842
        %v4855 = vpack.c.b16 %v4845, %v4844
        %v4856 = vpack.c.b16 %v4847, %v4846
        %v4857 = vpack.c.b16 %v4849, %v4848
        %v4882 = vunpack.c.l.b16 %v4818
        %v4883 = vunpack.c.l.b16 %v4819
        %v4884 = vunpack.c.l.b16 %v4820
        %v4885 = vunpack.c.l.b16 %v4821
        %v4886 = vunpack.c.l.b16 %v4822
        %v4887 = vunpack.c.l.b16 %v4823
        %v4888 = vunpack.c.l.b16 %v4824
        %v4889 = vunpack.c.l.b16 %v4825
        %v4890 = vunpack.c.l.b16 %v4826
        %v4891 = vunpack.c.l.b16 %v4827
        %v4892 = vunpack.c.l.b16 %v4828
        %v4893 = vunpack.c.l.b16 %v4829
        %v4894 = vunpack.c.l.b16 %v4830
        %v4895 = vunpack.c.l.b16 %v4831
        %v4896 = vunpack.c.l.b16 %v4832
        %v4897 = vunpack.c.l.b16 %v4833
        %v4898 = vpack.c.b16 %v4883, %v4882
        %v4899 = vpack.c.b16 %v4885, %v4884
        %v4900 = vpack.c.b16 %v4887, %v4886
        %v4901 = vpack.c.b16 %v4889, %v4888
        %v4902 = vpack.c.b16 %v4891, %v4890
        %v4903 = vpack.c.b16 %v4893, %v4892
        %v4904 = vpack.c.b16 %v4895, %v4894
        %v4905 = vpack.c.b16 %v4897, %v4896
        %4914 = vmatprep.subr.bf16.mxu0 0
        %4915 = vmatpush1.bf16.msra.mxu0 %v4898
        %4916 = vmatprep.subr.bf16.mxu0 0
        %4917 = vmatpush1.bf16.msra.mxu0 %v4899
        %4918 = vmatprep.subr.bf16.mxu0 0
        %4919 = vmatpush1.bf16.msra.mxu0 %v4900
        %4920 = vmatprep.subr.bf16.mxu0 0
        %4921 = vmatpush1.bf16.msra.mxu0 %v4901
        %4922 = vmatprep.subr.bf16.mxu0 0
        %4923 = vmatpush1.bf16.msra.mxu0 %v4902
        %4924 = vmatprep.subr.bf16.mxu0 0
        %4925 = vmatpush1.bf16.msra.mxu0 %v4903
        %4926 = vmatprep.subr.bf16.mxu0 0
        %4927 = vmatpush1.bf16.msra.mxu0 %v4904
        %4928 = vmatprep.subr.bf16.mxu0 0
        %4929 = vmatpush1.bf16.msra.mxu0 %v4905
        %4930 = vmatprep.subr.bf16.mxu0 0
        %4931 = vmatpush1.bf16.msra.mxu0 0
        %4932 = vmatprep.subr.bf16.mxu0 0
        %4933 = vmatpush1.bf16.msra.mxu0 0
        %4934 = vmatprep.subr.bf16.mxu0 0
        %4935 = vmatpush1.bf16.msra.mxu0 0
        %4936 = vmatprep.subr.bf16.mxu0 0
        %4937 = vmatpush1.bf16.msra.mxu0 0
        %4938 = vmatprep.subr.bf16.mxu0 0
        %4939 = vmatpush1.bf16.msra.mxu0 0
        %4940 = vmatprep.subr.bf16.mxu0 0
        %4941 = vmatpush1.bf16.msra.mxu0 0
        %4942 = vmatprep.subr.bf16.mxu0 0
        %4943 = vmatpush1.bf16.msra.mxu0 0
        %4944 = vmatprep.subr.bf16.mxu0 0
        %4945 = vmatpush1.bf16.msra.mxu0 0
        %4946 = vmatprep.mubr.bf16.mxu0 0
        %4947 = vmatmul.mubr.bf16.gmra.mrb[0].mxu0 %v4850
        %v4948 = vpop.f32.mrb[0].mxu0
        %v4949 = vadd.f32 0.0, %v4948
        %v4950 = vpop.f32.mrb[0].mxu0
        %v4951 = vpop.f32.mrb[0].mxu0
        %v4952 = vadd.f32 0.0, %v4951
        %v4953 = vpop.f32.mrb[0].mxu0
        %4954 = vmatprep.mubr.bf16.mxu0 0
        %4955 = vmatmul.mubr.bf16.gmra.mrb[0].mxu0 %v4851
        %v4956 = vpop.f32.mrb[0].mxu0
        %v4957 = vadd.f32 0.0, %v4956
        %v4958 = vpop.f32.mrb[0].mxu0
        %v4959 = vpop.f32.mrb[0].mxu0
        %v4960 = vadd.f32 0.0, %v4959
        %v4961 = vpop.f32.mrb[0].mxu0
        %4962 = vmatprep.mubr.bf16.mxu0 0
        %4963 = vmatmul.mubr.bf16.gmra.mrb[0].mxu0 %v4852
        %v4964 = vpop.f32.mrb[0].mxu0
        %v4965 = vadd.f32 0.0, %v4964
        %v4966 = vpop.f32.mrb[0].mxu0
        %v4967 = vpop.f32.mrb[0].mxu0
        %v4968 = vadd.f32 0.0, %v4967
        %v4969 = vpop.f32.mrb[0].mxu0
        %4970 = vmatprep.mubr.bf16.mxu0 0
        %4971 = vmatmul.mubr.bf16.gmra.mrb[0].mxu0 %v4853
        %v4972 = vpop.f32.mrb[0].mxu0
        %v4973 = vadd.f32 0.0, %v4972
        %v4974 = vpop.f32.mrb[0].mxu0
        %v4975 = vpop.f32.mrb[0].mxu0
        %v4976 = vadd.f32 0.0, %v4975
        %v4977 = vpop.f32.mrb[0].mxu0
        %4978 = vmatprep.mubr.bf16.mxu0 0
        %4979 = vmatmul.mubr.bf16.gmra.mrb[0].mxu0 %v4854
        %v4980 = vpop.f32.mrb[0].mxu0
        %v4981 = vadd.f32 0.0, %v4980
        %v4982 = vpop.f32.mrb[0].mxu0
        %v4983 = vpop.f32.mrb[0].mxu0
        %v4984 = vadd.f32 0.0, %v4983
        %v4985 = vpop.f32.mrb[0].mxu0
        %4986 = vmatprep.mubr.bf16.mxu0 0
        %4987 = vmatmul.mubr.bf16.gmra.mrb[0].mxu0 %v4855
        %v4988 = vpop.f32.mrb[0].mxu0
        %v4989 = vadd.f32 0.0, %v4988
        %v4990 = vpop.f32.mrb[0].mxu0
        %v4991 = vpop.f32.mrb[0].mxu0
        %v4992 = vadd.f32 0.0, %v4991
        %v4993 = vpop.f32.mrb[0].mxu0
        %4994 = vmatprep.mubr.bf16.mxu0 0
        %4995 = vmatmul.mubr.bf16.gmra.mrb[0].mxu0 %v4856
        %v4996 = vpop.f32.mrb[0].mxu0
        %v4997 = vadd.f32 0.0, %v4996
        %v4998 = vpop.f32.mrb[0].mxu0
        %v4999 = vpop.f32.mrb[0].mxu0
        %v5000 = vadd.f32 0.0, %v4999
        %v5001 = vpop.f32.mrb[0].mxu0
        %5002 = vmatprep.mubr.bf16.mxu0 0
        %5003 = vmatmul.mubr.bf16.gmra.mrb[0].mxu0 %v4857
        %v5004 = vpop.f32.mrb[0].mxu0
        %v5005 = vadd.f32 0.0, %v5004
        %v5006 = vpop.f32.mrb[0].mxu0
        %v5007 = vpop.f32.mrb[0].mxu0
        %v5008 = vadd.f32 0.0, %v5007
        %v5009 = vpop.f32.mrb[0].mxu0
        %5010 = vdwg.mxu0
        %v5011 = vadd.f32 %v4585, %v4949
        %v5012 = vadd.f32 %v4586, %v4952
        %v5013 = vadd.f32 %v4587, %v4957
        %v5014 = vadd.f32 %v4588, %v4960
        %v5015 = vadd.f32 %v4589, %v4965
        %v5016 = vadd.f32 %v4590, %v4968
        %v5017 = vadd.f32 %v4591, %v4973
        %v5018 = vadd.f32 %v4592, %v4976
        %v5019 = vadd.f32 %v4593, %v4981
        %v5020 = vadd.f32 %v4594, %v4984
        %v5021 = vadd.f32 %v4595, %v4989
        %v5022 = vadd.f32 %v4596, %v4992
        %v5023 = vadd.f32 %v4597, %v4997
        %v5024 = vadd.f32 %v4598, %v5000
        %v5025 = vadd.f32 %v4599, %v5005
        %v5026 = vadd.f32 %v4600, %v5008
        %v5027 = vld [vmem:[%s4358] sm:$0xe]
        %v5028 = vld [vmem:[%s4358 + $0xc] sm:$0xe]
        %v5029 = vld [vmem:[%s4358 + $0x18] sm:$0xe]
        %v5030 = vld [vmem:[%s4358 + $0x24] sm:$0xe]
        %v5031 = vld [vmem:[%s4358 + $0x30] sm:$0xe]
        %v5032 = vld [vmem:[%s4358 + $0x3c] sm:$0xe]
        %v5033 = vld [vmem:[%s4358 + $0x48] sm:$0xe]
        %v5034 = vld [vmem:[%s4358 + $0x54] sm:$0xe]
        %v5059 = vrot.slane %v5027, 5
        %v5060 = vrot.slane %v5059, 4
        %v5061 = vrot.slane %v4602, 5
        %v5062 = vsel %vm3118, %v5060, %v5061
        %v5063 = vrot.slane %v5061, 4
        %v5064 = vrot.slane %v4603, 5
        %v5065 = vsel %vm3118, %v5063, %v5064
        %v5066 = vrot.slane %v5028, 5
        %v5067 = vrot.slane %v5066, 4
        %v5068 = vrot.slane %v4605, 5
        %v5069 = vsel %vm3118, %v5067, %v5068
        %v5070 = vrot.slane %v5068, 4
        %v5071 = vrot.slane %v4606, 5
        %v5072 = vsel %vm3118, %v5070, %v5071
        %v5073 = vrot.slane %v5029, 5
        %v5074 = vrot.slane %v5073, 4
        %v5075 = vrot.slane %v4608, 5
        %v5076 = vsel %vm3118, %v5074, %v5075
        %v5077 = vrot.slane %v5075, 4
        %v5078 = vrot.slane %v4609, 5
        %v5079 = vsel %vm3118, %v5077, %v5078
        %v5080 = vrot.slane %v5030, 5
        %v5081 = vrot.slane %v5080, 4
        %v5082 = vrot.slane %v4611, 5
        %v5083 = vsel %vm3118, %v5081, %v5082
        %v5084 = vrot.slane %v5082, 4
        %v5085 = vrot.slane %v4612, 5
        %v5086 = vsel %vm3118, %v5084, %v5085
        %v5087 = vrot.slane %v5031, 5
        %v5088 = vrot.slane %v5087, 4
        %v5089 = vrot.slane %v4614, 5
        %v5090 = vsel %vm3118, %v5088, %v5089
        %v5091 = vrot.slane %v5089, 4
        %v5092 = vrot.slane %v4615, 5
        %v5093 = vsel %vm3118, %v5091, %v5092
        %v5094 = vrot.slane %v5032, 5
        %v5095 = vrot.slane %v5094, 4
        %v5096 = vrot.slane %v4617, 5
        %v5097 = vsel %vm3118, %v5095, %v5096
        %v5098 = vrot.slane %v5096, 4
        %v5099 = vrot.slane %v4618, 5
        %v5100 = vsel %vm3118, %v5098, %v5099
        %v5101 = vrot.slane %v5033, 5
        %v5102 = vrot.slane %v5101, 4
        %v5103 = vrot.slane %v4620, 5
        %v5104 = vsel %vm3118, %v5102, %v5103
        %v5105 = vrot.slane %v5103, 4
        %v5106 = vrot.slane %v4621, 5
        %v5107 = vsel %vm3118, %v5105, %v5106
        %v5108 = vrot.slane %v5034, 5
        %v5109 = vrot.slane %v5108, 4
        %v5110 = vrot.slane %v4623, 5
        %v5111 = vsel %vm3118, %v5109, %v5110
        %v5112 = vrot.slane %v5110, 4
        %v5113 = vrot.slane %v4624, 5
        %v5114 = vsel %vm3118, %v5112, %v5113
        %s5115 = scalar_lea.vmem %s3, 512
        %v5116 = vld [vmem:[%s5115] sm:$0xf]
        %v5117 = vld [vmem:[%s5115 + $0x4] sm:$0xf]
        %v5118 = vld [vmem:[%s5115 + $0x8] sm:$0xf]
        %v5119 = vld [vmem:[%s5115 + $0xc] sm:$0xf]
        %v5120 = vld [vmem:[%s5115 + $0x10] sm:$0xf]
        %v5121 = vld [vmem:[%s5115 + $0x14] sm:$0xf]
        %v5122 = vld [vmem:[%s5115 + $0x18] sm:$0xf]
        %v5123 = vld [vmem:[%s5115 + $0x1c] sm:$0xf]
        %v5124 = vld [vmem:[%s5115 + $0x20] sm:$0xf]
        %v5125 = vld [vmem:[%s5115 + $0x24] sm:$0xf]
        %v5126 = vld [vmem:[%s5115 + $0x28] sm:$0xf]
        %v5127 = vld [vmem:[%s5115 + $0x2c] sm:$0xf]
        %v5128 = vld [vmem:[%s5115 + $0x30] sm:$0xf]
        %v5129 = vld [vmem:[%s5115 + $0x34] sm:$0xf]
        %v5130 = vld [vmem:[%s5115 + $0x38] sm:$0xf]
        %v5131 = vld [vmem:[%s5115 + $0x3c] sm:$0xf]
        %v5132 = vunpack.c.l.b16 %v5062
        %v5133 = vunpack.c.l.b16 %v5065
        %v5134 = vunpack.c.l.b16 %v5069
        %v5135 = vunpack.c.l.b16 %v5072
        %v5136 = vunpack.c.l.b16 %v5076
        %v5137 = vunpack.c.l.b16 %v5079
        %v5138 = vunpack.c.l.b16 %v5083
        %v5139 = vunpack.c.l.b16 %v5086
        %v5140 = vunpack.c.l.b16 %v5090
        %v5141 = vunpack.c.l.b16 %v5093
        %v5142 = vunpack.c.l.b16 %v5097
        %v5143 = vunpack.c.l.b16 %v5100
        %v5144 = vunpack.c.l.b16 %v5104
        %v5145 = vunpack.c.l.b16 %v5107
        %v5146 = vunpack.c.l.b16 %v5111
        %v5147 = vunpack.c.l.b16 %v5114
        %v5148 = vpack.c.b16 %v5133, %v5132
        %v5149 = vpack.c.b16 %v5135, %v5134
        %v5150 = vpack.c.b16 %v5137, %v5136
        %v5151 = vpack.c.b16 %v5139, %v5138
        %v5152 = vpack.c.b16 %v5141, %v5140
        %v5153 = vpack.c.b16 %v5143, %v5142
        %v5154 = vpack.c.b16 %v5145, %v5144
        %v5155 = vpack.c.b16 %v5147, %v5146
        %v5180 = vunpack.c.l.b16 %v5116
        %v5181 = vunpack.c.l.b16 %v5117
        %v5182 = vunpack.c.l.b16 %v5118
        %v5183 = vunpack.c.l.b16 %v5119
        %v5184 = vunpack.c.l.b16 %v5120
        %v5185 = vunpack.c.l.b16 %v5121
        %v5186 = vunpack.c.l.b16 %v5122
        %v5187 = vunpack.c.l.b16 %v5123
        %v5188 = vunpack.c.l.b16 %v5124
        %v5189 = vunpack.c.l.b16 %v5125
        %v5190 = vunpack.c.l.b16 %v5126
        %v5191 = vunpack.c.l.b16 %v5127
        %v5192 = vunpack.c.l.b16 %v5128
        %v5193 = vunpack.c.l.b16 %v5129
        %v5194 = vunpack.c.l.b16 %v5130
        %v5195 = vunpack.c.l.b16 %v5131
        %v5196 = vpack.c.b16 %v5181, %v5180
        %v5197 = vpack.c.b16 %v5183, %v5182
        %v5198 = vpack.c.b16 %v5185, %v5184
        %v5199 = vpack.c.b16 %v5187, %v5186
        %v5200 = vpack.c.b16 %v5189, %v5188
        %v5201 = vpack.c.b16 %v5191, %v5190
        %v5202 = vpack.c.b16 %v5193, %v5192
        %v5203 = vpack.c.b16 %v5195, %v5194
        %5212 = vmatprep.subr.bf16.mxu0 0
        %5213 = vmatpush1.bf16.msra.mxu0 %v5196
        %5214 = vmatprep.subr.bf16.mxu0 0
        %5215 = vmatpush1.bf16.msra.mxu0 %v5197
        %5216 = vmatprep.subr.bf16.mxu0 0
        %5217 = vmatpush1.bf16.msra.mxu0 %v5198
        %5218 = vmatprep.subr.bf16.mxu0 0
        %5219 = vmatpush1.bf16.msra.mxu0 %v5199
        %5220 = vmatprep.subr.bf16.mxu0 0
        %5221 = vmatpush1.bf16.msra.mxu0 %v5200
        %5222 = vmatprep.subr.bf16.mxu0 0
        %5223 = vmatpush1.bf16.msra.mxu0 %v5201
        %5224 = vmatprep.subr.bf16.mxu0 0
        %5225 = vmatpush1.bf16.msra.mxu0 %v5202
        %5226 = vmatprep.subr.bf16.mxu0 0
        %5227 = vmatpush1.bf16.msra.mxu0 %v5203
        %5228 = vmatprep.subr.bf16.mxu0 0
        %5229 = vmatpush1.bf16.msra.mxu0 0
        %5230 = vmatprep.subr.bf16.mxu0 0
        %5231 = vmatpush1.bf16.msra.mxu0 0
        %5232 = vmatprep.subr.bf16.mxu0 0
        %5233 = vmatpush1.bf16.msra.mxu0 0
        %5234 = vmatprep.subr.bf16.mxu0 0
        %5235 = vmatpush1.bf16.msra.mxu0 0
        %5236 = vmatprep.subr.bf16.mxu0 0
        %5237 = vmatpush1.bf16.msra.mxu0 0
        %5238 = vmatprep.subr.bf16.mxu0 0
        %5239 = vmatpush1.bf16.msra.mxu0 0
        %5240 = vmatprep.subr.bf16.mxu0 0
        %5241 = vmatpush1.bf16.msra.mxu0 0
        %5242 = vmatprep.subr.bf16.mxu0 0
        %5243 = vmatpush1.bf16.msra.mxu0 0
        %5244 = vmatprep.mubr.bf16.mxu0 0
        %5245 = vmatmul.mubr.bf16.gmra.mrb[0].mxu0 %v5148
        %v5246 = vpop.f32.mrb[0].mxu0
        %v5247 = vadd.f32 0.0, %v5246
        %v5248 = vpop.f32.mrb[0].mxu0
        %v5249 = vpop.f32.mrb[0].mxu0
        %v5250 = vadd.f32 0.0, %v5249
        %v5251 = vpop.f32.mrb[0].mxu0
        %5252 = vmatprep.mubr.bf16.mxu0 0
        %5253 = vmatmul.mubr.bf16.gmra.mrb[0].mxu0 %v5149
        %v5254 = vpop.f32.mrb[0].mxu0
        %v5255 = vadd.f32 0.0, %v5254
        %v5256 = vpop.f32.mrb[0].mxu0
        %v5257 = vpop.f32.mrb[0].mxu0
        %v5258 = vadd.f32 0.0, %v5257
        %v5259 = vpop.f32.mrb[0].mxu0
        %5260 = vmatprep.mubr.bf16.mxu0 0
        %5261 = vmatmul.mubr.bf16.gmra.mrb[0].mxu0 %v5150
        %v5262 = vpop.f32.mrb[0].mxu0
        %v5263 = vadd.f32 0.0, %v5262
        %v5264 = vpop.f32.mrb[0].mxu0
        %v5265 = vpop.f32.mrb[0].mxu0
        %v5266 = vadd.f32 0.0, %v5265
        %v5267 = vpop.f32.mrb[0].mxu0
        %5268 = vmatprep.mubr.bf16.mxu0 0
        %5269 = vmatmul.mubr.bf16.gmra.mrb[0].mxu0 %v5151
        %v5270 = vpop.f32.mrb[0].mxu0
        %v5271 = vadd.f32 0.0, %v5270
        %v5272 = vpop.f32.mrb[0].mxu0
        %v5273 = vpop.f32.mrb[0].mxu0
        %v5274 = vadd.f32 0.0, %v5273
        %v5275 = vpop.f32.mrb[0].mxu0
        %5276 = vmatprep.mubr.bf16.mxu0 0
        %5277 = vmatmul.mubr.bf16.gmra.mrb[0].mxu0 %v5152
        %v5278 = vpop.f32.mrb[0].mxu0
        %v5279 = vadd.f32 0.0, %v5278
        %v5280 = vpop.f32.mrb[0].mxu0
        %v5281 = vpop.f32.mrb[0].mxu0
        %v5282 = vadd.f32 0.0, %v5281
        %v5283 = vpop.f32.mrb[0].mxu0
        %5284 = vmatprep.mubr.bf16.mxu0 0
        %5285 = vmatmul.mubr.bf16.gmra.mrb[0].mxu0 %v5153
        %v5286 = vpop.f32.mrb[0].mxu0
        %v5287 = vadd.f32 0.0, %v5286
        %v5288 = vpop.f32.mrb[0].mxu0
        %v5289 = vpop.f32.mrb[0].mxu0
        %v5290 = vadd.f32 0.0, %v5289
        %v5291 = vpop.f32.mrb[0].mxu0
        %5292 = vmatprep.mubr.bf16.mxu0 0
        %5293 = vmatmul.mubr.bf16.gmra.mrb[0].mxu0 %v5154
        %v5294 = vpop.f32.mrb[0].mxu0
        %v5295 = vadd.f32 0.0, %v5294
        %v5296 = vpop.f32.mrb[0].mxu0
        %v5297 = vpop.f32.mrb[0].mxu0
        %v5298 = vadd.f32 0.0, %v5297
        %v5299 = vpop.f32.mrb[0].mxu0
        %5300 = vmatprep.mubr.bf16.mxu0 0
        %5301 = vmatmul.mubr.bf16.gmra.mrb[0].mxu0 %v5155
        %v5302 = vpop.f32.mrb[0].mxu0
        %v5303 = vadd.f32 0.0, %v5302
        %v5304 = vpop.f32.mrb[0].mxu0
        %v5305 = vpop.f32.mrb[0].mxu0
        %v5306 = vadd.f32 0.0, %v5305
        %v5307 = vpop.f32.mrb[0].mxu0
        %5308 = vdwg.mxu0
        %v5309 = vadd.f32 %v5011, %v5247
        %v5310 = vadd.f32 %v5012, %v5250
        %v5311 = vadd.f32 %v5013, %v5255
        %v5312 = vadd.f32 %v5014, %v5258
        %v5313 = vadd.f32 %v5015, %v5263
        %v5314 = vadd.f32 %v5016, %v5266
        %v5315 = vadd.f32 %v5017, %v5271
        %v5316 = vadd.f32 %v5018, %v5274
        %v5317 = vadd.f32 %v5019, %v5279
        %v5318 = vadd.f32 %v5020, %v5282
        %v5319 = vadd.f32 %v5021, %v5287
        %v5320 = vadd.f32 %v5022, %v5290
        %v5321 = vadd.f32 %v5023, %v5295
        %v5322 = vadd.f32 %v5024, %v5298
        %v5323 = vadd.f32 %v5025, %v5303
        %v5324 = vadd.f32 %v5026, %v5306
        %v5325 = vld [vmem:[%s4] sm:$0x1]
        %v5327 = vlaneseq
        %v5328 = vshrl.u32 %v5327, 7
        %v5329 = vsub.s32 0, %v5328
        %v5330 = vrot.slane %v5325, %v5329
        %v5332 = vadd.f32 %v5309, %v5330
        %v5333 = vadd.f32 %v5310, %v5330
        %v5334 = vadd.f32 %v5311, %v5330
        %v5335 = vadd.f32 %v5312, %v5330
        %v5336 = vadd.f32 %v5313, %v5330
        %v5337 = vadd.f32 %v5314, %v5330
        %v5338 = vadd.f32 %v5315, %v5330
        %v5339 = vadd.f32 %v5316, %v5330
        %v5340 = vadd.f32 %v5317, %v5330
        %v5341 = vadd.f32 %v5318, %v5330
        %v5342 = vadd.f32 %v5319, %v5330
        %v5343 = vadd.f32 %v5320, %v5330
        %v5344 = vadd.f32 %v5321, %v5330
        %v5345 = vadd.f32 %v5322, %v5330
        %v5346 = vadd.f32 %v5323, %v5330
        %v5347 = vadd.f32 %v5324, %v5330
        %s5348 = smul.u32 %s3385, 24
        %s5349 = scalar_lea.vmem %s219, %s5348
        %v5350 = vld [vmem:[%s5349 + $0x1] sm:$0xff]
        %v5351 = vld [vmem:[%s5349 + $0x9] sm:$0xff]
        %v5352 = vld [vmem:[%s5349 + $0x19] sm:$0xff]
        %v5353 = vld [vmem:[%s5349 + $0x21] sm:$0xff]
        %v5354 = vld [vmem:[%s5349 + $0x31] sm:$0xff]
        %v5355 = vld [vmem:[%s5349 + $0x39] sm:$0xff]
        %v5356 = vld [vmem:[%s5349 + $0x49] sm:$0xff]
        %v5357 = vld [vmem:[%s5349 + $0x51] sm:$0xff]
        %v5358 = vld [vmem:[%s5349 + $0x61] sm:$0xff]
        %v5359 = vld [vmem:[%s5349 + $0x69] sm:$0xff]
        %v5360 = vld [vmem:[%s5349 + $0x79] sm:$0xff]
        %v5361 = vld [vmem:[%s5349 + $0x81] sm:$0xff]
        %v5362 = vld [vmem:[%s5349 + $0x91] sm:$0xff]
        %v5363 = vld [vmem:[%s5349 + $0x99] sm:$0xff]
        %v5364 = vld [vmem:[%s5349 + $0xa9] sm:$0xff]
        %v5365 = vld [vmem:[%s5349 + $0xb1] sm:$0xff]
        %v5366 = vadd.f32 %v5332, %v5350
        %v5367 = vadd.f32 %v5333, %v5351
        %v5368 = vadd.f32 %v5334, %v5352
        %v5369 = vadd.f32 %v5335, %v5353
        %v5370 = vadd.f32 %v5336, %v5354
        %v5371 = vadd.f32 %v5337, %v5355
        %v5372 = vadd.f32 %v5338, %v5356
        %v5373 = vadd.f32 %v5339, %v5357
        %v5374 = vadd.f32 %v5340, %v5358
        %v5375 = vadd.f32 %v5341, %v5359
        %v5376 = vadd.f32 %v5342, %v5360
        %v5377 = vadd.f32 %v5343, %v5361
        %v5378 = vadd.f32 %v5344, %v5362
        %v5379 = vadd.f32 %v5345, %v5363
        %v5380 = vadd.f32 %v5346, %v5364
        %v5381 = vadd.f32 %v5347, %v5365
        %v5382 = vmax.f32 %v5366, 0.0
        %v5383 = vmax.f32 %v5367, 0.0
        %v5384 = vmax.f32 %v5368, 0.0
        %v5385 = vmax.f32 %v5369, 0.0
        %v5386 = vmax.f32 %v5370, 0.0
        %v5387 = vmax.f32 %v5371, 0.0
        %v5388 = vmax.f32 %v5372, 0.0
        %v5389 = vmax.f32 %v5373, 0.0
        %v5390 = vmax.f32 %v5374, 0.0
        %v5391 = vmax.f32 %v5375, 0.0
        %v5392 = vmax.f32 %v5376, 0.0
        %v5393 = vmax.f32 %v5377, 0.0
        %v5394 = vmax.f32 %v5378, 0.0
        %v5395 = vmax.f32 %v5379, 0.0
        %v5396 = vmax.f32 %v5380, 0.0
        %v5397 = vmax.f32 %v5381, 0.0
        %s5398 = smul.u32 %s2466, 16
        %s5399 = scalar_lea.vmem %s224, %s5398
        %5400 = vst [vmem:[%s5399] sm:$0xff] %v5382
        %5401 = vst [vmem:[%s5399 + $0x8] sm:$0xff] %v5383
        %5402 = vst [vmem:[%s5399 + $0x10] sm:$0xff] %v5384
        %5403 = vst [vmem:[%s5399 + $0x18] sm:$0xff] %v5385
        %5404 = vst [vmem:[%s5399 + $0x20] sm:$0xff] %v5386
        %5405 = vst [vmem:[%s5399 + $0x28] sm:$0xff] %v5387
        %5406 = vst [vmem:[%s5399 + $0x30] sm:$0xff] %v5388
        %5407 = vst [vmem:[%s5399 + $0x38] sm:$0xff] %v5389
        %5408 = vst [vmem:[%s5399 + $0x40] sm:$0xff] %v5390
        %5409 = vst [vmem:[%s5399 + $0x48] sm:$0xff] %v5391
        %5410 = vst [vmem:[%s5399 + $0x50] sm:$0xff] %v5392
        %5411 = vst [vmem:[%s5399 + $0x58] sm:$0xff] %v5393
        %5412 = vst [vmem:[%s5399 + $0x60] sm:$0xff] %v5394
        %5413 = vst [vmem:[%s5399 + $0x68] sm:$0xff] %v5395
        %5414 = vst [vmem:[%s5399 + $0x70] sm:$0xff] %v5396
        %5415 = vst [vmem:[%s5399 + $0x78] sm:$0xff] %v5397
      $region52: #{basic_block_forward.1} parent=39 // loop_footer
        %s2463 = sadd.s32 1, %s2459
      $region53: #{basic_block_forward.1} parent=39 // loop_footer_branch
        %2458 = sbr.rel target = $region49
      $region54: #{basic_block_forward.1} parent=39 // loop_exit
        _
      %p5416 = scmp.lt.s32.totalorder %s16, 1
      %s5417 = scalar_select %p5416, %s16, 1
      %s5418 = smul.addr %s5417, 32
      %s5419 = smul.addr %s5418, 8
      %s5420 = scalar_lea.vmem %s5, %s5419
      // Predicated region
      $region55: #{basic_block_forward.1} parent=39 // pred_check
        %p5421 = pneg %p144
      $region56: #{basic_block_forward.1} parent=39 // pred_check_branch
        %5423 = sbr.rel (%p5421) target = $region58
      $region57: #{basic_block_forward.1} parent=39 // pred_region
        _
      $region58: #{basic_block_forward.1} parent=39 // pred_fallthru
        _
    $region40: #{basic_block_forward.1} parent=5 // pred_fallthru
      _
    %p5424 = scmp.le.s32.totalorder 2, %s11
    // Predicated region
    $region59: #{basic_block_forward.1} parent=5 // pred_check
      %p5425 = pneg %p5424
    $region60: #{basic_block_forward.1} parent=5 // pred_check_branch
      %5427 = sbr.rel (%p5425) target = $region62
    $region61: #{basic_block_forward.1} parent=5 // pred_region
      %s5428 = ssub.s32 %s11, 2
      // Predicated region
      $region63: #{basic_block_forward.1} parent=61 // pred_check
        %p5429 = pneg %p150
      $region64: #{basic_block_forward.1} parent=61 // pred_check_branch
        %5431 = sbr.rel (%p5429) target = $region66
      $region65: #{basic_block_forward.1} parent=61 // pred_region
        %p5432 = scmp.lt.s32.totalorder %s17, 1
        %s5433 = scalar_select %p5432, %s17, 1
        %s5434 = smul.addr %s5433, 32
        %s5435 = smul.addr %s5434, 8
        %s5436 = scalar_lea.vmem %s5, %s5435
      $region66: #{basic_block_forward.1} parent=61 // pred_fallthru
        _
    $region62: #{basic_block_forward.1} parent=5 // pred_fallthru
      _
  $region6: #{basic_block_forward.1} parent=0 // loop_footer
    %s15 = sadd.s32 1, %s11
  $region7: #{basic_block_forward.1} parent=0 // loop_footer_branch
    %10 = sbr.rel target = $region3
  $region8: #{basic_block_forward.1} parent=0 // loop_exit
    _

</llo_original>
